<compile_context>
chip_gen: v6e
topology: v6e:2x2x1
jax: 0.10.0
libtpu: 0.0.40
codegen_flags: <defaults>
</compile_context>

<pallas_src>
import functools

import jax
import jax.numpy as jnp
import numpy as np
from jax.experimental import pallas as pl
from jax.experimental.pallas import tpu as pltpu

BN_EPS = 1e-5  # nn.BatchNorm3d default


# ----------------------------------------------------------------------------
# Pallas kernel: out = [relu]( x @ w  [+ skip @ rw]  + shift )
# x, w, skip, rw are bf16 (BN scale pre-folded into w / rw); f32 accumulation.
# ----------------------------------------------------------------------------
def _fused_kernel(x_ref, w_ref, shift_ref, *rest, relu, has_skip):
    if has_skip:
        s_ref, rw_ref, o_ref = rest
    else:
        (o_ref,) = rest
    acc = jnp.dot(x_ref[...], w_ref[...], preferred_element_type=jnp.float32)
    if has_skip:
        acc = acc + jnp.dot(s_ref[...], rw_ref[...],
                            preferred_element_type=jnp.float32)
    acc = acc + shift_ref[...]
    if relu:
        acc = jnp.maximum(acc, 0.0)
    o_ref[...] = acc.astype(o_ref.dtype)


_TM_CANDIDATES = (2048, 1024, 512, 256, 128)
_VMEM_BUDGET = 32 * 1024 * 1024   # budget used by the row-tile chooser
_VMEM_LIMIT = 48 * 1024 * 1024    # scoped-VMEM request passed to Mosaic


def _tile_rows(m, row_bytes, resident_bytes):
    """Pick the row tile tm and padded row count.

    Prefers the largest tile whose double-buffered pipelined blocks plus the
    VMEM-resident folded weights fit the budget, with >= 2 grid steps so the
    'parallel' grid axis can be megacore-sharded. Never pads a small M up to
    a much larger tile."""
    def fits(tm):
        return resident_bytes + 2 * tm * row_bytes <= _VMEM_BUDGET

    for tm in _TM_CANDIDATES:
        if m % tm == 0 and m // tm >= 2 and fits(tm):
            return tm, m
    for tm in _TM_CANDIDATES:
        if m % tm == 0 and fits(tm):
            return tm, m
    # m is not a multiple of any candidate: minimal padding.
    for tm in _TM_CANDIDATES:
        if tm <= m and fits(tm):
            return tm, pl.cdiv(m, tm) * tm
    tm = _TM_CANDIDATES[-1]
    return tm, pl.cdiv(m, tm) * tm


def fused_matmul(x, w, shift, skip=None, rw=None, relu=True):
    """x:(M,K) bf16, w:(K,Co) bf16 (BN scale folded), shift:(Co,) f32,
    optional fused skip:(M,Ks) bf16 with rw:(Ks,Co) bf16. Returns (M,Co) bf16."""
    m, k = x.shape
    co = w.shape[1]
    ks = 0 if skip is None else skip.shape[1]

    # Per-row bytes of the pipelined (double-buffered) blocks: activation row,
    # optional skip row, output row (all bf16).
    row_bytes = (k + ks) * 2 + co * 2
    # VMEM-resident operands (folded weights + shift), counted x2 conservatively.
    resident_bytes = 2 * ((k + ks) * co * 2 + co * 4)
    tm, mp = _tile_rows(m, row_bytes, resident_bytes)

    x = x.astype(jnp.bfloat16)
    w = w.astype(jnp.bfloat16)
    if mp != m:
        x = jnp.pad(x, ((0, mp - m), (0, 0)))
    shift2 = shift.reshape(1, co).astype(jnp.float32)

    in_specs = [
        pl.BlockSpec((tm, k), lambda i: (i, 0)),   # activation patches (tiled M)
        pl.BlockSpec((k, co), lambda i: (0, 0)),   # folded weight, VMEM resident
        pl.BlockSpec((1, co), lambda i: (0, 0)),   # folded BN shift
    ]
    args = [x, w, shift2]
    flops = 2 * mp * k * co
    bytes_accessed = mp * k * 2 + k * co * 2 + mp * co * 2 + co * 4

    if skip is not None:
        assert rw is not None
        skip = skip.astype(jnp.bfloat16)
        rw = rw.astype(jnp.bfloat16)
        if mp != m:
            skip = jnp.pad(skip, ((0, mp - m), (0, 0)))
        in_specs += [
            pl.BlockSpec((tm, ks), lambda i: (i, 0)),  # fused redir skip input
            pl.BlockSpec((ks, co), lambda i: (0, 0)),  # redir weight, resident
        ]
        args += [skip, rw]
        flops += 2 * mp * ks * co
        bytes_accessed += mp * ks * 2 + ks * co * 2

    kernel = functools.partial(_fused_kernel, relu=relu,
                               has_skip=skip is not None)
    out = pl.pallas_call(
        kernel,
        grid=(mp // tm,),
        in_specs=in_specs,
        out_specs=pl.BlockSpec((tm, co), lambda i: (i, 0)),
        out_shape=jax.ShapeDtypeStruct((mp, co), jnp.bfloat16),
        compiler_params=pltpu.CompilerParams(
            dimension_semantics=("parallel",),
            vmem_limit_bytes=_VMEM_LIMIT,
        ),
        cost_estimate=pl.CostEstimate(
            flops=flops, transcendentals=0, bytes_accessed=bytes_accessed),
    )(*args)
    return out if mp == m else out[:m]


# ----------------------------------------------------------------------------
# Forward 3x3x3 convolutions (conv1-conv4): im2col (bf16) + fused matmul
# ----------------------------------------------------------------------------
def _extract_patches3(x, stride):
    """x: (N, D, H, W, C) bf16, 3x3x3 kernel, pad=1 -> (N*Do*Ho*Wo, 27*C)."""
    n, d, h, w, c = x.shape
    xp = jnp.pad(x, ((0, 0), (1, 1), (1, 1), (1, 1), (0, 0)))
    do = (d + 2 - 3) // stride + 1
    ho = (h + 2 - 3) // stride + 1
    wo = (w + 2 - 3) // stride + 1
    parts = []
    for kd in range(3):
        for kh in range(3):
            for kw in range(3):
                parts.append(
                    xp[:, kd:kd + stride * (do - 1) + 1:stride,
                       kh:kh + stride * (ho - 1) + 1:stride,
                       kw:kw + stride * (wo - 1) + 1:stride, :])
    patches = jnp.concatenate(parts, axis=-1)
    return patches.reshape(n * do * ho * wo, 27 * c), (n, do, ho, wo)


def _conv3_w_mat(w, scale):
    # PyTorch Conv3d weight (Co, Ci, 3, 3, 3) -> (27*Ci, Co), BN scale folded.
    m = jnp.transpose(w, (2, 3, 4, 1, 0)).reshape(-1, w.shape[0])
    return (m * scale[None, :]).astype(jnp.bfloat16)


def conv3d_bn_relu(x, w, bn, stride):
    scale, shift = bn
    patches, (n, do, ho, wo) = _extract_patches3(x, stride)
    out = fused_matmul(patches, _conv3_w_mat(w, scale), shift, relu=True)
    return out.reshape(n, do, ho, wo, -1)


# ----------------------------------------------------------------------------
# ConvTranspose3d (k=3, s=2, p=1, op=1) via sub-pixel (8-phase) decomposition,
# with the redir 1x1x1 conv + BN fused as a second dot in the same kernel.
#
# Per axis: output o = 2*m + p receives input (m + off) with kernel tap
# k = p - 2*off + 1, valid only for (p, off) in {(0,0)->1, (1,0)->2, (1,1)->0}.
# ----------------------------------------------------------------------------
# _PHASE_SEL[p, off, k] = 1 iff output parity p takes input offset `off` via tap k.
_PHASE_SEL = np.zeros((2, 2, 3), np.float32)
_PHASE_SEL[0, 0, 1] = 1.0
_PHASE_SEL[1, 0, 2] = 1.0
_PHASE_SEL[1, 1, 0] = 1.0


def _deconv_phase_w_mat(wt, scale):
    """wt: torch ConvTranspose3d weight (Ci, Co, 3, 3, 3) -> (8*Ci, 8*Co) bf16.
    Row blocks = input offsets (od,oh,ow) in {0,1}^3; column blocks = output
    parities (pd,ph,pw) in {0,1}^3. BN scale folded into the columns."""
    ci, co = wt.shape[0], wt.shape[1]
    sel = jnp.asarray(_PHASE_SEL)
    ws = wt * scale[None, :, None, None, None]
    # indices: a/b/c = output parity d/h/w, d/e/f = input offset d/h/w,
    #          k/l/m = kernel tap d/h/w, i = Ci, o = Co.
    r = jnp.einsum('adk,bel,cfm,ioklm->defiabco', sel, sel, sel, ws)
    return r.reshape(8 * ci, 8 * co).astype(jnp.bfloat16)


def _redir_block_w_mat(rw, rscale):
    """1x1x1 conv weight (Co, Cs, 1, 1, 1) -> block-diagonal (8*Cs, 8*Co) so
    the redir projection is applied per output phase; BN scale folded."""
    rmat = rw[:, :, 0, 0, 0].T * rscale[None, :]          # (Cs, Co)
    cs, co = rmat.shape
    blk = jnp.einsum('pq,io->piqo', jnp.eye(8, dtype=rmat.dtype), rmat)
    return blk.reshape(8 * cs, 8 * co).astype(jnp.bfloat16)


def _deconv_patches(u):
    """u: (N, D, H, W, Ci) -> (N*D*H*W, 8*Ci): the 8 {0,1}^3 shifted slices of
    the high-side zero-padded input (offset order matches _deconv_phase_w_mat)."""
    n, d, h, w, ci = u.shape
    up = jnp.pad(u, ((0, 0), (0, 1), (0, 1), (0, 1), (0, 0)))
    parts = [up[:, od:od + d, oh:oh + h, ow:ow + w, :]
             for od in (0, 1) for oh in (0, 1) for ow in (0, 1)]
    return jnp.concatenate(parts, axis=-1).reshape(n * d * h * w, 8 * ci)


def _pack_skip_phases(s):
    """(N, 2D, 2H, 2W, Cs) -> (N*D*H*W, 8*Cs), phase-major columns."""
    n, d2, h2, w2, cs = s.shape
    d, h, w = d2 // 2, h2 // 2, w2 // 2
    s = s.reshape(n, d, 2, h, 2, w, 2, cs)
    s = jnp.transpose(s, (0, 1, 3, 5, 2, 4, 6, 7))
    return s.reshape(n * d * h * w, 8 * cs)


def _unpack_out_phases(y, n, d, h, w, co):
    """(N*D*H*W, 8*Co) -> (N, 2D, 2H, 2W, Co)."""
    y = y.reshape(n, d, h, w, 2, 2, 2, co)
    y = jnp.transpose(y, (0, 1, 4, 2, 5, 3, 6, 7))
    return y.reshape(n, 2 * d, 2 * h, 2 * w, co)


def deconv3d_bn_add_redir_relu(u, wt, bn, skip, rw, rbn):
    """relu( BN(ConvTranspose3d(u)) + BN(Conv1x1x1(skip)) ) as one fused call."""
    n, d, h, w, _ = u.shape
    co = wt.shape[1]
    scale, shift = bn
    rscale, rshift = rbn
    patches = _deconv_patches(u)
    wmat = _deconv_phase_w_mat(wt, scale)
    s_packed = _pack_skip_phases(skip)
    rblk = _redir_block_w_mat(rw, rscale)
    shift_all = jnp.tile(shift + rshift, 8)
    y = fused_matmul(patches, wmat, shift_all, skip=s_packed, rw=rblk, relu=True)
    return _unpack_out_phases(y, n, d, h, w, co)


# ----------------------------------------------------------------------------
# Parameters (deterministic, synthetic) + forward
# ----------------------------------------------------------------------------
def _bn_fold(key, c):
    k1, k2, k3, k4 = jax.random.split(key, 4)
    gamma = 1.0 + 0.1 * jax.random.normal(k1, (c,), jnp.float32)
    beta = 0.1 * jax.random.normal(k2, (c,), jnp.float32)
    mean = 0.1 * jax.random.normal(k3, (c,), jnp.float32)
    var = 1.0 + 0.1 * jax.random.uniform(k4, (c,), jnp.float32)
    scale = gamma / jnp.sqrt(var + BN_EPS)
    shift = beta - mean * scale
    return scale, shift


def init_params(in_channels, key):
    c = in_channels
    keys = jax.random.split(key, 16)

    def w(k, shape):
        fan_in = shape[1] * shape[2] * shape[3] * shape[4]
        return jax.random.normal(k, shape, jnp.float32) / jnp.sqrt(fan_in)

    p = {}
    p["conv1_w"] = w(keys[0], (2 * c, c, 3, 3, 3));       p["conv1_bn"] = _bn_fold(keys[1], 2 * c)
    p["conv2_w"] = w(keys[2], (2 * c, 2 * c, 3, 3, 3));   p["conv2_bn"] = _bn_fold(keys[3], 2 * c)
    p["conv3_w"] = w(keys[4], (4 * c, 2 * c, 3, 3, 3));   p["conv3_bn"] = _bn_fold(keys[5], 4 * c)
    p["conv4_w"] = w(keys[6], (4 * c, 4 * c, 3, 3, 3));   p["conv4_bn"] = _bn_fold(keys[7], 4 * c)
    # ConvTranspose3d weight layout: (Cin, Cout, kD, kH, kW)
    p["conv5_w"] = w(keys[8], (4 * c, 2 * c, 3, 3, 3));   p["conv5_bn"] = _bn_fold(keys[9], 2 * c)
    p["conv6_w"] = w(keys[10], (2 * c, c, 3, 3, 3));      p["conv6_bn"] = _bn_fold(keys[11], c)
    p["redir1_w"] = w(keys[12], (c, c, 1, 1, 1));         p["redir1_bn"] = _bn_fold(keys[13], c)
    p["redir2_w"] = w(keys[14], (2 * c, 2 * c, 1, 1, 1)); p["redir2_bn"] = _bn_fold(keys[15], 2 * c)
    return p


def mcahg2_forward(params, x):
    """x: (N, C, D, H, W) float32 (PyTorch NCDHW convention)."""
    p = params
    x_cl = jnp.transpose(x, (0, 2, 3, 4, 1)).astype(jnp.bfloat16)  # NDHWC bf16

    conv1 = conv3d_bn_relu(x_cl, p["conv1_w"], p["conv1_bn"], stride=2)
    conv2 = conv3d_bn_relu(conv1, p["conv2_w"], p["conv2_bn"], stride=1)
    conv3 = conv3d_bn_relu(conv2, p["conv3_w"], p["conv3_bn"], stride=2)
    conv4 = conv3d_bn_relu(conv3, p["conv4_w"], p["conv4_bn"], stride=1)

    # mca=False path: skip connection = 1x1x1 conv + BN, fused into the
    # transpose-conv kernel as a second MXU dot (no HBM round trip).
    conv5 = deconv3d_bn_add_redir_relu(conv4, p["conv5_w"], p["conv5_bn"],
                                       conv2, p["redir2_w"], p["redir2_bn"])
    conv6 = deconv3d_bn_add_redir_relu(conv5, p["conv6_w"], p["conv6_bn"],
                                       x_cl, p["redir1_w"], p["redir1_bn"])
    out = jnp.transpose(conv6, (0, 4, 1, 2, 3))  # back to NCDHW
    return out.astype(jnp.float32)


if __name__ == "__main__":
    key = jax.random.PRNGKey(0)
    k_param, k_x = jax.random.split(key)

    in_channels = 4
    # (N, C, D, H, W): D/H/W divisible by 4 so the 2x down/up path round-trips.
    x = jax.random.normal(k_x, (2, in_channels, 8, 16, 16), jnp.float32)

    params = init_params(in_channels, k_param)
    out = jax.jit(mcahg2_forward)(params, x)
    out = jax.block_until_ready(out)

    assert out.shape == x.shape, out.shape
    assert bool(jnp.all(jnp.isfinite(out)))
    assert bool(jnp.all(out >= 0.0))  # final ReLU
    print("KERNEL_OK")
</pallas_src>

<mosaic_0001>
module attributes {stable_mosaic.version = 11 : i64} {
  func.func @_fused_kernel(%arg0: i32, %arg1: memref<256x108xbf16, #tpu.memory_space<vmem>>, %arg2: memref<108x8xbf16, #tpu.memory_space<vmem>>, %arg3: memref<1x8xf32, #tpu.memory_space<vmem>>, %arg4: memref<256x8xbf16, #tpu.memory_space<vmem>>) attributes {dimension_semantics = [#tpu.dimension_semantics<parallel>], iteration_bounds = array<i64: 2>, scalar_prefetch = 0 : i64, scratch_operands = 0 : i64, tpu.core_type = #tpu.core_type<tc>, window_params = [{transform_indices = @transform_0, window_bounds = array<i64: 256, 108>}, {pipeline_mode = #tpu.pipeline_mode<synchronous>, transform_indices = @transform_1, window_bounds = array<i64: 108, 8>}, {pipeline_mode = #tpu.pipeline_mode<synchronous>, transform_indices = @transform_2, window_bounds = array<i64: 1, 8>}, {transform_indices = @transform_3, window_bounds = array<i64: 256, 8>}]} {
    %c0 = arith.constant 0 : index
    %c0_0 = arith.constant 0 : index
    %0 = vector.load %arg1[%c0, %c0_0] : memref<256x108xbf16, #tpu.memory_space<vmem>>, vector<256x108xbf16>
    %c0_1 = arith.constant 0 : index
    %c0_2 = arith.constant 0 : index
    %1 = vector.load %arg2[%c0_1, %c0_2] : memref<108x8xbf16, #tpu.memory_space<vmem>>, vector<108x8xbf16>
    %cst = arith.constant dense<0.000000e+00> : vector<256x8xf32>
    %2 = tpu.matmul %0, %1, %cst {dimension_numbers = #tpu.dot_dimension_numbers<[1], [0], [0], [1], [0, 0, 1, 1], [], []>} : vector<256x108xbf16>, vector<108x8xbf16>, vector<256x8xf32> -> vector<256x8xf32>
    %c0_3 = arith.constant 0 : index
    %c0_4 = arith.constant 0 : index
    %3 = vector.load %arg3[%c0_3, %c0_4] : memref<1x8xf32, #tpu.memory_space<vmem>>, vector<1x8xf32>
    %4 = vector.broadcast %3 : vector<1x8xf32> to vector<256x8xf32>
    %5 = arith.addf %2, %4 : vector<256x8xf32>
    %cst_5 = arith.constant 0.000000e+00 : f32
    %6 = vector.broadcast %cst_5 : f32 to vector<256x8xf32>
    %7 = arith.maximumf %5, %6 : vector<256x8xf32>
    %8 = arith.truncf %7 : vector<256x8xf32> to vector<256x8xbf16>
    %c0_6 = arith.constant 0 : index
    %c0_7 = arith.constant 0 : index
    %9 = vector.load %arg4[%c0_6, %c0_7] : memref<256x8xbf16, #tpu.memory_space<vmem>>, vector<256x8xbf16>
    tpu.vector_store %arg4[%c0_6, %c0_7], %8 {strides = array<i32>} : memref<256x8xbf16, #tpu.memory_space<vmem>>, vector<256x8xbf16>,
    return
  }
  func.func @transform_0(%arg0: i32) -> (i32, i32) {
    %c0_i32 = arith.constant 0 : i32
    %c0_i32_0 = arith.constant 0 : i32
    return %arg0, %c0_i32 : i32, i32
  }
  func.func @transform_1(%arg0: i32) -> (i32, i32) {
    %c0_i32 = arith.constant 0 : i32
    %c0_i32_0 = arith.constant 0 : i32
    %c0_i32_1 = arith.constant 0 : i32
    return %c0_i32, %c0_i32_0 : i32, i32
  }
  func.func @transform_2(%arg0: i32) -> (i32, i32) {
    %c0_i32 = arith.constant 0 : i32
    %c0_i32_0 = arith.constant 0 : i32
    %c0_i32_1 = arith.constant 0 : i32
    return %c0_i32, %c0_i32_0 : i32, i32
  }
  func.func @transform_3(%arg0: i32) -> (i32, i32) {
    %c0_i32 = arith.constant 0 : i32
    %c0_i32_0 = arith.constant 0 : i32
    return %arg0, %c0_i32 : i32, i32
  }
}

module attributes {stable_mosaic.version = 11 : i64} {
  func.func @_fused_kernel(%arg0: i32, %arg1: memref<256x216xbf16, #tpu.memory_space<vmem>>, %arg2: memref<216x8xbf16, #tpu.memory_space<vmem>>, %arg3: memref<1x8xf32, #tpu.memory_space<vmem>>, %arg4: memref<256x8xbf16, #tpu.memory_space<vmem>>) attributes {dimension_semantics = [#tpu.dimension_semantics<parallel>], iteration_bounds = array<i64: 2>, scalar_prefetch = 0 : i64, scratch_operands = 0 : i64, tpu.core_type = #tpu.core_type<tc>, window_params = [{transform_indices = @transform_0, window_bounds = array<i64: 256, 216>}, {pipeline_mode = #tpu.pipeline_mode<synchronous>, transform_indices = @transform_1, window_bounds = array<i64: 216, 8>}, {pipeline_mode = #tpu.pipeline_mode<synchronous>, transform_indices = @transform_2, window_bounds = array<i64: 1, 8>}, {transform_indices = @transform_3, window_bounds = array<i64: 256, 8>}]} {
    %c0 = arith.constant 0 : index
    %c0_0 = arith.constant 0 : index
    %0 = vector.load %arg1[%c0, %c0_0] : memref<256x216xbf16, #tpu.memory_space<vmem>>, vector<256x216xbf16>
    %c0_1 = arith.constant 0 : index
    %c0_2 = arith.constant 0 : index
    %1 = vector.load %arg2[%c0_1, %c0_2] : memref<216x8xbf16, #tpu.memory_space<vmem>>, vector<216x8xbf16>
    %cst = arith.constant dense<0.000000e+00> : vector<256x8xf32>
    %2 = tpu.matmul %0, %1, %cst {dimension_numbers = #tpu.dot_dimension_numbers<[1], [0], [0], [1], [0, 0, 1, 1], [], []>} : vector<256x216xbf16>, vector<216x8xbf16>, vector<256x8xf32> -> vector<256x8xf32>
    %c0_3 = arith.constant 0 : index
    %c0_4 = arith.constant 0 : index
    %3 = vector.load %arg3[%c0_3, %c0_4] : memref<1x8xf32, #tpu.memory_space<vmem>>, vector<1x8xf32>
    %4 = vector.broadcast %3 : vector<1x8xf32> to vector<256x8xf32>
    %5 = arith.addf %2, %4 : vector<256x8xf32>
    %cst_5 = arith.constant 0.000000e+00 : f32
    %6 = vector.broadcast %cst_5 : f32 to vector<256x8xf32>
    %7 = arith.maximumf %5, %6 : vector<256x8xf32>
    %8 = arith.truncf %7 : vector<256x8xf32> to vector<256x8xbf16>
    %c0_6 = arith.constant 0 : index
    %c0_7 = arith.constant 0 : index
    %9 = vector.load %arg4[%c0_6, %c0_7] : memref<256x8xbf16, #tpu.memory_space<vmem>>, vector<256x8xbf16>
    tpu.vector_store %arg4[%c0_6, %c0_7], %8 {strides = array<i32>} : memref<256x8xbf16, #tpu.memory_space<vmem>>, vector<256x8xbf16>,
    return
  }
  func.func @transform_0(%arg0: i32) -> (i32, i32) {
    %c0_i32 = arith.constant 0 : i32
    %c0_i32_0 = arith.constant 0 : i32
    return %arg0, %c0_i32 : i32, i32
  }
  func.func @transform_1(%arg0: i32) -> (i32, i32) {
    %c0_i32 = arith.constant 0 : i32
    %c0_i32_0 = arith.constant 0 : i32
    %c0_i32_1 = arith.constant 0 : i32
    return %c0_i32, %c0_i32_0 : i32, i32
  }
  func.func @transform_2(%arg0: i32) -> (i32, i32) {
    %c0_i32 = arith.constant 0 : i32
    %c0_i32_0 = arith.constant 0 : i32
    %c0_i32_1 = arith.constant 0 : i32
    return %c0_i32, %c0_i32_0 : i32, i32
  }
  func.func @transform_3(%arg0: i32) -> (i32, i32) {
    %c0_i32 = arith.constant 0 : i32
    %c0_i32_0 = arith.constant 0 : i32
    return %arg0, %c0_i32 : i32, i32
  }
}

module attributes {stable_mosaic.version = 11 : i64} {
  func.func @_fused_kernel(%arg0: i32, %arg1: memref<128x216xbf16, #tpu.memory_space<vmem>>, %arg2: memref<216x16xbf16, #tpu.memory_space<vmem>>, %arg3: memref<1x16xf32, #tpu.memory_space<vmem>>, %arg4: memref<128x16xbf16, #tpu.memory_space<vmem>>) attributes {dimension_semantics = [#tpu.dimension_semantics<parallel>], iteration_bounds = array<i64: 1>, scalar_prefetch = 0 : i64, scratch_operands = 0 : i64, tpu.core_type = #tpu.core_type<tc>, window_params = [{transform_indices = @transform_0, window_bounds = array<i64: 128, 216>}, {pipeline_mode = #tpu.pipeline_mode<synchronous>, transform_indices = @transform_1, window_bounds = array<i64: 216, 16>}, {pipeline_mode = #tpu.pipeline_mode<synchronous>, transform_indices = @transform_2, window_bounds = array<i64: 1, 16>}, {transform_indices = @transform_3, window_bounds = array<i64: 128, 16>}]} {
    %c0 = arith.constant 0 : index
    %c0_0 = arith.constant 0 : index
    %0 = vector.load %arg1[%c0, %c0_0] : memref<128x216xbf16, #tpu.memory_space<vmem>>, vector<128x216xbf16>
    %c0_1 = arith.constant 0 : index
    %c0_2 = arith.constant 0 : index
    %1 = vector.load %arg2[%c0_1, %c0_2] : memref<216x16xbf16, #tpu.memory_space<vmem>>, vector<216x16xbf16>
    %cst = arith.constant dense<0.000000e+00> : vector<128x16xf32>
    %2 = tpu.matmul %0, %1, %cst {dimension_numbers = #tpu.dot_dimension_numbers<[1], [0], [0], [1], [0, 0, 1, 1], [], []>} : vector<128x216xbf16>, vector<216x16xbf16>, vector<128x16xf32> -> vector<128x16xf32>
    %c0_3 = arith.constant 0 : index
    %c0_4 = arith.constant 0 : index
    %3 = vector.load %arg3[%c0_3, %c0_4] : memref<1x16xf32, #tpu.memory_space<vmem>>, vector<1x16xf32>
    %4 = vector.broadcast %3 : vector<1x16xf32> to vector<128x16xf32>
    %5 = arith.addf %2, %4 : vector<128x16xf32>
    %cst_5 = arith.constant 0.000000e+00 : f32
    %6 = vector.broadcast %cst_5 : f32 to vector<128x16xf32>
    %7 = arith.maximumf %5, %6 : vector<128x16xf32>
    %8 = arith.truncf %7 : vector<128x16xf32> to vector<128x16xbf16>
    %c0_6 = arith.constant 0 : index
    %c0_7 = arith.constant 0 : index
    %9 = vector.load %arg4[%c0_6, %c0_7] : memref<128x16xbf16, #tpu.memory_space<vmem>>, vector<128x16xbf16>
    tpu.vector_store %arg4[%c0_6, %c0_7], %8 {strides = array<i32>} : memref<128x16xbf16, #tpu.memory_space<vmem>>, vector<128x16xbf16>,
    return
  }
  func.func @transform_0(%arg0: i32) -> (i32, i32) {
    %c0_i32 = arith.constant 0 : i32
    %c0_i32_0 = arith.constant 0 : i32
    return %arg0, %c0_i32 : i32, i32
  }
  func.func @transform_1(%arg0: i32) -> (i32, i32) {
    %c0_i32 = arith.constant 0 : i32
    %c0_i32_0 = arith.constant 0 : i32
    %c0_i32_1 = arith.constant 0 : i32
    return %c0_i32, %c0_i32_0 : i32, i32
  }
  func.func @transform_2(%arg0: i32) -> (i32, i32) {
    %c0_i32 = arith.constant 0 : i32
    %c0_i32_0 = arith.constant 0 : i32
    %c0_i32_1 = arith.constant 0 : i32
    return %c0_i32, %c0_i32_0 : i32, i32
  }
  func.func @transform_3(%arg0: i32) -> (i32, i32) {
    %c0_i32 = arith.constant 0 : i32
    %c0_i32_0 = arith.constant 0 : i32
    return %arg0, %c0_i32 : i32, i32
  }
}

module attributes {stable_mosaic.version = 11 : i64} {
  func.func @_fused_kernel(%arg0: i32, %arg1: memref<128x432xbf16, #tpu.memory_space<vmem>>, %arg2: memref<432x16xbf16, #tpu.memory_space<vmem>>, %arg3: memref<1x16xf32, #tpu.memory_space<vmem>>, %arg4: memref<128x16xbf16, #tpu.memory_space<vmem>>) attributes {dimension_semantics = [#tpu.dimension_semantics<parallel>], iteration_bounds = array<i64: 1>, scalar_prefetch = 0 : i64, scratch_operands = 0 : i64, tpu.core_type = #tpu.core_type<tc>, window_params = [{transform_indices = @transform_0, window_bounds = array<i64: 128, 432>}, {pipeline_mode = #tpu.pipeline_mode<synchronous>, transform_indices = @transform_1, window_bounds = array<i64: 432, 16>}, {pipeline_mode = #tpu.pipeline_mode<synchronous>, transform_indices = @transform_2, window_bounds = array<i64: 1, 16>}, {transform_indices = @transform_3, window_bounds = array<i64: 128, 16>}]} {
    %c0 = arith.constant 0 : index
    %c0_0 = arith.constant 0 : index
    %0 = vector.load %arg1[%c0, %c0_0] : memref<128x432xbf16, #tpu.memory_space<vmem>>, vector<128x432xbf16>
    %c0_1 = arith.constant 0 : index
    %c0_2 = arith.constant 0 : index
    %1 = vector.load %arg2[%c0_1, %c0_2] : memref<432x16xbf16, #tpu.memory_space<vmem>>, vector<432x16xbf16>
    %cst = arith.constant dense<0.000000e+00> : vector<128x16xf32>
    %2 = tpu.matmul %0, %1, %cst {dimension_numbers = #tpu.dot_dimension_numbers<[1], [0], [0], [1], [0, 0, 1, 1], [], []>} : vector<128x432xbf16>, vector<432x16xbf16>, vector<128x16xf32> -> vector<128x16xf32>
    %c0_3 = arith.constant 0 : index
    %c0_4 = arith.constant 0 : index
    %3 = vector.load %arg3[%c0_3, %c0_4] : memref<1x16xf32, #tpu.memory_space<vmem>>, vector<1x16xf32>
    %4 = vector.broadcast %3 : vector<1x16xf32> to vector<128x16xf32>
    %5 = arith.addf %2, %4 : vector<128x16xf32>
    %cst_5 = arith.constant 0.000000e+00 : f32
    %6 = vector.broadcast %cst_5 : f32 to vector<128x16xf32>
    %7 = arith.maximumf %5, %6 : vector<128x16xf32>
    %8 = arith.truncf %7 : vector<128x16xf32> to vector<128x16xbf16>
    %c0_6 = arith.constant 0 : index
    %c0_7 = arith.constant 0 : index
    %9 = vector.load %arg4[%c0_6, %c0_7] : memref<128x16xbf16, #tpu.memory_space<vmem>>, vector<128x16xbf16>
    tpu.vector_store %arg4[%c0_6, %c0_7], %8 {strides = array<i32>} : memref<128x16xbf16, #tpu.memory_space<vmem>>, vector<128x16xbf16>,
    return
  }
  func.func @transform_0(%arg0: i32) -> (i32, i32) {
    %c0_i32 = arith.constant 0 : i32
    %c0_i32_0 = arith.constant 0 : i32
    return %arg0, %c0_i32 : i32, i32
  }
  func.func @transform_1(%arg0: i32) -> (i32, i32) {
    %c0_i32 = arith.constant 0 : i32
    %c0_i32_0 = arith.constant 0 : i32
    %c0_i32_1 = arith.constant 0 : i32
    return %c0_i32, %c0_i32_0 : i32, i32
  }
  func.func @transform_2(%arg0: i32) -> (i32, i32) {
    %c0_i32 = arith.constant 0 : i32
    %c0_i32_0 = arith.constant 0 : i32
    %c0_i32_1 = arith.constant 0 : i32
    return %c0_i32, %c0_i32_0 : i32, i32
  }
  func.func @transform_3(%arg0: i32) -> (i32, i32) {
    %c0_i32 = arith.constant 0 : i32
    %c0_i32_0 = arith.constant 0 : i32
    return %arg0, %c0_i32 : i32, i32
  }
}

module attributes {stable_mosaic.version = 11 : i64} {
  func.func @_fused_kernel(%arg0: i32, %arg1: memref<128x128xbf16, #tpu.memory_space<vmem>>, %arg2: memref<128x64xbf16, #tpu.memory_space<vmem>>, %arg3: memref<1x64xf32, #tpu.memory_space<vmem>>, %arg4: memref<128x64xbf16, #tpu.memory_space<vmem>>, %arg5: memref<64x64xbf16, #tpu.memory_space<vmem>>, %arg6: memref<128x64xbf16, #tpu.memory_space<vmem>>) attributes {dimension_semantics = [#tpu.dimension_semantics<parallel>], iteration_bounds = array<i64: 1>, scalar_prefetch = 0 : i64, scratch_operands = 0 : i64, tpu.core_type = #tpu.core_type<tc>, window_params = [{transform_indices = @transform_0, window_bounds = array<i64: 128, 128>}, {pipeline_mode = #tpu.pipeline_mode<synchronous>, transform_indices = @transform_1, window_bounds = array<i64: 128, 64>}, {pipeline_mode = #tpu.pipeline_mode<synchronous>, transform_indices = @transform_2, window_bounds = array<i64: 1, 64>}, {transform_indices = @transform_3, window_bounds = array<i64: 128, 64>}, {pipeline_mode = #tpu.pipeline_mode<synchronous>, transform_indices = @transform_4, window_bounds = array<i64: 64, 64>}, {transform_indices = @transform_5, window_bounds = array<i64: 128, 64>}]} {
    %c0 = arith.constant 0 : index
    %c0_0 = arith.constant 0 : index
    %0 = vector.load %arg1[%c0, %c0_0] : memref<128x128xbf16, #tpu.memory_space<vmem>>, vector<128x128xbf16>
    %c0_1 = arith.constant 0 : index
    %c0_2 = arith.constant 0 : index
    %1 = vector.load %arg2[%c0_1, %c0_2] : memref<128x64xbf16, #tpu.memory_space<vmem>>, vector<128x64xbf16>
    %cst = arith.constant dense<0.000000e+00> : vector<128x64xf32>
    %2 = tpu.matmul %0, %1, %cst {dimension_numbers = #tpu.dot_dimension_numbers<[1], [0], [0], [1], [0, 0, 1, 1], [], []>} : vector<128x128xbf16>, vector<128x64xbf16>, vector<128x64xf32> -> vector<128x64xf32>
    %c0_3 = arith.constant 0 : index
    %c0_4 = arith.constant 0 : index
    %3 = vector.load %arg4[%c0_3, %c0_4] : memref<128x64xbf16, #tpu.memory_space<vmem>>, vector<128x64xbf16>
    %c0_5 = arith.constant 0 : index
    %c0_6 = arith.constant 0 : index
    %4 = vector.load %arg5[%c0_5, %c0_6] : memref<64x64xbf16, #tpu.memory_space<vmem>>, vector<64x64xbf16>
    %cst_7 = arith.constant dense<0.000000e+00> : vector<128x64xf32>
    %5 = tpu.matmul %3, %4, %cst_7 {dimension_numbers = #tpu.dot_dimension_numbers<[1], [0], [0], [1], [0, 0, 1, 1], [], []>} : vector<128x64xbf16>, vector<64x64xbf16>, vector<128x64xf32> -> vector<128x64xf32>
    %6 = arith.addf %2, %5 : vector<128x64xf32>
    %c0_8 = arith.constant 0 : index
    %c0_9 = arith.constant 0 : index
    %7 = vector.load %arg3[%c0_8, %c0_9] : memref<1x64xf32, #tpu.memory_space<vmem>>, vector<1x64xf32>
    %8 = vector.broadcast %7 : vector<1x64xf32> to vector<128x64xf32>
    %9 = arith.addf %6, %8 : vector<128x64xf32>
    %cst_10 = arith.constant 0.000000e+00 : f32
    %10 = vector.broadcast %cst_10 : f32 to vector<128x64xf32>
    %11 = arith.maximumf %9, %10 : vector<128x64xf32>
    %12 = arith.truncf %11 : vector<128x64xf32> to vector<128x64xbf16>
    %c0_11 = arith.constant 0 : index
    %c0_12 = arith.constant 0 : index
    %13 = vector.load %arg6[%c0_11, %c0_12] : memref<128x64xbf16, #tpu.memory_space<vmem>>, vector<128x64xbf16>
    tpu.vector_store %arg6[%c0_11, %c0_12], %12 {strides = array<i32>} : memref<128x64xbf16, #tpu.memory_space<vmem>>, vector<128x64xbf16>,
    return
  }
  func.func @transform_0(%arg0: i32) -> (i32, i32) {
    %c0_i32 = arith.constant 0 : i32
    %c0_i32_0 = arith.constant 0 : i32
    return %arg0, %c0_i32 : i32, i32
  }
  func.func @transform_1(%arg0: i32) -> (i32, i32) {
    %c0_i32 = arith.constant 0 : i32
    %c0_i32_0 = arith.constant 0 : i32
    %c0_i32_1 = arith.constant 0 : i32
    return %c0_i32, %c0_i32_0 : i32, i32
  }
  func.func @transform_2(%arg0: i32) -> (i32, i32) {
    %c0_i32 = arith.constant 0 : i32
    %c0_i32_0 = arith.constant 0 : i32
    %c0_i32_1 = arith.constant 0 : i32
    return %c0_i32, %c0_i32_0 : i32, i32
  }
  func.func @transform_3(%arg0: i32) -> (i32, i32) {
    %c0_i32 = arith.constant 0 : i32
    %c0_i32_0 = arith.constant 0 : i32
    return %arg0, %c0_i32 : i32, i32
  }
  func.func @transform_4(%arg0: i32) -> (i32, i32) {
    %c0_i32 = arith.constant 0 : i32
    %c0_i32_0 = arith.constant 0 : i32
    %c0_i32_1 = arith.constant 0 : i32
    return %c0_i32, %c0_i32_0 : i32, i32
  }
  func.func @transform_5(%arg0: i32) -> (i32, i32) {
    %c0_i32 = arith.constant 0 : i32
    %c0_i32_0 = arith.constant 0 : i32
    return %arg0, %c0_i32 : i32, i32
  }
}

module attributes {stable_mosaic.version = 11 : i64} {
  func.func @_fused_kernel(%arg0: i32, %arg1: memref<256x64xbf16, #tpu.memory_space<vmem>>, %arg2: memref<64x32xbf16, #tpu.memory_space<vmem>>, %arg3: memref<1x32xf32, #tpu.memory_space<vmem>>, %arg4: memref<256x32xbf16, #tpu.memory_space<vmem>>, %arg5: memref<32x32xbf16, #tpu.memory_space<vmem>>, %arg6: memref<256x32xbf16, #tpu.memory_space<vmem>>) attributes {dimension_semantics = [#tpu.dimension_semantics<parallel>], iteration_bounds = array<i64: 2>, scalar_prefetch = 0 : i64, scratch_operands = 0 : i64, tpu.core_type = #tpu.core_type<tc>, window_params = [{transform_indices = @transform_0, window_bounds = array<i64: 256, 64>}, {pipeline_mode = #tpu.pipeline_mode<synchronous>, transform_indices = @transform_1, window_bounds = array<i64: 64, 32>}, {pipeline_mode = #tpu.pipeline_mode<synchronous>, transform_indices = @transform_2, window_bounds = array<i64: 1, 32>}, {transform_indices = @transform_3, window_bounds = array<i64: 256, 32>}, {pipeline_mode = #tpu.pipeline_mode<synchronous>, transform_indices = @transform_4, window_bounds = array<i64: 32, 32>}, {transform_indices = @transform_5, window_bounds = array<i64: 256, 32>}]} {
    %c0 = arith.constant 0 : index
    %c0_0 = arith.constant 0 : index
    %0 = vector.load %arg1[%c0, %c0_0] : memref<256x64xbf16, #tpu.memory_space<vmem>>, vector<256x64xbf16>
    %c0_1 = arith.constant 0 : index
    %c0_2 = arith.constant 0 : index
    %1 = vector.load %arg2[%c0_1, %c0_2] : memref<64x32xbf16, #tpu.memory_space<vmem>>, vector<64x32xbf16>
    %cst = arith.constant dense<0.000000e+00> : vector<256x32xf32>
    %2 = tpu.matmul %0, %1, %cst {dimension_numbers = #tpu.dot_dimension_numbers<[1], [0], [0], [1], [0, 0, 1, 1], [], []>} : vector<256x64xbf16>, vector<64x32xbf16>, vector<256x32xf32> -> vector<256x32xf32>
    %c0_3 = arith.constant 0 : index
    %c0_4 = arith.constant 0 : index
    %3 = vector.load %arg4[%c0_3, %c0_4] : memref<256x32xbf16, #tpu.memory_space<vmem>>, vector<256x32xbf16>
    %c0_5 = arith.constant 0 : index
    %c0_6 = arith.constant 0 : index
    %4 = vector.load %arg5[%c0_5, %c0_6] : memref<32x32xbf16, #tpu.memory_space<vmem>>, vector<32x32xbf16>
    %cst_7 = arith.constant dense<0.000000e+00> : vector<256x32xf32>
    %5 = tpu.matmul %3, %4, %cst_7 {dimension_numbers = #tpu.dot_dimension_numbers<[1], [0], [0], [1], [0, 0, 1, 1], [], []>} : vector<256x32xbf16>, vector<32x32xbf16>, vector<256x32xf32> -> vector<256x32xf32>
    %6 = arith.addf %2, %5 : vector<256x32xf32>
    %c0_8 = arith.constant 0 : index
    %c0_9 = arith.constant 0 : index
    %7 = vector.load %arg3[%c0_8, %c0_9] : memref<1x32xf32, #tpu.memory_space<vmem>>, vector<1x32xf32>
    %8 = vector.broadcast %7 : vector<1x32xf32> to vector<256x32xf32>
    %9 = arith.addf %6, %8 : vector<256x32xf32>
    %cst_10 = arith.constant 0.000000e+00 : f32
    %10 = vector.broadcast %cst_10 : f32 to vector<256x32xf32>
    %11 = arith.maximumf %9, %10 : vector<256x32xf32>
    %12 = arith.truncf %11 : vector<256x32xf32> to vector<256x32xbf16>
    %c0_11 = arith.constant 0 : index
    %c0_12 = arith.constant 0 : index
    %13 = vector.load %arg6[%c0_11, %c0_12] : memref<256x32xbf16, #tpu.memory_space<vmem>>, vector<256x32xbf16>
    tpu.vector_store %arg6[%c0_11, %c0_12], %12 {strides = array<i32>} : memref<256x32xbf16, #tpu.memory_space<vmem>>, vector<256x32xbf16>,
    return
  }
  func.func @transform_0(%arg0: i32) -> (i32, i32) {
    %c0_i32 = arith.constant 0 : i32
    %c0_i32_0 = arith.constant 0 : i32
    return %arg0, %c0_i32 : i32, i32
  }
  func.func @transform_1(%arg0: i32) -> (i32, i32) {
    %c0_i32 = arith.constant 0 : i32
    %c0_i32_0 = arith.constant 0 : i32
    %c0_i32_1 = arith.constant 0 : i32
    return %c0_i32, %c0_i32_0 : i32, i32
  }
  func.func @transform_2(%arg0: i32) -> (i32, i32) {
    %c0_i32 = arith.constant 0 : i32
    %c0_i32_0 = arith.constant 0 : i32
    %c0_i32_1 = arith.constant 0 : i32
    return %c0_i32, %c0_i32_0 : i32, i32
  }
  func.func @transform_3(%arg0: i32) -> (i32, i32) {
    %c0_i32 = arith.constant 0 : i32
    %c0_i32_0 = arith.constant 0 : i32
    return %arg0, %c0_i32 : i32, i32
  }
  func.func @transform_4(%arg0: i32) -> (i32, i32) {
    %c0_i32 = arith.constant 0 : i32
    %c0_i32_0 = arith.constant 0 : i32
    %c0_i32_1 = arith.constant 0 : i32
    return %c0_i32, %c0_i32_0 : i32, i32
  }
  func.func @transform_5(%arg0: i32) -> (i32, i32) {
    %c0_i32 = arith.constant 0 : i32
    %c0_i32_0 = arith.constant 0 : i32
    return %arg0, %c0_i32 : i32, i32
  }
}

</mosaic_0001>

<llo_original>
// kernel: mcahg2_forward.6
$region0: #{mcahg2_forward.6}
  #allocation0 [shape = 'u32[]', space=smem, size = 0x4, offset = 0x4, fixed_abs, tag = 'smem constant byte address 0x4 - core index']
  #allocation1 [shape = 'u32[144,128]{1,0:T(1,128)}', space=vmem, size = 0x12000, scoped, tag = 'internal scratch']
  %s0 = inlined_call_operand.vmem [shape: bf16[512,108], index: 0, kind: input, shape index: {}]
  %s1 = inlined_call_operand.vmem [shape: bf16[108,8], index: 1, kind: input, shape index: {}]
  %s2 = inlined_call_operand.vmem [shape: f32[1,8], index: 2, kind: input, shape index: {}]
  %s3 = inlined_call_operand.vmem [shape: bf16[512,8], index: 3, kind: output, shape index: {}]
  %s4 = sld [smem:[#allocation0]]
  $region45: #{mcahg2_forward.6} parent=0
    _
  %s6 = ssub.s32 1, %s4
  %s7 = scalar_select 0, %s6, %s4
  loop: start=0, step=1, limit=4
  $region2: #{mcahg2_forward.6} parent=0 // loop_pre_header
    _
  $region3: #{mcahg2_forward.6} parent=0 // loop_header
    %s9 = sphi 0, %s13
    %p10 = scmp.ge.s32.totalorder %s9, 4
    %s19 = sphi 0, %s21
    %s22 = sphi 0, %s19
    %s23 = sphi 0, %s22
    %s39 = sphi 0, %s23
    %s43 = sphi 0, %s43
    %s45 = sphi 0, %s43
    %s46 = sphi 0, %s45
    %s60 = sphi 0, %s46
    %s64 = sphi 0, %s64
    %s66 = sphi 0, %s64
    %s67 = sphi 0, %s66
    %s81 = sphi 0, %s67
    %s87 = sphi 0, %s89
    %s90 = sphi 0, %s87
    %s91 = sphi 0, %s90
    %s107 = sphi 0, %s91
  $region4: #{mcahg2_forward.6} parent=0 // loop_header_branch
    %12 = sbr.rel (%p10) target = $region8
  $region5: #{mcahg2_forward.6} parent=0 // loop_body
    %s14 = ssub.s32 %s9, 1
    %s15 = ssub.s32 %s9, 2
    %s16 = sadd.s32 %s9, 1
    %s17 = ssub.s32 %s9, %s16
    %p18 = scmp.eq.s32.totalorder %s17, 0
    %s20 = sadd.s32 %s19, 1
    %s21 = scalar_select %p18, %s19, %s20
    %p24 = pneg %p18
    %p25 = scmp.eq.s32.totalorder %s9, 1
    %p26 = por %p24, %p25
    %p27 = scmp.ne.s32.totalorder %s19, %s22
    %p28 = scmp.eq.s32.totalorder %s9, 0
    %p29 = por %p27, %p28
    %p30 = scmp.ne.s32.totalorder %s19, %s22
    %p31 = scmp.eq.s32.totalorder %s14, 1
    %p32 = por %p30, %p31
    %p33 = scmp.ne.s32.totalorder %s22, %s23
    %p34 = scmp.eq.s32.totalorder %s14, 0
    %p35 = por %p33, %p34
    %p36 = scmp.ne.s32.totalorder %s22, %s23
    %p37 = scmp.eq.s32.totalorder %s15, 1
    %p38 = por %p36, %p37
    %p40 = scmp.ne.s32.totalorder %s23, %s39
    %p41 = scmp.eq.s32.totalorder %s15, 0
    %p42 = por %p40, %p41
    %s44 = sadd.s32 %s43, 1
    %p47 = scmp.eq.s32.totalorder %s9, 1
    %p48 = scmp.ne.s32.totalorder %s43, %s45
    %p49 = scmp.eq.s32.totalorder %s9, 0
    %p50 = por %p48, %p49
    %p51 = scmp.ne.s32.totalorder %s43, %s45
    %p52 = scmp.eq.s32.totalorder %s14, 1
    %p53 = por %p51, %p52
    %p54 = scmp.ne.s32.totalorder %s45, %s46
    %p55 = scmp.eq.s32.totalorder %s14, 0
    %p56 = por %p54, %p55
    %p57 = scmp.ne.s32.totalorder %s45, %s46
    %p58 = scmp.eq.s32.totalorder %s15, 1
    %p59 = por %p57, %p58
    %p61 = scmp.ne.s32.totalorder %s46, %s60
    %p62 = scmp.eq.s32.totalorder %s15, 0
    %p63 = por %p61, %p62
    %s65 = sadd.s32 %s64, 1
    %p68 = scmp.eq.s32.totalorder %s9, 1
    %p69 = scmp.ne.s32.totalorder %s64, %s66
    %p70 = scmp.eq.s32.totalorder %s9, 0
    %p71 = por %p69, %p70
    %p72 = scmp.ne.s32.totalorder %s64, %s66
    %p73 = scmp.eq.s32.totalorder %s14, 1
    %p74 = por %p72, %p73
    %p75 = scmp.ne.s32.totalorder %s66, %s67
    %p76 = scmp.eq.s32.totalorder %s14, 0
    %p77 = por %p75, %p76
    %p78 = scmp.ne.s32.totalorder %s66, %s67
    %p79 = scmp.eq.s32.totalorder %s15, 1
    %p80 = por %p78, %p79
    %p82 = scmp.ne.s32.totalorder %s67, %s81
    %p83 = scmp.eq.s32.totalorder %s15, 0
    %p84 = por %p82, %p83
    %s85 = ssub.s32 %s9, %s16
    %p86 = scmp.eq.s32.totalorder %s85, 0
    %s88 = sadd.s32 %s87, 1
    %s89 = scalar_select %p86, %s87, %s88
    %p92 = pneg %p86
    %p93 = scmp.eq.s32.totalorder %s9, 1
    %p94 = por %p92, %p93
    %p95 = scmp.ne.s32.totalorder %s87, %s90
    %p96 = scmp.eq.s32.totalorder %s9, 0
    %p97 = por %p95, %p96
    %p98 = scmp.ne.s32.totalorder %s87, %s90
    %p99 = scmp.eq.s32.totalorder %s14, 1
    %p100 = por %p98, %p99
    %p101 = scmp.ne.s32.totalorder %s90, %s91
    %p102 = scmp.eq.s32.totalorder %s14, 0
    %p103 = por %p101, %p102
    %p104 = scmp.ne.s32.totalorder %s90, %s91
    %p105 = scmp.eq.s32.totalorder %s15, 1
    %p106 = por %p104, %p105
    %p108 = scmp.ne.s32.totalorder %s91, %s107
    %p109 = scmp.eq.s32.totalorder %s15, 0
    %p110 = por %p108, %p109
    %p111 = scmp.le.s32.totalorder 1, %s9
    %p112 = scmp.lt.s32.totalorder %s9, 3
    %p113 = pnand %p111, %p112
    %p114 = pneg %p113
    // Predicated region
    $region9: #{mcahg2_forward.6} parent=5 // pred_check
      _
    $region10: #{mcahg2_forward.6} parent=5 // pred_check_branch
      %116 = sbr.rel (%p113) target = $region12
    $region11: #{mcahg2_forward.6} parent=5 // pred_region
      %s117 = ssub.s32 %s9, 1
      // Predicated region
      $region13: #{mcahg2_forward.6} parent=11 // pred_check
        %p118 = pneg %p56
      $region14: #{mcahg2_forward.6} parent=11 // pred_check_branch
        %120 = sbr.rel (%p118) target = $region16
      $region15: #{mcahg2_forward.6} parent=11 // pred_region
        _
      $region16: #{mcahg2_forward.6} parent=11 // pred_fallthru
        _
      // Predicated region
      $region17: #{mcahg2_forward.6} parent=11 // pred_check
        %p121 = pneg %p77
      $region18: #{mcahg2_forward.6} parent=11 // pred_check_branch
        %123 = sbr.rel (%p121) target = $region20
      $region19: #{mcahg2_forward.6} parent=11 // pred_region
        _
      $region20: #{mcahg2_forward.6} parent=11 // pred_fallthru
        _
    $region12: #{mcahg2_forward.6} parent=5 // pred_fallthru
      _
    %p124 = scmp.lt.s32.totalorder %s9, 2
    // Predicated region
    $region21: #{mcahg2_forward.6} parent=5 // pred_check
      %p125 = pneg %p124
    $region22: #{mcahg2_forward.6} parent=5 // pred_check_branch
      %127 = sbr.rel (%p125) target = $region24
    $region23: #{mcahg2_forward.6} parent=5 // pred_region
      // Predicated region
      $region25: #{mcahg2_forward.6} parent=23 // pred_check
        %p128 = pneg %p29
      $region26: #{mcahg2_forward.6} parent=23 // pred_check_branch
        %130 = sbr.rel (%p128) target = $region28
      $region27: #{mcahg2_forward.6} parent=23 // pred_region
        %s131 = smul.u32 32, %s9
        %p132 = scmp.lt.s32.totalorder %s131, 63
        %s133 = scalar_select %p132, %s131, 63
        %s134 = smul.addr %s133, 4
        %s135 = scalar_lea.vmem %s0, %s134
        %s136 = smul.u32 32, %s9
      $region28: #{mcahg2_forward.6} parent=23 // pred_fallthru
        _
    $region24: #{mcahg2_forward.6} parent=5 // pred_fallthru
      _
    %p137 = scmp.le.s32.totalorder 1, %s9
    %p138 = scmp.lt.s32.totalorder %s9, 3
    %p139 = pnand %p137, %p138
    %p140 = pneg %p139
    // Predicated region
    $region29: #{mcahg2_forward.6} parent=5 // pred_check
      _
    $region30: #{mcahg2_forward.6} parent=5 // pred_check_branch
      %142 = sbr.rel (%p139) target = $region32
    $region31: #{mcahg2_forward.6} parent=5 // pred_region
      %s143 = ssub.s32 %s9, 1
      %s144 = smul.u32 32, %s14
      %p145 = scmp.lt.s32.totalorder %s144, 63
      %s146 = scalar_select %p145, %s144, 63
      %s147 = smul.addr %s146, 4
      %s148 = scalar_lea.vmem %s0, %s147
      %p149 = pneg %p35
      %p150 = pneg %p32
      %p151 = pneg %p56
      %p152 = pneg %p53
      %p153 = pneg %p77
      %p154 = pneg %p74
      %p155 = pneg %p103
      %p156 = pneg %p100
      %s157 = smul.u32 32, %s14
      %p158 = scmp.lt.s32.totalorder %s157, 63
      %s159 = scalar_select %p158, %s157, 63
      %s160 = smul.addr %s159, 4
      %s161 = scalar_lea.vmem %s3, %s160
      %s162 = smul.u32 32, %s14
      %p163 = scmp.lt.s32.totalorder %s162, 63
      %s164 = scalar_select %p163, %s162, 63
      %s165 = smul.addr %s164, 4
      %s166 = scalar_lea.vmem %s0, %s165
      %s167 = smul.u32 32, %s14
      %s168 = smul.u32 32, %s14
      %p169 = scmp.lt.s32.totalorder %s168, 63
      %s170 = scalar_select %p169, %s168, 63
      %s171 = smul.addr %s170, 4
      %s172 = scalar_lea.vmem %s3, %s171
      %s173 = smul.u32 32, %s14
      %v175 = vld [vmem:[%s166] sm:$0xf]
      %v176 = vld [vmem:[%s166 + $0x4] sm:$0xf]
      %v177 = vld [vmem:[%s166 + $0x8] sm:$0xf]
      %v178 = vld [vmem:[%s166 + $0xc] sm:$0xf]
      %v179 = vld [vmem:[%s166 + $0x10] sm:$0xf]
      %v180 = vld [vmem:[%s166 + $0x14] sm:$0xf]
      %v181 = vld [vmem:[%s166 + $0x18] sm:$0xf]
      %v182 = vld [vmem:[%s166 + $0x1c] sm:$0xf]
      %v183 = vld [vmem:[%s166 + $0x20] sm:$0xf]
      %v184 = vld [vmem:[%s166 + $0x24] sm:$0xf]
      %v185 = vld [vmem:[%s166 + $0x28] sm:$0xf]
      %v186 = vld [vmem:[%s166 + $0x2c] sm:$0xf]
      %v187 = vld [vmem:[%s166 + $0x30] sm:$0xf]
      %v188 = vld [vmem:[%s166 + $0x34] sm:$0xf]
      %v189 = vld [vmem:[%s166 + $0x38] sm:$0xf]
      %v190 = vld [vmem:[%s166 + $0x3c] sm:$0xf]
      %v191 = vld [vmem:[%s166 + $0x40] sm:$0xf]
      %v192 = vld [vmem:[%s166 + $0x44] sm:$0xf]
      %v193 = vld [vmem:[%s166 + $0x48] sm:$0xf]
      %v194 = vld [vmem:[%s166 + $0x4c] sm:$0xf]
      %v195 = vld [vmem:[%s166 + $0x50] sm:$0xf]
      %v196 = vld [vmem:[%s166 + $0x54] sm:$0xf]
      %v197 = vld [vmem:[%s166 + $0x58] sm:$0xf]
      %v198 = vld [vmem:[%s166 + $0x5c] sm:$0xf]
      %v199 = vld [vmem:[%s166 + $0x60] sm:$0xf]
      %v200 = vld [vmem:[%s166 + $0x64] sm:$0xf]
      %v201 = vld [vmem:[%s166 + $0x68] sm:$0xf]
      %v202 = vld [vmem:[%s166 + $0x6c] sm:$0xf]
      %v203 = vld [vmem:[%s166 + $0x70] sm:$0xf]
      %v204 = vld [vmem:[%s166 + $0x74] sm:$0xf]
      %v205 = vld [vmem:[%s166 + $0x78] sm:$0xf]
      %v206 = vld [vmem:[%s166 + $0x7c] sm:$0xf]
      %v207 = vld [vmem:[%s1] sm:$0xf]
      %v208 = vld [vmem:[%s1 + $0x4] sm:$0xf]
      %v209 = vld [vmem:[%s1 + $0x8] sm:$0xf]
      %v210 = vld [vmem:[%s1 + $0xc] sm:$0xf]
      %v211 = vld [vmem:[%s1 + $0x10] sm:$0xf]
      %v212 = vld [vmem:[%s1 + $0x14] sm:$0xf]
      %v213 = vld [vmem:[%s1 + $0x18] sm:$0xf]
      %v214 = vld [vmem:[%s1 + $0x1c] sm:$0xf]
      %v215 = vld [vmem:[%s1 + $0x20] sm:$0xf]
      %v216 = vld [vmem:[%s1 + $0x24] sm:$0xf]
      %v217 = vld [vmem:[%s1 + $0x28] sm:$0xf]
      %v218 = vld [vmem:[%s1 + $0x2c] sm:$0xf]
      %v219 = vld [vmem:[%s1 + $0x30] sm:$0xf]
      %v220 = vld [vmem:[%s1 + $0x34] sm:$0x3]
      %v221 = vld [vmem:[%s2] sm:$0x1]
      %v223 = vlaneseq
      %v224 = vshrl.u32 %v223, 7
      %v225 = vsub.s32 0, %v224
      %v226 = vrot.slane %v221, %v225
      %v260 = vunpack.c.l.b16 %v175
      %v261 = vunpack.c.l.b16 %v176
      %v262 = vunpack.c.l.b16 %v177
      %v263 = vunpack.c.l.b16 %v178
      %v264 = vunpack.c.l.b16 %v179
      %v265 = vunpack.c.l.b16 %v180
      %v266 = vunpack.c.l.b16 %v181
      %v267 = vunpack.c.l.b16 %v182
      %v268 = vunpack.c.l.b16 %v183
      %v269 = vunpack.c.l.b16 %v184
      %v270 = vunpack.c.l.b16 %v185
      %v271 = vunpack.c.l.b16 %v186
      %v272 = vunpack.c.l.b16 %v187
      %v273 = vunpack.c.l.b16 %v188
      %v274 = vunpack.c.l.b16 %v189
      %v275 = vunpack.c.l.b16 %v190
      %v276 = vunpack.c.l.b16 %v191
      %v277 = vunpack.c.l.b16 %v192
      %v278 = vunpack.c.l.b16 %v193
      %v279 = vunpack.c.l.b16 %v194
      %v280 = vunpack.c.l.b16 %v195
      %v281 = vunpack.c.l.b16 %v196
      %v282 = vunpack.c.l.b16 %v197
      %v283 = vunpack.c.l.b16 %v198
      %v284 = vunpack.c.l.b16 %v199
      %v285 = vunpack.c.l.b16 %v200
      %v286 = vunpack.c.l.b16 %v201
      %v287 = vunpack.c.l.b16 %v202
      %v288 = vunpack.c.l.b16 %v203
      %v289 = vunpack.c.l.b16 %v204
      %v290 = vunpack.c.l.b16 %v205
      %v291 = vunpack.c.l.b16 %v206
      %v292 = vpack.c.b16 %v261, %v260
      %v293 = vpack.c.b16 %v263, %v262
      %v294 = vpack.c.b16 %v265, %v264
      %v295 = vpack.c.b16 %v267, %v266
      %v296 = vpack.c.b16 %v269, %v268
      %v297 = vpack.c.b16 %v271, %v270
      %v298 = vpack.c.b16 %v273, %v272
      %v299 = vpack.c.b16 %v275, %v274
      %v300 = vpack.c.b16 %v277, %v276
      %v301 = vpack.c.b16 %v279, %v278
      %v302 = vpack.c.b16 %v281, %v280
      %v303 = vpack.c.b16 %v283, %v282
      %v304 = vpack.c.b16 %v285, %v284
      %v305 = vpack.c.b16 %v287, %v286
      %v306 = vpack.c.b16 %v289, %v288
      %v307 = vpack.c.b16 %v291, %v290
      %v322 = vunpack.c.l.b16 %v207
      %v323 = vunpack.c.l.b16 %v208
      %v324 = vunpack.c.l.b16 %v209
      %v325 = vunpack.c.l.b16 %v210
      %v326 = vunpack.c.l.b16 %v211
      %v327 = vunpack.c.l.b16 %v212
      %v328 = vunpack.c.l.b16 %v213
      %v329 = vunpack.c.l.b16 %v214
      %v330 = vunpack.c.l.b16 %v215
      %v331 = vunpack.c.l.b16 %v216
      %v332 = vunpack.c.l.b16 %v217
      %v333 = vunpack.c.l.b16 %v218
      %v334 = vunpack.c.l.b16 %v219
      %v335 = vunpack.c.l.b16 %v220
      %v336 = vpack.c.b16 %v323, %v322
      %v337 = vpack.c.b16 %v325, %v324
      %v338 = vpack.c.b16 %v327, %v326
      %v339 = vpack.c.b16 %v329, %v328
      %v340 = vpack.c.b16 %v331, %v330
      %v341 = vpack.c.b16 %v333, %v332
      %v342 = vpack.c.b16 %v335, %v334
      %vm349 = vcmask 883712
      %v351 = vsel %vm349, %v292, 0
      %v354 = vsel %vm349, %v293, 0
      %v357 = vsel %vm349, %v294, 0
      %v360 = vsel %vm349, %v295, 0
      %v363 = vsel %vm349, %v296, 0
      %v366 = vsel %vm349, %v297, 0
      %v369 = vsel %vm349, %v298, 0
      %v372 = vsel %vm349, %v299, 0
      %v375 = vsel %vm349, %v300, 0
      %v378 = vsel %vm349, %v301, 0
      %v381 = vsel %vm349, %v302, 0
      %v384 = vsel %vm349, %v303, 0
      %v387 = vsel %vm349, %v304, 0
      %v390 = vsel %vm349, %v305, 0
      %v393 = vsel %vm349, %v306, 0
      %v396 = vsel %vm349, %v307, 0
      %vm398 = vcmask 1045504
      %v400 = vsel %vm398, %v342, 0
      %402 = vmatprep.subr.bf16.mxu0 0
      %403 = vmatpush1.bf16.msra.mxu0 0
      %404 = vmatprep.subr.bf16.mxu0 0
      %405 = vmatpush1.bf16.msra.mxu0 %v400
      %406 = vmatprep.subr.bf16.mxu0 0
      %407 = vmatpush1.bf16.msra.mxu0 %v341
      %408 = vmatprep.subr.bf16.mxu0 0
      %409 = vmatpush1.bf16.msra.mxu0 %v340
      %410 = vmatprep.subr.bf16.mxu0 0
      %411 = vmatpush1.bf16.msra.mxu0 %v339
      %412 = vmatprep.subr.bf16.mxu0 0
      %413 = vmatpush1.bf16.msra.mxu0 %v338
      %414 = vmatprep.subr.bf16.mxu0 0
      %415 = vmatpush1.bf16.msra.mxu0 %v337
      %416 = vmatprep.subr.bf16.mxu0 0
      %417 = vmatpush1.bf16.msra.mxu0 %v336
      %418 = vmatprep.subr.bf16.mxu0 0
      %419 = vmatpush2.bf16.msra.mxu0 0
      %420 = vmatprep.subr.bf16.mxu0 0
      %421 = vmatpush2.bf16.msra.mxu0 0
      %422 = vmatprep.subr.bf16.mxu0 0
      %423 = vmatpush2.bf16.msra.mxu0 0
      %424 = vmatprep.subr.bf16.mxu0 0
      %425 = vmatpush2.bf16.msra.mxu0 0
      %426 = vmatprep.subr.bf16.mxu0 0
      %427 = vmatpush2.bf16.msra.mxu0 0
      %428 = vmatprep.subr.bf16.mxu0 0
      %429 = vmatpush2.bf16.msra.mxu0 0
      %430 = vmatprep.subr.bf16.mxu0 0
      %431 = vmatpush2.bf16.msra.mxu0 0
      %432 = vmatprep.subr.bf16.mxu0 0
      %433 = vmatpush2.bf16.msra.mxu0 0
      %434 = vmatprep.mubr.bf16.mxu0 0
      %435 = vmatmul.mubr.bf16.gmra.mxu0 %v351
      %v436 = vpop.f32.mrf.mxu0
      %v437 = vadd.f32 %v226, %v436
      %v438 = vpop.f32.mrf.mxu0
      %v439 = vpop.f32.mrf.mxu0
      %v440 = vadd.f32 %v226, %v439
      %v441 = vpop.f32.mrf.mxu0
      %442 = vmatprep.mubr.bf16.mxu0 0
      %443 = vmatmul.mubr.bf16.gmra.mxu0 %v354
      %v444 = vpop.f32.mrf.mxu0
      %v445 = vadd.f32 %v226, %v444
      %v446 = vpop.f32.mrf.mxu0
      %v447 = vpop.f32.mrf.mxu0
      %v448 = vadd.f32 %v226, %v447
      %v449 = vpop.f32.mrf.mxu0
      %450 = vmatprep.mubr.bf16.mxu0 0
      %451 = vmatmul.mubr.bf16.gmra.mxu0 %v357
      %v452 = vpop.f32.mrf.mxu0
      %v453 = vadd.f32 %v226, %v452
      %v454 = vpop.f32.mrf.mxu0
      %v455 = vpop.f32.mrf.mxu0
      %v456 = vadd.f32 %v226, %v455
      %v457 = vpop.f32.mrf.mxu0
      %458 = vmatprep.mubr.bf16.mxu0 0
      %459 = vmatmul.mubr.bf16.gmra.mxu0 %v360
      %v460 = vpop.f32.mrf.mxu0
      %v461 = vadd.f32 %v226, %v460
      %v462 = vpop.f32.mrf.mxu0
      %v463 = vpop.f32.mrf.mxu0
      %v464 = vadd.f32 %v226, %v463
      %v465 = vpop.f32.mrf.mxu0
      %466 = vmatprep.mubr.bf16.mxu0 0
      %467 = vmatmul.mubr.bf16.gmra.mxu0 %v363
      %v468 = vpop.f32.mrf.mxu0
      %v469 = vadd.f32 %v226, %v468
      %v470 = vpop.f32.mrf.mxu0
      %v471 = vpop.f32.mrf.mxu0
      %v472 = vadd.f32 %v226, %v471
      %v473 = vpop.f32.mrf.mxu0
      %474 = vmatprep.mubr.bf16.mxu0 0
      %475 = vmatmul.mubr.bf16.gmra.mxu0 %v366
      %v476 = vpop.f32.mrf.mxu0
      %v477 = vadd.f32 %v226, %v476
      %v478 = vpop.f32.mrf.mxu0
      %v479 = vpop.f32.mrf.mxu0
      %v480 = vadd.f32 %v226, %v479
      %v481 = vpop.f32.mrf.mxu0
      %482 = vmatprep.mubr.bf16.mxu0 0
      %483 = vmatmul.mubr.bf16.gmra.mxu0 %v369
      %v484 = vpop.f32.mrf.mxu0
      %v485 = vadd.f32 %v226, %v484
      %v486 = vpop.f32.mrf.mxu0
      %v487 = vpop.f32.mrf.mxu0
      %v488 = vadd.f32 %v226, %v487
      %v489 = vpop.f32.mrf.mxu0
      %490 = vmatprep.mubr.bf16.mxu0 0
      %491 = vmatmul.mubr.bf16.gmra.mxu0 %v372
      %v492 = vpop.f32.mrf.mxu0
      %v493 = vadd.f32 %v226, %v492
      %v494 = vpop.f32.mrf.mxu0
      %v495 = vpop.f32.mrf.mxu0
      %v496 = vadd.f32 %v226, %v495
      %v497 = vpop.f32.mrf.mxu0
      %498 = vmatprep.mubr.bf16.mxu0 0
      %499 = vmatmul.mubr.bf16.gmra.mxu0 %v375
      %v500 = vpop.f32.mrf.mxu0
      %v501 = vadd.f32 %v226, %v500
      %v502 = vpop.f32.mrf.mxu0
      %v503 = vpop.f32.mrf.mxu0
      %v504 = vadd.f32 %v226, %v503
      %v505 = vpop.f32.mrf.mxu0
      %506 = vmatprep.mubr.bf16.mxu0 0
      %507 = vmatmul.mubr.bf16.gmra.mxu0 %v378
      %v508 = vpop.f32.mrf.mxu0
      %v509 = vadd.f32 %v226, %v508
      %v510 = vpop.f32.mrf.mxu0
      %v511 = vpop.f32.mrf.mxu0
      %v512 = vadd.f32 %v226, %v511
      %v513 = vpop.f32.mrf.mxu0
      %514 = vmatprep.mubr.bf16.mxu0 0
      %515 = vmatmul.mubr.bf16.gmra.mxu0 %v381
      %v516 = vpop.f32.mrf.mxu0
      %v517 = vadd.f32 %v226, %v516
      %v518 = vpop.f32.mrf.mxu0
      %v519 = vpop.f32.mrf.mxu0
      %v520 = vadd.f32 %v226, %v519
      %v521 = vpop.f32.mrf.mxu0
      %522 = vmatprep.mubr.bf16.mxu0 0
      %523 = vmatmul.mubr.bf16.gmra.mxu0 %v384
      %v524 = vpop.f32.mrf.mxu0
      %v525 = vadd.f32 %v226, %v524
      %v526 = vpop.f32.mrf.mxu0
      %v527 = vpop.f32.mrf.mxu0
      %v528 = vadd.f32 %v226, %v527
      %v529 = vpop.f32.mrf.mxu0
      %530 = vmatprep.mubr.bf16.mxu0 0
      %531 = vmatmul.mubr.bf16.gmra.mxu0 %v387
      %v532 = vpop.f32.mrf.mxu0
      %v533 = vadd.f32 %v226, %v532
      %v534 = vpop.f32.mrf.mxu0
      %v535 = vpop.f32.mrf.mxu0
      %v536 = vadd.f32 %v226, %v535
      %v537 = vpop.f32.mrf.mxu0
      %538 = vmatprep.mubr.bf16.mxu0 0
      %539 = vmatmul.mubr.bf16.gmra.mxu0 %v390
      %v540 = vpop.f32.mrf.mxu0
      %v541 = vadd.f32 %v226, %v540
      %v542 = vpop.f32.mrf.mxu0
      %v543 = vpop.f32.mrf.mxu0
      %v544 = vadd.f32 %v226, %v543
      %v545 = vpop.f32.mrf.mxu0
      %546 = vmatprep.mubr.bf16.mxu0 0
      %547 = vmatmul.mubr.bf16.gmra.mxu0 %v393
      %v548 = vpop.f32.mrf.mxu0
      %v549 = vadd.f32 %v226, %v548
      %v550 = vpop.f32.mrf.mxu0
      %v551 = vpop.f32.mrf.mxu0
      %v552 = vadd.f32 %v226, %v551
      %v553 = vpop.f32.mrf.mxu0
      %554 = vmatprep.mubr.bf16.mxu0 0
      %555 = vmatmul.mubr.bf16.gmra.mxu0 %v396
      %v556 = vpop.f32.mrf.mxu0
      %v557 = vadd.f32 %v226, %v556
      %v558 = vpop.f32.mrf.mxu0
      %v559 = vpop.f32.mrf.mxu0
      %v560 = vadd.f32 %v226, %v559
      %v561 = vpop.f32.mrf.mxu0
      %562 = vdwg.mxu0
      %v563 = vmax.f32 %v437, 0.0
      %v564 = vmax.f32 %v440, 0.0
      %v565 = vmax.f32 %v445, 0.0
      %v566 = vmax.f32 %v448, 0.0
      %v567 = vmax.f32 %v453, 0.0
      %v568 = vmax.f32 %v456, 0.0
      %v569 = vmax.f32 %v461, 0.0
      %v570 = vmax.f32 %v464, 0.0
      %v571 = vmax.f32 %v469, 0.0
      %v572 = vmax.f32 %v472, 0.0
      %v573 = vmax.f32 %v477, 0.0
      %v574 = vmax.f32 %v480, 0.0
      %v575 = vmax.f32 %v485, 0.0
      %v576 = vmax.f32 %v488, 0.0
      %v577 = vmax.f32 %v493, 0.0
      %v578 = vmax.f32 %v496, 0.0
      %v579 = vmax.f32 %v501, 0.0
      %v580 = vmax.f32 %v504, 0.0
      %v581 = vmax.f32 %v509, 0.0
      %v582 = vmax.f32 %v512, 0.0
      %v583 = vmax.f32 %v517, 0.0
      %v584 = vmax.f32 %v520, 0.0
      %v585 = vmax.f32 %v525, 0.0
      %v586 = vmax.f32 %v528, 0.0
      %v587 = vmax.f32 %v533, 0.0
      %v588 = vmax.f32 %v536, 0.0
      %v589 = vmax.f32 %v541, 0.0
      %v590 = vmax.f32 %v544, 0.0
      %v591 = vmax.f32 %v549, 0.0
      %v592 = vmax.f32 %v552, 0.0
      %v593 = vmax.f32 %v557, 0.0
      %v594 = vmax.f32 %v560, 0.0
      %v595 = vpack.c.bf16 %v564, %v563
      %v596 = vpack.c.bf16 %v566, %v565
      %v597 = vpack.c.bf16 %v568, %v567
      %v598 = vpack.c.bf16 %v570, %v569
      %v599 = vpack.c.bf16 %v572, %v571
      %v600 = vpack.c.bf16 %v574, %v573
      %v601 = vpack.c.bf16 %v576, %v575
      %v602 = vpack.c.bf16 %v578, %v577
      %v603 = vpack.c.bf16 %v580, %v579
      %v604 = vpack.c.bf16 %v582, %v581
      %v605 = vpack.c.bf16 %v584, %v583
      %v606 = vpack.c.bf16 %v586, %v585
      %v607 = vpack.c.bf16 %v588, %v587
      %v608 = vpack.c.bf16 %v590, %v589
      %v609 = vpack.c.bf16 %v592, %v591
      %v610 = vpack.c.bf16 %v594, %v593
      %v627 = vunpack.c.l.b16 %v595
      %v628 = vunpack.c.h.b16 %v595
      %v629 = vunpack.c.l.b16 %v596
      %v630 = vunpack.c.h.b16 %v596
      %v631 = vunpack.c.l.b16 %v597
      %v632 = vunpack.c.h.b16 %v597
      %v633 = vunpack.c.l.b16 %v598
      %v634 = vunpack.c.h.b16 %v598
      %v635 = vunpack.c.l.b16 %v599
      %v636 = vunpack.c.h.b16 %v599
      %v637 = vunpack.c.l.b16 %v600
      %v638 = vunpack.c.h.b16 %v600
      %v639 = vunpack.c.l.b16 %v601
      %v640 = vunpack.c.h.b16 %v601
      %v641 = vunpack.c.l.b16 %v602
      %v642 = vunpack.c.h.b16 %v602
      %v643 = vunpack.c.l.b16 %v603
      %v644 = vunpack.c.h.b16 %v603
      %v645 = vunpack.c.l.b16 %v604
      %v646 = vunpack.c.h.b16 %v604
      %v647 = vunpack.c.l.b16 %v605
      %v648 = vunpack.c.h.b16 %v605
      %v649 = vunpack.c.l.b16 %v606
      %v650 = vunpack.c.h.b16 %v606
      %v651 = vunpack.c.l.b16 %v607
      %v652 = vunpack.c.h.b16 %v607
      %v653 = vunpack.c.l.b16 %v608
      %v654 = vunpack.c.h.b16 %v608
      %v655 = vunpack.c.l.b16 %v609
      %v656 = vunpack.c.h.b16 %v609
      %v657 = vunpack.c.l.b16 %v610
      %v658 = vunpack.c.h.b16 %v610
      %v659 = vpack.c.b16 %v627, %v627
      %v660 = vpack.c.b16 %v628, %v628
      %v661 = vpack.c.b16 %v629, %v629
      %v662 = vpack.c.b16 %v630, %v630
      %v663 = vpack.c.b16 %v631, %v631
      %v664 = vpack.c.b16 %v632, %v632
      %v665 = vpack.c.b16 %v633, %v633
      %v666 = vpack.c.b16 %v634, %v634
      %v667 = vpack.c.b16 %v635, %v635
      %v668 = vpack.c.b16 %v636, %v636
      %v669 = vpack.c.b16 %v637, %v637
      %v670 = vpack.c.b16 %v638, %v638
      %v671 = vpack.c.b16 %v639, %v639
      %v672 = vpack.c.b16 %v640, %v640
      %v673 = vpack.c.b16 %v641, %v641
      %v674 = vpack.c.b16 %v642, %v642
      %v675 = vpack.c.b16 %v643, %v643
      %v676 = vpack.c.b16 %v644, %v644
      %v677 = vpack.c.b16 %v645, %v645
      %v678 = vpack.c.b16 %v646, %v646
      %v679 = vpack.c.b16 %v647, %v647
      %v680 = vpack.c.b16 %v648, %v648
      %v681 = vpack.c.b16 %v649, %v649
      %v682 = vpack.c.b16 %v650, %v650
      %v683 = vpack.c.b16 %v651, %v651
      %v684 = vpack.c.b16 %v652, %v652
      %v685 = vpack.c.b16 %v653, %v653
      %v686 = vpack.c.b16 %v654, %v654
      %v687 = vpack.c.b16 %v655, %v655
      %v688 = vpack.c.b16 %v656, %v656
      %v689 = vpack.c.b16 %v657, %v657
      %v690 = vpack.c.b16 %v658, %v658
      %vm723 = vcmask 60416
      %724 = vst.msk [vmem:[%s172] sm:$0xf] %vm723, %v659
      %725 = vst.msk [vmem:[%s172 + $0x4] sm:$0xf] %vm723, %v660
      %726 = vst.msk [vmem:[%s172 + $0x8] sm:$0xf] %vm723, %v661
      %727 = vst.msk [vmem:[%s172 + $0xc] sm:$0xf] %vm723, %v662
      %728 = vst.msk [vmem:[%s172 + $0x10] sm:$0xf] %vm723, %v663
      %729 = vst.msk [vmem:[%s172 + $0x14] sm:$0xf] %vm723, %v664
      %730 = vst.msk [vmem:[%s172 + $0x18] sm:$0xf] %vm723, %v665
      %731 = vst.msk [vmem:[%s172 + $0x1c] sm:$0xf] %vm723, %v666
      %732 = vst.msk [vmem:[%s172 + $0x20] sm:$0xf] %vm723, %v667
      %733 = vst.msk [vmem:[%s172 + $0x24] sm:$0xf] %vm723, %v668
      %734 = vst.msk [vmem:[%s172 + $0x28] sm:$0xf] %vm723, %v669
      %735 = vst.msk [vmem:[%s172 + $0x2c] sm:$0xf] %vm723, %v670
      %736 = vst.msk [vmem:[%s172 + $0x30] sm:$0xf] %vm723, %v671
      %737 = vst.msk [vmem:[%s172 + $0x34] sm:$0xf] %vm723, %v672
      %738 = vst.msk [vmem:[%s172 + $0x38] sm:$0xf] %vm723, %v673
      %739 = vst.msk [vmem:[%s172 + $0x3c] sm:$0xf] %vm723, %v674
      %740 = vst.msk [vmem:[%s172 + $0x40] sm:$0xf] %vm723, %v675
      %741 = vst.msk [vmem:[%s172 + $0x44] sm:$0xf] %vm723, %v676
      %742 = vst.msk [vmem:[%s172 + $0x48] sm:$0xf] %vm723, %v677
      %743 = vst.msk [vmem:[%s172 + $0x4c] sm:$0xf] %vm723, %v678
      %744 = vst.msk [vmem:[%s172 + $0x50] sm:$0xf] %vm723, %v679
      %745 = vst.msk [vmem:[%s172 + $0x54] sm:$0xf] %vm723, %v680
      %746 = vst.msk [vmem:[%s172 + $0x58] sm:$0xf] %vm723, %v681
      %747 = vst.msk [vmem:[%s172 + $0x5c] sm:$0xf] %vm723, %v682
      %748 = vst.msk [vmem:[%s172 + $0x60] sm:$0xf] %vm723, %v683
      %749 = vst.msk [vmem:[%s172 + $0x64] sm:$0xf] %vm723, %v684
      %750 = vst.msk [vmem:[%s172 + $0x68] sm:$0xf] %vm723, %v685
      %751 = vst.msk [vmem:[%s172 + $0x6c] sm:$0xf] %vm723, %v686
      %752 = vst.msk [vmem:[%s172 + $0x70] sm:$0xf] %vm723, %v687
      %753 = vst.msk [vmem:[%s172 + $0x74] sm:$0xf] %vm723, %v688
      %754 = vst.msk [vmem:[%s172 + $0x78] sm:$0xf] %vm723, %v689
      %755 = vst.msk [vmem:[%s172 + $0x7c] sm:$0xf] %vm723, %v690
      %s756 = smul.u32 32, %s14
      %p757 = scmp.lt.s32.totalorder %s756, 63
      %s758 = scalar_select %p757, %s756, 63
      %s759 = smul.addr %s758, 4
      %s760 = scalar_lea.vmem %s3, %s759
      // Predicated region
      $region33: #{mcahg2_forward.6} parent=31 // pred_check
        %p761 = pneg %p100
      $region34: #{mcahg2_forward.6} parent=31 // pred_check_branch
        %763 = sbr.rel (%p761) target = $region36
      $region35: #{mcahg2_forward.6} parent=31 // pred_region
        %s764 = smul.u32 32, %s14
      $region36: #{mcahg2_forward.6} parent=31 // pred_fallthru
        _
    $region32: #{mcahg2_forward.6} parent=5 // pred_fallthru
      _
    %p765 = scmp.le.s32.totalorder 2, %s9
    // Predicated region
    $region37: #{mcahg2_forward.6} parent=5 // pred_check
      %p766 = pneg %p765
    $region38: #{mcahg2_forward.6} parent=5 // pred_check_branch
      %768 = sbr.rel (%p766) target = $region40
    $region39: #{mcahg2_forward.6} parent=5 // pred_region
      %s769 = ssub.s32 %s9, 2
      // Predicated region
      $region41: #{mcahg2_forward.6} parent=39 // pred_check
        %p770 = pneg %p106
      $region42: #{mcahg2_forward.6} parent=39 // pred_check_branch
        %772 = sbr.rel (%p770) target = $region44
      $region43: #{mcahg2_forward.6} parent=39 // pred_region
        %s773 = smul.u32 32, %s15
        %p774 = scmp.lt.s32.totalorder %s773, 63
        %s775 = scalar_select %p774, %s773, 63
        %s776 = smul.addr %s775, 4
        %s777 = scalar_lea.vmem %s3, %s776
      $region44: #{mcahg2_forward.6} parent=39 // pred_fallthru
        _
    $region40: #{mcahg2_forward.6} parent=5 // pred_fallthru
      _
  $region6: #{mcahg2_forward.6} parent=0 // loop_footer
    %s13 = sadd.s32 1, %s9
  $region7: #{mcahg2_forward.6} parent=0 // loop_footer_branch
    %8 = sbr.rel target = $region3
  $region8: #{mcahg2_forward.6} parent=0 // loop_exit
    _

// kernel: mcahg2_forward.7
$region0: #{mcahg2_forward.7}
  #allocation0 [shape = 'u32[]', space=smem, size = 0x4, offset = 0x4, fixed_abs, tag = 'smem constant byte address 0x4 - core index']
  #allocation1 [shape = 'u32[144,128]{1,0:T(1,128)}', space=vmem, size = 0x12000, scoped, tag = 'internal scratch']
  %s0 = inlined_call_operand.vmem [shape: bf16[512,216], index: 0, kind: input, shape index: {}]
  %s1 = inlined_call_operand.vmem [shape: bf16[216,8], index: 1, kind: input, shape index: {}]
  %s2 = inlined_call_operand.vmem [shape: f32[1,8], index: 2, kind: input, shape index: {}]
  %s3 = inlined_call_operand.vmem [shape: bf16[512,8], index: 3, kind: output, shape index: {}]
  %s4 = sld [smem:[#allocation0]]
  $region45: #{mcahg2_forward.7} parent=0
    _
  %s6 = ssub.s32 1, %s4
  %s7 = scalar_select 0, %s6, %s4
  loop: start=0, step=1, limit=4
  $region2: #{mcahg2_forward.7} parent=0 // loop_pre_header
    _
  $region3: #{mcahg2_forward.7} parent=0 // loop_header
    %s9 = sphi 0, %s13
    %p10 = scmp.ge.s32.totalorder %s9, 4
    %s19 = sphi 0, %s21
    %s22 = sphi 0, %s19
    %s23 = sphi 0, %s22
    %s39 = sphi 0, %s23
    %s43 = sphi 0, %s43
    %s45 = sphi 0, %s43
    %s46 = sphi 0, %s45
    %s60 = sphi 0, %s46
    %s64 = sphi 0, %s64
    %s66 = sphi 0, %s64
    %s67 = sphi 0, %s66
    %s81 = sphi 0, %s67
    %s87 = sphi 0, %s89
    %s90 = sphi 0, %s87
    %s91 = sphi 0, %s90
    %s107 = sphi 0, %s91
  $region4: #{mcahg2_forward.7} parent=0 // loop_header_branch
    %12 = sbr.rel (%p10) target = $region8
  $region5: #{mcahg2_forward.7} parent=0 // loop_body
    %s14 = ssub.s32 %s9, 1
    %s15 = ssub.s32 %s9, 2
    %s16 = sadd.s32 %s9, 1
    %s17 = ssub.s32 %s9, %s16
    %p18 = scmp.eq.s32.totalorder %s17, 0
    %s20 = sadd.s32 %s19, 1
    %s21 = scalar_select %p18, %s19, %s20
    %p24 = pneg %p18
    %p25 = scmp.eq.s32.totalorder %s9, 1
    %p26 = por %p24, %p25
    %p27 = scmp.ne.s32.totalorder %s19, %s22
    %p28 = scmp.eq.s32.totalorder %s9, 0
    %p29 = por %p27, %p28
    %p30 = scmp.ne.s32.totalorder %s19, %s22
    %p31 = scmp.eq.s32.totalorder %s14, 1
    %p32 = por %p30, %p31
    %p33 = scmp.ne.s32.totalorder %s22, %s23
    %p34 = scmp.eq.s32.totalorder %s14, 0
    %p35 = por %p33, %p34
    %p36 = scmp.ne.s32.totalorder %s22, %s23
    %p37 = scmp.eq.s32.totalorder %s15, 1
    %p38 = por %p36, %p37
    %p40 = scmp.ne.s32.totalorder %s23, %s39
    %p41 = scmp.eq.s32.totalorder %s15, 0
    %p42 = por %p40, %p41
    %s44 = sadd.s32 %s43, 1
    %p47 = scmp.eq.s32.totalorder %s9, 1
    %p48 = scmp.ne.s32.totalorder %s43, %s45
    %p49 = scmp.eq.s32.totalorder %s9, 0
    %p50 = por %p48, %p49
    %p51 = scmp.ne.s32.totalorder %s43, %s45
    %p52 = scmp.eq.s32.totalorder %s14, 1
    %p53 = por %p51, %p52
    %p54 = scmp.ne.s32.totalorder %s45, %s46
    %p55 = scmp.eq.s32.totalorder %s14, 0
    %p56 = por %p54, %p55
    %p57 = scmp.ne.s32.totalorder %s45, %s46
    %p58 = scmp.eq.s32.totalorder %s15, 1
    %p59 = por %p57, %p58
    %p61 = scmp.ne.s32.totalorder %s46, %s60
    %p62 = scmp.eq.s32.totalorder %s15, 0
    %p63 = por %p61, %p62
    %s65 = sadd.s32 %s64, 1
    %p68 = scmp.eq.s32.totalorder %s9, 1
    %p69 = scmp.ne.s32.totalorder %s64, %s66
    %p70 = scmp.eq.s32.totalorder %s9, 0
    %p71 = por %p69, %p70
    %p72 = scmp.ne.s32.totalorder %s64, %s66
    %p73 = scmp.eq.s32.totalorder %s14, 1
    %p74 = por %p72, %p73
    %p75 = scmp.ne.s32.totalorder %s66, %s67
    %p76 = scmp.eq.s32.totalorder %s14, 0
    %p77 = por %p75, %p76
    %p78 = scmp.ne.s32.totalorder %s66, %s67
    %p79 = scmp.eq.s32.totalorder %s15, 1
    %p80 = por %p78, %p79
    %p82 = scmp.ne.s32.totalorder %s67, %s81
    %p83 = scmp.eq.s32.totalorder %s15, 0
    %p84 = por %p82, %p83
    %s85 = ssub.s32 %s9, %s16
    %p86 = scmp.eq.s32.totalorder %s85, 0
    %s88 = sadd.s32 %s87, 1
    %s89 = scalar_select %p86, %s87, %s88
    %p92 = pneg %p86
    %p93 = scmp.eq.s32.totalorder %s9, 1
    %p94 = por %p92, %p93
    %p95 = scmp.ne.s32.totalorder %s87, %s90
    %p96 = scmp.eq.s32.totalorder %s9, 0
    %p97 = por %p95, %p96
    %p98 = scmp.ne.s32.totalorder %s87, %s90
    %p99 = scmp.eq.s32.totalorder %s14, 1
    %p100 = por %p98, %p99
    %p101 = scmp.ne.s32.totalorder %s90, %s91
    %p102 = scmp.eq.s32.totalorder %s14, 0
    %p103 = por %p101, %p102
    %p104 = scmp.ne.s32.totalorder %s90, %s91
    %p105 = scmp.eq.s32.totalorder %s15, 1
    %p106 = por %p104, %p105
    %p108 = scmp.ne.s32.totalorder %s91, %s107
    %p109 = scmp.eq.s32.totalorder %s15, 0
    %p110 = por %p108, %p109
    %p111 = scmp.le.s32.totalorder 1, %s9
    %p112 = scmp.lt.s32.totalorder %s9, 3
    %p113 = pnand %p111, %p112
    %p114 = pneg %p113
    // Predicated region
    $region9: #{mcahg2_forward.7} parent=5 // pred_check
      _
    $region10: #{mcahg2_forward.7} parent=5 // pred_check_branch
      %116 = sbr.rel (%p113) target = $region12
    $region11: #{mcahg2_forward.7} parent=5 // pred_region
      %s117 = ssub.s32 %s9, 1
      // Predicated region
      $region13: #{mcahg2_forward.7} parent=11 // pred_check
        %p118 = pneg %p56
      $region14: #{mcahg2_forward.7} parent=11 // pred_check_branch
        %120 = sbr.rel (%p118) target = $region16
      $region15: #{mcahg2_forward.7} parent=11 // pred_region
        _
      $region16: #{mcahg2_forward.7} parent=11 // pred_fallthru
        _
      // Predicated region
      $region17: #{mcahg2_forward.7} parent=11 // pred_check
        %p121 = pneg %p77
      $region18: #{mcahg2_forward.7} parent=11 // pred_check_branch
        %123 = sbr.rel (%p121) target = $region20
      $region19: #{mcahg2_forward.7} parent=11 // pred_region
        _
      $region20: #{mcahg2_forward.7} parent=11 // pred_fallthru
        _
    $region12: #{mcahg2_forward.7} parent=5 // pred_fallthru
      _
    %p124 = scmp.lt.s32.totalorder %s9, 2
    // Predicated region
    $region21: #{mcahg2_forward.7} parent=5 // pred_check
      %p125 = pneg %p124
    $region22: #{mcahg2_forward.7} parent=5 // pred_check_branch
      %127 = sbr.rel (%p125) target = $region24
    $region23: #{mcahg2_forward.7} parent=5 // pred_region
      // Predicated region
      $region25: #{mcahg2_forward.7} parent=23 // pred_check
        %p128 = pneg %p29
      $region26: #{mcahg2_forward.7} parent=23 // pred_check_branch
        %130 = sbr.rel (%p128) target = $region28
      $region27: #{mcahg2_forward.7} parent=23 // pred_region
        %s131 = smul.u32 32, %s9
        %p132 = scmp.lt.s32.totalorder %s131, 63
        %s133 = scalar_select %p132, %s131, 63
        %s134 = smul.addr %s133, 2
        %s135 = smul.addr %s134, 4
        %s136 = scalar_lea.vmem %s0, %s135
        %s137 = smul.u32 32, %s9
      $region28: #{mcahg2_forward.7} parent=23 // pred_fallthru
        _
    $region24: #{mcahg2_forward.7} parent=5 // pred_fallthru
      _
    %p138 = scmp.le.s32.totalorder 1, %s9
    %p139 = scmp.lt.s32.totalorder %s9, 3
    %p140 = pnand %p138, %p139
    %p141 = pneg %p140
    // Predicated region
    $region29: #{mcahg2_forward.7} parent=5 // pred_check
      _
    $region30: #{mcahg2_forward.7} parent=5 // pred_check_branch
      %143 = sbr.rel (%p140) target = $region32
    $region31: #{mcahg2_forward.7} parent=5 // pred_region
      %s144 = ssub.s32 %s9, 1
      %s145 = smul.u32 32, %s14
      %p146 = scmp.lt.s32.totalorder %s145, 63
      %s147 = scalar_select %p146, %s145, 63
      %s148 = smul.addr %s147, 2
      %s149 = smul.addr %s148, 4
      %s150 = scalar_lea.vmem %s0, %s149
      %p151 = pneg %p35
      %p152 = pneg %p32
      %p153 = pneg %p56
      %p154 = pneg %p53
      %p155 = pneg %p77
      %p156 = pneg %p74
      %p157 = pneg %p103
      %p158 = pneg %p100
      %s159 = smul.u32 32, %s14
      %p160 = scmp.lt.s32.totalorder %s159, 63
      %s161 = scalar_select %p160, %s159, 63
      %s162 = smul.addr %s161, 4
      %s163 = scalar_lea.vmem %s3, %s162
      %s164 = smul.u32 32, %s14
      %p165 = scmp.lt.s32.totalorder %s164, 63
      %s166 = scalar_select %p165, %s164, 63
      %s167 = smul.addr %s166, 2
      %s168 = smul.addr %s167, 4
      %s169 = scalar_lea.vmem %s0, %s168
      %s170 = smul.u32 32, %s14
      %s171 = smul.u32 32, %s14
      %p172 = scmp.lt.s32.totalorder %s171, 63
      %s173 = scalar_select %p172, %s171, 63
      %s174 = smul.addr %s173, 4
      %s175 = scalar_lea.vmem %s3, %s174
      %s176 = smul.u32 32, %s14
      %v178 = vld [vmem:[%s169] sm:$0xff]
      %v179 = vld [vmem:[%s169 + $0x8] sm:$0xff]
      %v180 = vld [vmem:[%s169 + $0x10] sm:$0xff]
      %v181 = vld [vmem:[%s169 + $0x18] sm:$0xff]
      %v182 = vld [vmem:[%s169 + $0x20] sm:$0xff]
      %v183 = vld [vmem:[%s169 + $0x28] sm:$0xff]
      %v184 = vld [vmem:[%s169 + $0x30] sm:$0xff]
      %v185 = vld [vmem:[%s169 + $0x38] sm:$0xff]
      %v186 = vld [vmem:[%s169 + $0x40] sm:$0xff]
      %v187 = vld [vmem:[%s169 + $0x48] sm:$0xff]
      %v188 = vld [vmem:[%s169 + $0x50] sm:$0xff]
      %v189 = vld [vmem:[%s169 + $0x58] sm:$0xff]
      %v190 = vld [vmem:[%s169 + $0x60] sm:$0xff]
      %v191 = vld [vmem:[%s169 + $0x68] sm:$0xff]
      %v192 = vld [vmem:[%s169 + $0x70] sm:$0xff]
      %v193 = vld [vmem:[%s169 + $0x78] sm:$0xff]
      %v194 = vld [vmem:[%s169 + $0x80] sm:$0xff]
      %v195 = vld [vmem:[%s169 + $0x88] sm:$0xff]
      %v196 = vld [vmem:[%s169 + $0x90] sm:$0xff]
      %v197 = vld [vmem:[%s169 + $0x98] sm:$0xff]
      %v198 = vld [vmem:[%s169 + $0xa0] sm:$0xff]
      %v199 = vld [vmem:[%s169 + $0xa8] sm:$0xff]
      %v200 = vld [vmem:[%s169 + $0xb0] sm:$0xff]
      %v201 = vld [vmem:[%s169 + $0xb8] sm:$0xff]
      %v202 = vld [vmem:[%s169 + $0xc0] sm:$0xff]
      %v203 = vld [vmem:[%s169 + $0xc8] sm:$0xff]
      %v204 = vld [vmem:[%s169 + $0xd0] sm:$0xff]
      %v205 = vld [vmem:[%s169 + $0xd8] sm:$0xff]
      %v206 = vld [vmem:[%s169 + $0xe0] sm:$0xff]
      %v207 = vld [vmem:[%s169 + $0xe8] sm:$0xff]
      %v208 = vld [vmem:[%s169 + $0xf0] sm:$0xff]
      %v209 = vld [vmem:[%s169 + $0xf8] sm:$0xff]
      %v210 = vld [vmem:[%s1] sm:$0xf]
      %v211 = vld [vmem:[%s1 + $0x4] sm:$0xf]
      %v212 = vld [vmem:[%s1 + $0x8] sm:$0xf]
      %v213 = vld [vmem:[%s1 + $0xc] sm:$0xf]
      %v214 = vld [vmem:[%s1 + $0x10] sm:$0xf]
      %v215 = vld [vmem:[%s1 + $0x14] sm:$0xf]
      %v216 = vld [vmem:[%s1 + $0x18] sm:$0xf]
      %v217 = vld [vmem:[%s1 + $0x1c] sm:$0xf]
      %v218 = vld [vmem:[%s1 + $0x20] sm:$0xf]
      %v219 = vld [vmem:[%s1 + $0x24] sm:$0xf]
      %v220 = vld [vmem:[%s1 + $0x28] sm:$0xf]
      %v221 = vld [vmem:[%s1 + $0x2c] sm:$0xf]
      %v222 = vld [vmem:[%s1 + $0x30] sm:$0xf]
      %v223 = vld [vmem:[%s1 + $0x34] sm:$0xf]
      %v224 = vld [vmem:[%s1 + $0x38] sm:$0xf]
      %v225 = vld [vmem:[%s1 + $0x3c] sm:$0xf]
      %v226 = vld [vmem:[%s1 + $0x40] sm:$0xf]
      %v227 = vld [vmem:[%s1 + $0x44] sm:$0xf]
      %v228 = vld [vmem:[%s1 + $0x48] sm:$0xf]
      %v229 = vld [vmem:[%s1 + $0x4c] sm:$0xf]
      %v230 = vld [vmem:[%s1 + $0x50] sm:$0xf]
      %v231 = vld [vmem:[%s1 + $0x54] sm:$0xf]
      %v232 = vld [vmem:[%s1 + $0x58] sm:$0xf]
      %v233 = vld [vmem:[%s1 + $0x5c] sm:$0xf]
      %v234 = vld [vmem:[%s1 + $0x60] sm:$0xf]
      %v235 = vld [vmem:[%s1 + $0x64] sm:$0xf]
      %v236 = vld [vmem:[%s1 + $0x68] sm:$0xf]
      %v237 = vld [vmem:[%s2] sm:$0x1]
      %v239 = vlaneseq
      %v240 = vshrl.u32 %v239, 7
      %v241 = vsub.s32 0, %v240
      %v242 = vrot.slane %v237, %v241
      %v276 = vunpack.c.l.b16 %v178
      %v277 = vunpack.c.h.b16 %v178
      %v278 = vunpack.c.l.b16 %v179
      %v279 = vunpack.c.h.b16 %v179
      %v280 = vunpack.c.l.b16 %v180
      %v281 = vunpack.c.h.b16 %v180
      %v282 = vunpack.c.l.b16 %v181
      %v283 = vunpack.c.h.b16 %v181
      %v284 = vunpack.c.l.b16 %v182
      %v285 = vunpack.c.h.b16 %v182
      %v286 = vunpack.c.l.b16 %v183
      %v287 = vunpack.c.h.b16 %v183
      %v288 = vunpack.c.l.b16 %v184
      %v289 = vunpack.c.h.b16 %v184
      %v290 = vunpack.c.l.b16 %v185
      %v291 = vunpack.c.h.b16 %v185
      %v292 = vunpack.c.l.b16 %v186
      %v293 = vunpack.c.h.b16 %v186
      %v294 = vunpack.c.l.b16 %v187
      %v295 = vunpack.c.h.b16 %v187
      %v296 = vunpack.c.l.b16 %v188
      %v297 = vunpack.c.h.b16 %v188
      %v298 = vunpack.c.l.b16 %v189
      %v299 = vunpack.c.h.b16 %v189
      %v300 = vunpack.c.l.b16 %v190
      %v301 = vunpack.c.h.b16 %v190
      %v302 = vunpack.c.l.b16 %v191
      %v303 = vunpack.c.h.b16 %v191
      %v304 = vunpack.c.l.b16 %v192
      %v305 = vunpack.c.h.b16 %v192
      %v306 = vunpack.c.l.b16 %v193
      %v307 = vunpack.c.h.b16 %v193
      %v308 = vunpack.c.l.b16 %v194
      %v309 = vunpack.c.h.b16 %v194
      %v310 = vunpack.c.l.b16 %v195
      %v311 = vunpack.c.h.b16 %v195
      %v312 = vunpack.c.l.b16 %v196
      %v313 = vunpack.c.h.b16 %v196
      %v314 = vunpack.c.l.b16 %v197
      %v315 = vunpack.c.h.b16 %v197
      %v316 = vunpack.c.l.b16 %v198
      %v317 = vunpack.c.h.b16 %v198
      %v318 = vunpack.c.l.b16 %v199
      %v319 = vunpack.c.h.b16 %v199
      %v320 = vunpack.c.l.b16 %v200
      %v321 = vunpack.c.h.b16 %v200
      %v322 = vunpack.c.l.b16 %v201
      %v323 = vunpack.c.h.b16 %v201
      %v324 = vunpack.c.l.b16 %v202
      %v325 = vunpack.c.h.b16 %v202
      %v326 = vunpack.c.l.b16 %v203
      %v327 = vunpack.c.h.b16 %v203
      %v328 = vunpack.c.l.b16 %v204
      %v329 = vunpack.c.h.b16 %v204
      %v330 = vunpack.c.l.b16 %v205
      %v331 = vunpack.c.h.b16 %v205
      %v332 = vunpack.c.l.b16 %v206
      %v333 = vunpack.c.h.b16 %v206
      %v334 = vunpack.c.l.b16 %v207
      %v335 = vunpack.c.h.b16 %v207
      %v336 = vunpack.c.l.b16 %v208
      %v337 = vunpack.c.h.b16 %v208
      %v338 = vunpack.c.l.b16 %v209
      %v339 = vunpack.c.h.b16 %v209
      %v340 = vpack.c.b16 %v278, %v276
      %v341 = vpack.c.b16 %v279, %v277
      %v342 = vpack.c.b16 %v282, %v280
      %v343 = vpack.c.b16 %v283, %v281
      %v344 = vpack.c.b16 %v286, %v284
      %v345 = vpack.c.b16 %v287, %v285
      %v346 = vpack.c.b16 %v290, %v288
      %v347 = vpack.c.b16 %v291, %v289
      %v348 = vpack.c.b16 %v294, %v292
      %v349 = vpack.c.b16 %v295, %v293
      %v350 = vpack.c.b16 %v298, %v296
      %v351 = vpack.c.b16 %v299, %v297
      %v352 = vpack.c.b16 %v302, %v300
      %v353 = vpack.c.b16 %v303, %v301
      %v354 = vpack.c.b16 %v306, %v304
      %v355 = vpack.c.b16 %v307, %v305
      %v356 = vpack.c.b16 %v310, %v308
      %v357 = vpack.c.b16 %v311, %v309
      %v358 = vpack.c.b16 %v314, %v312
      %v359 = vpack.c.b16 %v315, %v313
      %v360 = vpack.c.b16 %v318, %v316
      %v361 = vpack.c.b16 %v319, %v317
      %v362 = vpack.c.b16 %v322, %v320
      %v363 = vpack.c.b16 %v323, %v321
      %v364 = vpack.c.b16 %v326, %v324
      %v365 = vpack.c.b16 %v327, %v325
      %v366 = vpack.c.b16 %v330, %v328
      %v367 = vpack.c.b16 %v331, %v329
      %v368 = vpack.c.b16 %v334, %v332
      %v369 = vpack.c.b16 %v335, %v333
      %v370 = vpack.c.b16 %v338, %v336
      %v371 = vpack.c.b16 %v339, %v337
      %v415 = vunpack.c.l.b16 %v210
      %v416 = vunpack.c.l.b16 %v211
      %v417 = vunpack.c.l.b16 %v212
      %v418 = vunpack.c.l.b16 %v213
      %v419 = vunpack.c.l.b16 %v214
      %v420 = vunpack.c.l.b16 %v215
      %v421 = vunpack.c.l.b16 %v216
      %v422 = vunpack.c.l.b16 %v217
      %v423 = vunpack.c.l.b16 %v218
      %v424 = vunpack.c.l.b16 %v219
      %v425 = vunpack.c.l.b16 %v220
      %v426 = vunpack.c.l.b16 %v221
      %v427 = vunpack.c.l.b16 %v222
      %v428 = vunpack.c.l.b16 %v223
      %v429 = vunpack.c.l.b16 %v224
      %v430 = vunpack.c.l.b16 %v225
      %v431 = vunpack.c.l.b16 %v226
      %v432 = vunpack.c.l.b16 %v227
      %v433 = vunpack.c.l.b16 %v228
      %v434 = vunpack.c.l.b16 %v229
      %v435 = vunpack.c.l.b16 %v230
      %v436 = vunpack.c.l.b16 %v231
      %v437 = vunpack.c.l.b16 %v232
      %v438 = vunpack.c.l.b16 %v233
      %v439 = vunpack.c.l.b16 %v234
      %v440 = vunpack.c.l.b16 %v235
      %v441 = vunpack.c.l.b16 %v236
      %v442 = vpack.c.b16 %v416, %v415
      %v443 = vpack.c.b16 %v418, %v417
      %v444 = vpack.c.b16 %v420, %v419
      %v445 = vpack.c.b16 %v422, %v421
      %v446 = vpack.c.b16 %v424, %v423
      %v447 = vpack.c.b16 %v426, %v425
      %v448 = vpack.c.b16 %v428, %v427
      %v449 = vpack.c.b16 %v430, %v429
      %v450 = vpack.c.b16 %v432, %v431
      %v451 = vpack.c.b16 %v434, %v433
      %v452 = vpack.c.b16 %v436, %v435
      %v453 = vpack.c.b16 %v438, %v437
      %v454 = vpack.c.b16 %v440, %v439
      %v455 = vpack.c.b16 %v441, %v441
      %vm469 = vcmask 719872
      %v471 = vsel %vm469, %v341, 0
      %v474 = vsel %vm469, %v343, 0
      %v477 = vsel %vm469, %v345, 0
      %v480 = vsel %vm469, %v347, 0
      %v483 = vsel %vm469, %v349, 0
      %v486 = vsel %vm469, %v351, 0
      %v489 = vsel %vm469, %v353, 0
      %v492 = vsel %vm469, %v355, 0
      %v495 = vsel %vm469, %v357, 0
      %v498 = vsel %vm469, %v359, 0
      %v501 = vsel %vm469, %v361, 0
      %v504 = vsel %vm469, %v363, 0
      %v507 = vsel %vm469, %v365, 0
      %v510 = vsel %vm469, %v367, 0
      %v513 = vsel %vm469, %v369, 0
      %v516 = vsel %vm469, %v371, 0
      %vm518 = vcmask 1043456
      %v520 = vsel %vm518, %v455, 0
      %522 = vmatprep.subr.bf16.mxu0 0
      %523 = vmatpush1.bf16.msra.mxu0 %v449
      %524 = vmatprep.subr.bf16.mxu0 0
      %525 = vmatpush1.bf16.msra.mxu0 %v448
      %526 = vmatprep.subr.bf16.mxu0 0
      %527 = vmatpush1.bf16.msra.mxu0 %v447
      %528 = vmatprep.subr.bf16.mxu0 0
      %529 = vmatpush1.bf16.msra.mxu0 %v446
      %530 = vmatprep.subr.bf16.mxu0 0
      %531 = vmatpush1.bf16.msra.mxu0 %v445
      %532 = vmatprep.subr.bf16.mxu0 0
      %533 = vmatpush1.bf16.msra.mxu0 %v444
      %534 = vmatprep.subr.bf16.mxu0 0
      %535 = vmatpush1.bf16.msra.mxu0 %v443
      %536 = vmatprep.subr.bf16.mxu0 0
      %537 = vmatpush1.bf16.msra.mxu0 %v442
      %538 = vmatprep.subr.bf16.mxu0 0
      %539 = vmatpush2.bf16.msra.mxu0 0
      %540 = vmatprep.subr.bf16.mxu0 0
      %541 = vmatpush2.bf16.msra.mxu0 0
      %542 = vmatprep.subr.bf16.mxu0 0
      %543 = vmatpush2.bf16.msra.mxu0 %v520
      %544 = vmatprep.subr.bf16.mxu0 0
      %545 = vmatpush2.bf16.msra.mxu0 %v454
      %546 = vmatprep.subr.bf16.mxu0 0
      %547 = vmatpush2.bf16.msra.mxu0 %v453
      %548 = vmatprep.subr.bf16.mxu0 0
      %549 = vmatpush2.bf16.msra.mxu0 %v452
      %550 = vmatprep.subr.bf16.mxu0 0
      %551 = vmatpush2.bf16.msra.mxu0 %v451
      %552 = vmatprep.subr.bf16.mxu0 0
      %553 = vmatpush2.bf16.msra.mxu0 %v450
      %554 = vmatprep.mubr.bf16.mxu0 %v471
      %555 = vmatmul.mubr.bf16.gmra.mxu0 %v340
      %v556 = vpop.f32.mrf.mxu0
      %v557 = vadd.f32 %v242, %v556
      %v558 = vpop.f32.mrf.mxu0
      %v559 = vpop.f32.mrf.mxu0
      %v560 = vadd.f32 %v242, %v559
      %v561 = vpop.f32.mrf.mxu0
      %562 = vmatprep.mubr.bf16.mxu0 %v474
      %563 = vmatmul.mubr.bf16.gmra.mxu0 %v342
      %v564 = vpop.f32.mrf.mxu0
      %v565 = vadd.f32 %v242, %v564
      %v566 = vpop.f32.mrf.mxu0
      %v567 = vpop.f32.mrf.mxu0
      %v568 = vadd.f32 %v242, %v567
      %v569 = vpop.f32.mrf.mxu0
      %570 = vmatprep.mubr.bf16.mxu0 %v477
      %571 = vmatmul.mubr.bf16.gmra.mxu0 %v344
      %v572 = vpop.f32.mrf.mxu0
      %v573 = vadd.f32 %v242, %v572
      %v574 = vpop.f32.mrf.mxu0
      %v575 = vpop.f32.mrf.mxu0
      %v576 = vadd.f32 %v242, %v575
      %v577 = vpop.f32.mrf.mxu0
      %578 = vmatprep.mubr.bf16.mxu0 %v480
      %579 = vmatmul.mubr.bf16.gmra.mxu0 %v346
      %v580 = vpop.f32.mrf.mxu0
      %v581 = vadd.f32 %v242, %v580
      %v582 = vpop.f32.mrf.mxu0
      %v583 = vpop.f32.mrf.mxu0
      %v584 = vadd.f32 %v242, %v583
      %v585 = vpop.f32.mrf.mxu0
      %586 = vmatprep.mubr.bf16.mxu0 %v483
      %587 = vmatmul.mubr.bf16.gmra.mxu0 %v348
      %v588 = vpop.f32.mrf.mxu0
      %v589 = vadd.f32 %v242, %v588
      %v590 = vpop.f32.mrf.mxu0
      %v591 = vpop.f32.mrf.mxu0
      %v592 = vadd.f32 %v242, %v591
      %v593 = vpop.f32.mrf.mxu0
      %594 = vmatprep.mubr.bf16.mxu0 %v486
      %595 = vmatmul.mubr.bf16.gmra.mxu0 %v350
      %v596 = vpop.f32.mrf.mxu0
      %v597 = vadd.f32 %v242, %v596
      %v598 = vpop.f32.mrf.mxu0
      %v599 = vpop.f32.mrf.mxu0
      %v600 = vadd.f32 %v242, %v599
      %v601 = vpop.f32.mrf.mxu0
      %602 = vmatprep.mubr.bf16.mxu0 %v489
      %603 = vmatmul.mubr.bf16.gmra.mxu0 %v352
      %v604 = vpop.f32.mrf.mxu0
      %v605 = vadd.f32 %v242, %v604
      %v606 = vpop.f32.mrf.mxu0
      %v607 = vpop.f32.mrf.mxu0
      %v608 = vadd.f32 %v242, %v607
      %v609 = vpop.f32.mrf.mxu0
      %610 = vmatprep.mubr.bf16.mxu0 %v492
      %611 = vmatmul.mubr.bf16.gmra.mxu0 %v354
      %v612 = vpop.f32.mrf.mxu0
      %v613 = vadd.f32 %v242, %v612
      %v614 = vpop.f32.mrf.mxu0
      %v615 = vpop.f32.mrf.mxu0
      %v616 = vadd.f32 %v242, %v615
      %v617 = vpop.f32.mrf.mxu0
      %618 = vmatprep.mubr.bf16.mxu0 %v495
      %619 = vmatmul.mubr.bf16.gmra.mxu0 %v356
      %v620 = vpop.f32.mrf.mxu0
      %v621 = vadd.f32 %v242, %v620
      %v622 = vpop.f32.mrf.mxu0
      %v623 = vpop.f32.mrf.mxu0
      %v624 = vadd.f32 %v242, %v623
      %v625 = vpop.f32.mrf.mxu0
      %626 = vmatprep.mubr.bf16.mxu0 %v498
      %627 = vmatmul.mubr.bf16.gmra.mxu0 %v358
      %v628 = vpop.f32.mrf.mxu0
      %v629 = vadd.f32 %v242, %v628
      %v630 = vpop.f32.mrf.mxu0
      %v631 = vpop.f32.mrf.mxu0
      %v632 = vadd.f32 %v242, %v631
      %v633 = vpop.f32.mrf.mxu0
      %634 = vmatprep.mubr.bf16.mxu0 %v501
      %635 = vmatmul.mubr.bf16.gmra.mxu0 %v360
      %v636 = vpop.f32.mrf.mxu0
      %v637 = vadd.f32 %v242, %v636
      %v638 = vpop.f32.mrf.mxu0
      %v639 = vpop.f32.mrf.mxu0
      %v640 = vadd.f32 %v242, %v639
      %v641 = vpop.f32.mrf.mxu0
      %642 = vmatprep.mubr.bf16.mxu0 %v504
      %643 = vmatmul.mubr.bf16.gmra.mxu0 %v362
      %v644 = vpop.f32.mrf.mxu0
      %v645 = vadd.f32 %v242, %v644
      %v646 = vpop.f32.mrf.mxu0
      %v647 = vpop.f32.mrf.mxu0
      %v648 = vadd.f32 %v242, %v647
      %v649 = vpop.f32.mrf.mxu0
      %650 = vmatprep.mubr.bf16.mxu0 %v507
      %651 = vmatmul.mubr.bf16.gmra.mxu0 %v364
      %v652 = vpop.f32.mrf.mxu0
      %v653 = vadd.f32 %v242, %v652
      %v654 = vpop.f32.mrf.mxu0
      %v655 = vpop.f32.mrf.mxu0
      %v656 = vadd.f32 %v242, %v655
      %v657 = vpop.f32.mrf.mxu0
      %658 = vmatprep.mubr.bf16.mxu0 %v510
      %659 = vmatmul.mubr.bf16.gmra.mxu0 %v366
      %v660 = vpop.f32.mrf.mxu0
      %v661 = vadd.f32 %v242, %v660
      %v662 = vpop.f32.mrf.mxu0
      %v663 = vpop.f32.mrf.mxu0
      %v664 = vadd.f32 %v242, %v663
      %v665 = vpop.f32.mrf.mxu0
      %666 = vmatprep.mubr.bf16.mxu0 %v513
      %667 = vmatmul.mubr.bf16.gmra.mxu0 %v368
      %v668 = vpop.f32.mrf.mxu0
      %v669 = vadd.f32 %v242, %v668
      %v670 = vpop.f32.mrf.mxu0
      %v671 = vpop.f32.mrf.mxu0
      %v672 = vadd.f32 %v242, %v671
      %v673 = vpop.f32.mrf.mxu0
      %674 = vmatprep.mubr.bf16.mxu0 %v516
      %675 = vmatmul.mubr.bf16.gmra.mxu0 %v370
      %v676 = vpop.f32.mrf.mxu0
      %v677 = vadd.f32 %v242, %v676
      %v678 = vpop.f32.mrf.mxu0
      %v679 = vpop.f32.mrf.mxu0
      %v680 = vadd.f32 %v242, %v679
      %v681 = vpop.f32.mrf.mxu0
      %682 = vdwg.mxu0
      %v683 = vmax.f32 %v557, 0.0
      %v684 = vmax.f32 %v560, 0.0
      %v685 = vmax.f32 %v565, 0.0
      %v686 = vmax.f32 %v568, 0.0
      %v687 = vmax.f32 %v573, 0.0
      %v688 = vmax.f32 %v576, 0.0
      %v689 = vmax.f32 %v581, 0.0
      %v690 = vmax.f32 %v584, 0.0
      %v691 = vmax.f32 %v589, 0.0
      %v692 = vmax.f32 %v592, 0.0
      %v693 = vmax.f32 %v597, 0.0
      %v694 = vmax.f32 %v600, 0.0
      %v695 = vmax.f32 %v605, 0.0
      %v696 = vmax.f32 %v608, 0.0
      %v697 = vmax.f32 %v613, 0.0
      %v698 = vmax.f32 %v616, 0.0
      %v699 = vmax.f32 %v621, 0.0
      %v700 = vmax.f32 %v624, 0.0
      %v701 = vmax.f32 %v629, 0.0
      %v702 = vmax.f32 %v632, 0.0
      %v703 = vmax.f32 %v637, 0.0
      %v704 = vmax.f32 %v640, 0.0
      %v705 = vmax.f32 %v645, 0.0
      %v706 = vmax.f32 %v648, 0.0
      %v707 = vmax.f32 %v653, 0.0
      %v708 = vmax.f32 %v656, 0.0
      %v709 = vmax.f32 %v661, 0.0
      %v710 = vmax.f32 %v664, 0.0
      %v711 = vmax.f32 %v669, 0.0
      %v712 = vmax.f32 %v672, 0.0
      %v713 = vmax.f32 %v677, 0.0
      %v714 = vmax.f32 %v680, 0.0
      %v715 = vpack.c.bf16 %v684, %v683
      %v716 = vpack.c.bf16 %v686, %v685
      %v717 = vpack.c.bf16 %v688, %v687
      %v718 = vpack.c.bf16 %v690, %v689
      %v719 = vpack.c.bf16 %v692, %v691
      %v720 = vpack.c.bf16 %v694, %v693
      %v721 = vpack.c.bf16 %v696, %v695
      %v722 = vpack.c.bf16 %v698, %v697
      %v723 = vpack.c.bf16 %v700, %v699
      %v724 = vpack.c.bf16 %v702, %v701
      %v725 = vpack.c.bf16 %v704, %v703
      %v726 = vpack.c.bf16 %v706, %v705
      %v727 = vpack.c.bf16 %v708, %v707
      %v728 = vpack.c.bf16 %v710, %v709
      %v729 = vpack.c.bf16 %v712, %v711
      %v730 = vpack.c.bf16 %v714, %v713
      %v747 = vunpack.c.l.b16 %v715
      %v748 = vunpack.c.h.b16 %v715
      %v749 = vunpack.c.l.b16 %v716
      %v750 = vunpack.c.h.b16 %v716
      %v751 = vunpack.c.l.b16 %v717
      %v752 = vunpack.c.h.b16 %v717
      %v753 = vunpack.c.l.b16 %v718
      %v754 = vunpack.c.h.b16 %v718
      %v755 = vunpack.c.l.b16 %v719
      %v756 = vunpack.c.h.b16 %v719
      %v757 = vunpack.c.l.b16 %v720
      %v758 = vunpack.c.h.b16 %v720
      %v759 = vunpack.c.l.b16 %v721
      %v760 = vunpack.c.h.b16 %v721
      %v761 = vunpack.c.l.b16 %v722
      %v762 = vunpack.c.h.b16 %v722
      %v763 = vunpack.c.l.b16 %v723
      %v764 = vunpack.c.h.b16 %v723
      %v765 = vunpack.c.l.b16 %v724
      %v766 = vunpack.c.h.b16 %v724
      %v767 = vunpack.c.l.b16 %v725
      %v768 = vunpack.c.h.b16 %v725
      %v769 = vunpack.c.l.b16 %v726
      %v770 = vunpack.c.h.b16 %v726
      %v771 = vunpack.c.l.b16 %v727
      %v772 = vunpack.c.h.b16 %v727
      %v773 = vunpack.c.l.b16 %v728
      %v774 = vunpack.c.h.b16 %v728
      %v775 = vunpack.c.l.b16 %v729
      %v776 = vunpack.c.h.b16 %v729
      %v777 = vunpack.c.l.b16 %v730
      %v778 = vunpack.c.h.b16 %v730
      %v779 = vpack.c.b16 %v747, %v747
      %v780 = vpack.c.b16 %v748, %v748
      %v781 = vpack.c.b16 %v749, %v749
      %v782 = vpack.c.b16 %v750, %v750
      %v783 = vpack.c.b16 %v751, %v751
      %v784 = vpack.c.b16 %v752, %v752
      %v785 = vpack.c.b16 %v753, %v753
      %v786 = vpack.c.b16 %v754, %v754
      %v787 = vpack.c.b16 %v755, %v755
      %v788 = vpack.c.b16 %v756, %v756
      %v789 = vpack.c.b16 %v757, %v757
      %v790 = vpack.c.b16 %v758, %v758
      %v791 = vpack.c.b16 %v759, %v759
      %v792 = vpack.c.b16 %v760, %v760
      %v793 = vpack.c.b16 %v761, %v761
      %v794 = vpack.c.b16 %v762, %v762
      %v795 = vpack.c.b16 %v763, %v763
      %v796 = vpack.c.b16 %v764, %v764
      %v797 = vpack.c.b16 %v765, %v765
      %v798 = vpack.c.b16 %v766, %v766
      %v799 = vpack.c.b16 %v767, %v767
      %v800 = vpack.c.b16 %v768, %v768
      %v801 = vpack.c.b16 %v769, %v769
      %v802 = vpack.c.b16 %v770, %v770
      %v803 = vpack.c.b16 %v771, %v771
      %v804 = vpack.c.b16 %v772, %v772
      %v805 = vpack.c.b16 %v773, %v773
      %v806 = vpack.c.b16 %v774, %v774
      %v807 = vpack.c.b16 %v775, %v775
      %v808 = vpack.c.b16 %v776, %v776
      %v809 = vpack.c.b16 %v777, %v777
      %v810 = vpack.c.b16 %v778, %v778
      %vm843 = vcmask 60416
      %844 = vst.msk [vmem:[%s175] sm:$0xf] %vm843, %v779
      %845 = vst.msk [vmem:[%s175 + $0x4] sm:$0xf] %vm843, %v780
      %846 = vst.msk [vmem:[%s175 + $0x8] sm:$0xf] %vm843, %v781
      %847 = vst.msk [vmem:[%s175 + $0xc] sm:$0xf] %vm843, %v782
      %848 = vst.msk [vmem:[%s175 + $0x10] sm:$0xf] %vm843, %v783
      %849 = vst.msk [vmem:[%s175 + $0x14] sm:$0xf] %vm843, %v784
      %850 = vst.msk [vmem:[%s175 + $0x18] sm:$0xf] %vm843, %v785
      %851 = vst.msk [vmem:[%s175 + $0x1c] sm:$0xf] %vm843, %v786
      %852 = vst.msk [vmem:[%s175 + $0x20] sm:$0xf] %vm843, %v787
      %853 = vst.msk [vmem:[%s175 + $0x24] sm:$0xf] %vm843, %v788
      %854 = vst.msk [vmem:[%s175 + $0x28] sm:$0xf] %vm843, %v789
      %855 = vst.msk [vmem:[%s175 + $0x2c] sm:$0xf] %vm843, %v790
      %856 = vst.msk [vmem:[%s175 + $0x30] sm:$0xf] %vm843, %v791
      %857 = vst.msk [vmem:[%s175 + $0x34] sm:$0xf] %vm843, %v792
      %858 = vst.msk [vmem:[%s175 + $0x38] sm:$0xf] %vm843, %v793
      %859 = vst.msk [vmem:[%s175 + $0x3c] sm:$0xf] %vm843, %v794
      %860 = vst.msk [vmem:[%s175 + $0x40] sm:$0xf] %vm843, %v795
      %861 = vst.msk [vmem:[%s175 + $0x44] sm:$0xf] %vm843, %v796
      %862 = vst.msk [vmem:[%s175 + $0x48] sm:$0xf] %vm843, %v797
      %863 = vst.msk [vmem:[%s175 + $0x4c] sm:$0xf] %vm843, %v798
      %864 = vst.msk [vmem:[%s175 + $0x50] sm:$0xf] %vm843, %v799
      %865 = vst.msk [vmem:[%s175 + $0x54] sm:$0xf] %vm843, %v800
      %866 = vst.msk [vmem:[%s175 + $0x58] sm:$0xf] %vm843, %v801
      %867 = vst.msk [vmem:[%s175 + $0x5c] sm:$0xf] %vm843, %v802
      %868 = vst.msk [vmem:[%s175 + $0x60] sm:$0xf] %vm843, %v803
      %869 = vst.msk [vmem:[%s175 + $0x64] sm:$0xf] %vm843, %v804
      %870 = vst.msk [vmem:[%s175 + $0x68] sm:$0xf] %vm843, %v805
      %871 = vst.msk [vmem:[%s175 + $0x6c] sm:$0xf] %vm843, %v806
      %872 = vst.msk [vmem:[%s175 + $0x70] sm:$0xf] %vm843, %v807
      %873 = vst.msk [vmem:[%s175 + $0x74] sm:$0xf] %vm843, %v808
      %874 = vst.msk [vmem:[%s175 + $0x78] sm:$0xf] %vm843, %v809
      %875 = vst.msk [vmem:[%s175 + $0x7c] sm:$0xf] %vm843, %v810
      %s876 = smul.u32 32, %s14
      %p877 = scmp.lt.s32.totalorder %s876, 63
      %s878 = scalar_select %p877, %s876, 63
      %s879 = smul.addr %s878, 4
      %s880 = scalar_lea.vmem %s3, %s879
      // Predicated region
      $region33: #{mcahg2_forward.7} parent=31 // pred_check
        %p881 = pneg %p100
      $region34: #{mcahg2_forward.7} parent=31 // pred_check_branch
        %883 = sbr.rel (%p881) target = $region36
      $region35: #{mcahg2_forward.7} parent=31 // pred_region
        %s884 = smul.u32 32, %s14
      $region36: #{mcahg2_forward.7} parent=31 // pred_fallthru
        _
    $region32: #{mcahg2_forward.7} parent=5 // pred_fallthru
      _
    %p885 = scmp.le.s32.totalorder 2, %s9
    // Predicated region
    $region37: #{mcahg2_forward.7} parent=5 // pred_check
      %p886 = pneg %p885
    $region38: #{mcahg2_forward.7} parent=5 // pred_check_branch
      %888 = sbr.rel (%p886) target = $region40
    $region39: #{mcahg2_forward.7} parent=5 // pred_region
      %s889 = ssub.s32 %s9, 2
      // Predicated region
      $region41: #{mcahg2_forward.7} parent=39 // pred_check
        %p890 = pneg %p106
      $region42: #{mcahg2_forward.7} parent=39 // pred_check_branch
        %892 = sbr.rel (%p890) target = $region44
      $region43: #{mcahg2_forward.7} parent=39 // pred_region
        %s893 = smul.u32 32, %s15
        %p894 = scmp.lt.s32.totalorder %s893, 63
        %s895 = scalar_select %p894, %s893, 63
        %s896 = smul.addr %s895, 4
        %s897 = scalar_lea.vmem %s3, %s896
      $region44: #{mcahg2_forward.7} parent=39 // pred_fallthru
        _
    $region40: #{mcahg2_forward.7} parent=5 // pred_fallthru
      _
  $region6: #{mcahg2_forward.7} parent=0 // loop_footer
    %s13 = sadd.s32 1, %s9
  $region7: #{mcahg2_forward.7} parent=0 // loop_footer_branch
    %8 = sbr.rel target = $region3
  $region8: #{mcahg2_forward.7} parent=0 // loop_exit
    _

// kernel: mcahg2_forward.8
$region0: #{mcahg2_forward.8}
  #allocation0 [shape = 'u32[]', space=smem, size = 0x4, offset = 0x4, fixed_abs, tag = 'smem constant byte address 0x4 - core index']
  #allocation1 [shape = 'u32[144,128]{1,0:T(1,128)}', space=vmem, size = 0x12000, scoped, tag = 'internal scratch']
  %s0 = inlined_call_operand.vmem [shape: bf16[128,216], index: 0, kind: input, shape index: {}]
  %s1 = inlined_call_operand.vmem [shape: bf16[216,16], index: 1, kind: input, shape index: {}]
  %s2 = inlined_call_operand.vmem [shape: f32[1,16], index: 2, kind: input, shape index: {}]
  %s3 = inlined_call_operand.vmem [shape: bf16[128,16], index: 3, kind: output, shape index: {}]
  %s4 = sld [smem:[#allocation0]]
  $region22: #{mcahg2_forward.8} parent=0
    _
  %s6 = ssub.s32 1, %s4
  %s7 = scalar_select 0, %s6, %s4
  // Predicated region
  $region2: #{mcahg2_forward.8} parent=0 // pred_check
    _
  $region3: #{mcahg2_forward.8} parent=0 // pred_check_branch
    %9 = sbr.rel (0) target = $region5
  $region4: #{mcahg2_forward.8} parent=0 // pred_region
    _
  $region5: #{mcahg2_forward.8} parent=0 // pred_fallthru
    _
  // Predicated region
  $region6: #{mcahg2_forward.8} parent=0 // pred_check
    _
  $region7: #{mcahg2_forward.8} parent=0 // pred_check_branch
    %11 = sbr.rel (0) target = $region9
  $region8: #{mcahg2_forward.8} parent=0 // pred_region
    _
  $region9: #{mcahg2_forward.8} parent=0 // pred_fallthru
    _
  // Predicated region
  $region10: #{mcahg2_forward.8} parent=0 // pred_check
    _
  $region11: #{mcahg2_forward.8} parent=0 // pred_check_branch
    %13 = sbr.rel (0) target = $region13
  $region12: #{mcahg2_forward.8} parent=0 // pred_region
    _
  $region13: #{mcahg2_forward.8} parent=0 // pred_fallthru
    _
  %v15 = vld [vmem:[%s0] sm:$0xff]
  %v16 = vld [vmem:[%s0 + $0x8] sm:$0xff]
  %v17 = vld [vmem:[%s0 + $0x10] sm:$0xff]
  %v18 = vld [vmem:[%s0 + $0x18] sm:$0xff]
  %v19 = vld [vmem:[%s0 + $0x20] sm:$0xff]
  %v20 = vld [vmem:[%s0 + $0x28] sm:$0xff]
  %v21 = vld [vmem:[%s0 + $0x30] sm:$0xff]
  %v22 = vld [vmem:[%s0 + $0x38] sm:$0xff]
  %v23 = vld [vmem:[%s0 + $0x40] sm:$0xff]
  %v24 = vld [vmem:[%s0 + $0x48] sm:$0xff]
  %v25 = vld [vmem:[%s0 + $0x50] sm:$0xff]
  %v26 = vld [vmem:[%s0 + $0x58] sm:$0xff]
  %v27 = vld [vmem:[%s0 + $0x60] sm:$0xff]
  %v28 = vld [vmem:[%s0 + $0x68] sm:$0xff]
  %v29 = vld [vmem:[%s0 + $0x70] sm:$0xff]
  %v30 = vld [vmem:[%s0 + $0x78] sm:$0xff]
  %v31 = vld [vmem:[%s1] sm:$0xf]
  %v32 = vld [vmem:[%s1 + $0x4] sm:$0xf]
  %v33 = vld [vmem:[%s1 + $0x8] sm:$0xf]
  %v34 = vld [vmem:[%s1 + $0xc] sm:$0xf]
  %v35 = vld [vmem:[%s1 + $0x10] sm:$0xf]
  %v36 = vld [vmem:[%s1 + $0x14] sm:$0xf]
  %v37 = vld [vmem:[%s1 + $0x18] sm:$0xf]
  %v38 = vld [vmem:[%s1 + $0x1c] sm:$0xf]
  %v39 = vld [vmem:[%s1 + $0x20] sm:$0xf]
  %v40 = vld [vmem:[%s1 + $0x24] sm:$0xf]
  %v41 = vld [vmem:[%s1 + $0x28] sm:$0xf]
  %v42 = vld [vmem:[%s1 + $0x2c] sm:$0xf]
  %v43 = vld [vmem:[%s1 + $0x30] sm:$0xf]
  %v44 = vld [vmem:[%s1 + $0x34] sm:$0xf]
  %v45 = vld [vmem:[%s1 + $0x38] sm:$0xf]
  %v46 = vld [vmem:[%s1 + $0x3c] sm:$0xf]
  %v47 = vld [vmem:[%s1 + $0x40] sm:$0xf]
  %v48 = vld [vmem:[%s1 + $0x44] sm:$0xf]
  %v49 = vld [vmem:[%s1 + $0x48] sm:$0xf]
  %v50 = vld [vmem:[%s1 + $0x4c] sm:$0xf]
  %v51 = vld [vmem:[%s1 + $0x50] sm:$0xf]
  %v52 = vld [vmem:[%s1 + $0x54] sm:$0xf]
  %v53 = vld [vmem:[%s1 + $0x58] sm:$0xf]
  %v54 = vld [vmem:[%s1 + $0x5c] sm:$0xf]
  %v55 = vld [vmem:[%s1 + $0x60] sm:$0xf]
  %v56 = vld [vmem:[%s1 + $0x64] sm:$0xf]
  %v57 = vld [vmem:[%s1 + $0x68] sm:$0xf]
  %v58 = vld [vmem:[%s2] sm:$0x1]
  %v60 = vlaneseq
  %v61 = vshrl.u32 %v60, 7
  %v62 = vsub.s32 0, %v61
  %v63 = vrot.slane %v58, %v62
  %v81 = vunpack.c.l.b16 %v15
  %v82 = vunpack.c.h.b16 %v15
  %v83 = vunpack.c.l.b16 %v16
  %v84 = vunpack.c.h.b16 %v16
  %v85 = vunpack.c.l.b16 %v17
  %v86 = vunpack.c.h.b16 %v17
  %v87 = vunpack.c.l.b16 %v18
  %v88 = vunpack.c.h.b16 %v18
  %v89 = vunpack.c.l.b16 %v19
  %v90 = vunpack.c.h.b16 %v19
  %v91 = vunpack.c.l.b16 %v20
  %v92 = vunpack.c.h.b16 %v20
  %v93 = vunpack.c.l.b16 %v21
  %v94 = vunpack.c.h.b16 %v21
  %v95 = vunpack.c.l.b16 %v22
  %v96 = vunpack.c.h.b16 %v22
  %v97 = vunpack.c.l.b16 %v23
  %v98 = vunpack.c.h.b16 %v23
  %v99 = vunpack.c.l.b16 %v24
  %v100 = vunpack.c.h.b16 %v24
  %v101 = vunpack.c.l.b16 %v25
  %v102 = vunpack.c.h.b16 %v25
  %v103 = vunpack.c.l.b16 %v26
  %v104 = vunpack.c.h.b16 %v26
  %v105 = vunpack.c.l.b16 %v27
  %v106 = vunpack.c.h.b16 %v27
  %v107 = vunpack.c.l.b16 %v28
  %v108 = vunpack.c.h.b16 %v28
  %v109 = vunpack.c.l.b16 %v29
  %v110 = vunpack.c.h.b16 %v29
  %v111 = vunpack.c.l.b16 %v30
  %v112 = vunpack.c.h.b16 %v30
  %v113 = vpack.c.b16 %v83, %v81
  %v114 = vpack.c.b16 %v84, %v82
  %v115 = vpack.c.b16 %v87, %v85
  %v116 = vpack.c.b16 %v88, %v86
  %v117 = vpack.c.b16 %v91, %v89
  %v118 = vpack.c.b16 %v92, %v90
  %v119 = vpack.c.b16 %v95, %v93
  %v120 = vpack.c.b16 %v96, %v94
  %v121 = vpack.c.b16 %v99, %v97
  %v122 = vpack.c.b16 %v100, %v98
  %v123 = vpack.c.b16 %v103, %v101
  %v124 = vpack.c.b16 %v104, %v102
  %v125 = vpack.c.b16 %v107, %v105
  %v126 = vpack.c.b16 %v108, %v106
  %v127 = vpack.c.b16 %v111, %v109
  %v128 = vpack.c.b16 %v112, %v110
  %v164 = vunpack.c.l.b16 %v31
  %v165 = vunpack.c.l.b16 %v32
  %v166 = vunpack.c.l.b16 %v33
  %v167 = vunpack.c.l.b16 %v34
  %v168 = vunpack.c.l.b16 %v35
  %v169 = vunpack.c.l.b16 %v36
  %v170 = vunpack.c.l.b16 %v37
  %v171 = vunpack.c.l.b16 %v38
  %v172 = vunpack.c.l.b16 %v39
  %v173 = vunpack.c.l.b16 %v40
  %v174 = vunpack.c.l.b16 %v41
  %v175 = vunpack.c.l.b16 %v42
  %v176 = vunpack.c.l.b16 %v43
  %v177 = vunpack.c.l.b16 %v44
  %v178 = vunpack.c.l.b16 %v45
  %v179 = vunpack.c.l.b16 %v46
  %v180 = vunpack.c.l.b16 %v47
  %v181 = vunpack.c.l.b16 %v48
  %v182 = vunpack.c.l.b16 %v49
  %v183 = vunpack.c.l.b16 %v50
  %v184 = vunpack.c.l.b16 %v51
  %v185 = vunpack.c.l.b16 %v52
  %v186 = vunpack.c.l.b16 %v53
  %v187 = vunpack.c.l.b16 %v54
  %v188 = vunpack.c.l.b16 %v55
  %v189 = vunpack.c.l.b16 %v56
  %v190 = vunpack.c.l.b16 %v57
  %v191 = vpack.c.b16 %v165, %v164
  %v192 = vpack.c.b16 %v167, %v166
  %v193 = vpack.c.b16 %v169, %v168
  %v194 = vpack.c.b16 %v171, %v170
  %v195 = vpack.c.b16 %v173, %v172
  %v196 = vpack.c.b16 %v175, %v174
  %v197 = vpack.c.b16 %v177, %v176
  %v198 = vpack.c.b16 %v179, %v178
  %v199 = vpack.c.b16 %v181, %v180
  %v200 = vpack.c.b16 %v183, %v182
  %v201 = vpack.c.b16 %v185, %v184
  %v202 = vpack.c.b16 %v187, %v186
  %v203 = vpack.c.b16 %v189, %v188
  %v204 = vpack.c.b16 %v190, %v190
  %vm218 = vcmask 719872
  %v220 = vsel %vm218, %v114, 0
  %v223 = vsel %vm218, %v116, 0
  %v226 = vsel %vm218, %v118, 0
  %v229 = vsel %vm218, %v120, 0
  %v232 = vsel %vm218, %v122, 0
  %v235 = vsel %vm218, %v124, 0
  %v238 = vsel %vm218, %v126, 0
  %v241 = vsel %vm218, %v128, 0
  %vm243 = vcmask 1043456
  %v245 = vsel %vm243, %v204, 0
  %247 = vmatprep.subr.bf16.mxu0 0
  %248 = vmatpush1.bf16.msra.mxu0 %v198
  %249 = vmatprep.subr.bf16.mxu0 0
  %250 = vmatpush1.bf16.msra.mxu0 %v197
  %251 = vmatprep.subr.bf16.mxu0 0
  %252 = vmatpush1.bf16.msra.mxu0 %v196
  %253 = vmatprep.subr.bf16.mxu0 0
  %254 = vmatpush1.bf16.msra.mxu0 %v195
  %255 = vmatprep.subr.bf16.mxu0 0
  %256 = vmatpush1.bf16.msra.mxu0 %v194
  %257 = vmatprep.subr.bf16.mxu0 0
  %258 = vmatpush1.bf16.msra.mxu0 %v193
  %259 = vmatprep.subr.bf16.mxu0 0
  %260 = vmatpush1.bf16.msra.mxu0 %v192
  %261 = vmatprep.subr.bf16.mxu0 0
  %262 = vmatpush1.bf16.msra.mxu0 %v191
  %263 = vmatprep.subr.bf16.mxu0 0
  %264 = vmatpush2.bf16.msra.mxu0 0
  %265 = vmatprep.subr.bf16.mxu0 0
  %266 = vmatpush2.bf16.msra.mxu0 0
  %267 = vmatprep.subr.bf16.mxu0 0
  %268 = vmatpush2.bf16.msra.mxu0 %v245
  %269 = vmatprep.subr.bf16.mxu0 0
  %270 = vmatpush2.bf16.msra.mxu0 %v203
  %271 = vmatprep.subr.bf16.mxu0 0
  %272 = vmatpush2.bf16.msra.mxu0 %v202
  %273 = vmatprep.subr.bf16.mxu0 0
  %274 = vmatpush2.bf16.msra.mxu0 %v201
  %275 = vmatprep.subr.bf16.mxu0 0
  %276 = vmatpush2.bf16.msra.mxu0 %v200
  %277 = vmatprep.subr.bf16.mxu0 0
  %278 = vmatpush2.bf16.msra.mxu0 %v199
  %279 = vmatprep.mubr.bf16.mxu0 %v220
  %280 = vmatmul.mubr.bf16.gmra.mxu0 %v113
  %v281 = vpop.f32.mrf.mxu0
  %v282 = vadd.f32 %v63, %v281
  %v283 = vpop.f32.mrf.mxu0
  %v284 = vpop.f32.mrf.mxu0
  %v285 = vadd.f32 %v63, %v284
  %v286 = vpop.f32.mrf.mxu0
  %287 = vmatprep.mubr.bf16.mxu0 %v223
  %288 = vmatmul.mubr.bf16.gmra.mxu0 %v115
  %v289 = vpop.f32.mrf.mxu0
  %v290 = vadd.f32 %v63, %v289
  %v291 = vpop.f32.mrf.mxu0
  %v292 = vpop.f32.mrf.mxu0
  %v293 = vadd.f32 %v63, %v292
  %v294 = vpop.f32.mrf.mxu0
  %295 = vmatprep.mubr.bf16.mxu0 %v226
  %296 = vmatmul.mubr.bf16.gmra.mxu0 %v117
  %v297 = vpop.f32.mrf.mxu0
  %v298 = vadd.f32 %v63, %v297
  %v299 = vpop.f32.mrf.mxu0
  %v300 = vpop.f32.mrf.mxu0
  %v301 = vadd.f32 %v63, %v300
  %v302 = vpop.f32.mrf.mxu0
  %303 = vmatprep.mubr.bf16.mxu0 %v229
  %304 = vmatmul.mubr.bf16.gmra.mxu0 %v119
  %v305 = vpop.f32.mrf.mxu0
  %v306 = vadd.f32 %v63, %v305
  %v307 = vpop.f32.mrf.mxu0
  %v308 = vpop.f32.mrf.mxu0
  %v309 = vadd.f32 %v63, %v308
  %v310 = vpop.f32.mrf.mxu0
  %311 = vmatprep.mubr.bf16.mxu0 %v232
  %312 = vmatmul.mubr.bf16.gmra.mxu0 %v121
  %v313 = vpop.f32.mrf.mxu0
  %v314 = vadd.f32 %v63, %v313
  %v315 = vpop.f32.mrf.mxu0
  %v316 = vpop.f32.mrf.mxu0
  %v317 = vadd.f32 %v63, %v316
  %v318 = vpop.f32.mrf.mxu0
  %319 = vmatprep.mubr.bf16.mxu0 %v235
  %320 = vmatmul.mubr.bf16.gmra.mxu0 %v123
  %v321 = vpop.f32.mrf.mxu0
  %v322 = vadd.f32 %v63, %v321
  %v323 = vpop.f32.mrf.mxu0
  %v324 = vpop.f32.mrf.mxu0
  %v325 = vadd.f32 %v63, %v324
  %v326 = vpop.f32.mrf.mxu0
  %327 = vmatprep.mubr.bf16.mxu0 %v238
  %328 = vmatmul.mubr.bf16.gmra.mxu0 %v125
  %v329 = vpop.f32.mrf.mxu0
  %v330 = vadd.f32 %v63, %v329
  %v331 = vpop.f32.mrf.mxu0
  %v332 = vpop.f32.mrf.mxu0
  %v333 = vadd.f32 %v63, %v332
  %v334 = vpop.f32.mrf.mxu0
  %335 = vmatprep.mubr.bf16.mxu0 %v241
  %336 = vmatmul.mubr.bf16.gmra.mxu0 %v127
  %v337 = vpop.f32.mrf.mxu0
  %v338 = vadd.f32 %v63, %v337
  %v339 = vpop.f32.mrf.mxu0
  %v340 = vpop.f32.mrf.mxu0
  %v341 = vadd.f32 %v63, %v340
  %v342 = vpop.f32.mrf.mxu0
  %343 = vdwg.mxu0
  %v344 = vmax.f32 %v282, 0.0
  %v345 = vmax.f32 %v285, 0.0
  %v346 = vmax.f32 %v290, 0.0
  %v347 = vmax.f32 %v293, 0.0
  %v348 = vmax.f32 %v298, 0.0
  %v349 = vmax.f32 %v301, 0.0
  %v350 = vmax.f32 %v306, 0.0
  %v351 = vmax.f32 %v309, 0.0
  %v352 = vmax.f32 %v314, 0.0
  %v353 = vmax.f32 %v317, 0.0
  %v354 = vmax.f32 %v322, 0.0
  %v355 = vmax.f32 %v325, 0.0
  %v356 = vmax.f32 %v330, 0.0
  %v357 = vmax.f32 %v333, 0.0
  %v358 = vmax.f32 %v338, 0.0
  %v359 = vmax.f32 %v341, 0.0
  %v360 = vpack.c.bf16 %v345, %v344
  %v361 = vpack.c.bf16 %v347, %v346
  %v362 = vpack.c.bf16 %v349, %v348
  %v363 = vpack.c.bf16 %v351, %v350
  %v364 = vpack.c.bf16 %v353, %v352
  %v365 = vpack.c.bf16 %v355, %v354
  %v366 = vpack.c.bf16 %v357, %v356
  %v367 = vpack.c.bf16 %v359, %v358
  %v376 = vunpack.c.l.b16 %v360
  %v377 = vunpack.c.h.b16 %v360
  %v378 = vunpack.c.l.b16 %v361
  %v379 = vunpack.c.h.b16 %v361
  %v380 = vunpack.c.l.b16 %v362
  %v381 = vunpack.c.h.b16 %v362
  %v382 = vunpack.c.l.b16 %v363
  %v383 = vunpack.c.h.b16 %v363
  %v384 = vunpack.c.l.b16 %v364
  %v385 = vunpack.c.h.b16 %v364
  %v386 = vunpack.c.l.b16 %v365
  %v387 = vunpack.c.h.b16 %v365
  %v388 = vunpack.c.l.b16 %v366
  %v389 = vunpack.c.h.b16 %v366
  %v390 = vunpack.c.l.b16 %v367
  %v391 = vunpack.c.h.b16 %v367
  %v392 = vpack.c.b16 %v376, %v376
  %v393 = vpack.c.b16 %v377, %v377
  %v394 = vpack.c.b16 %v378, %v378
  %v395 = vpack.c.b16 %v379, %v379
  %v396 = vpack.c.b16 %v380, %v380
  %v397 = vpack.c.b16 %v381, %v381
  %v398 = vpack.c.b16 %v382, %v382
  %v399 = vpack.c.b16 %v383, %v383
  %v400 = vpack.c.b16 %v384, %v384
  %v401 = vpack.c.b16 %v385, %v385
  %v402 = vpack.c.b16 %v386, %v386
  %v403 = vpack.c.b16 %v387, %v387
  %v404 = vpack.c.b16 %v388, %v388
  %v405 = vpack.c.b16 %v389, %v389
  %v406 = vpack.c.b16 %v390, %v390
  %v407 = vpack.c.b16 %v391, %v391
  %vm424 = vcmask 125952
  %425 = vst.msk [vmem:[%s3] sm:$0xf] %vm424, %v392
  %426 = vst.msk [vmem:[%s3 + $0x4] sm:$0xf] %vm424, %v393
  %427 = vst.msk [vmem:[%s3 + $0x8] sm:$0xf] %vm424, %v394
  %428 = vst.msk [vmem:[%s3 + $0xc] sm:$0xf] %vm424, %v395
  %429 = vst.msk [vmem:[%s3 + $0x10] sm:$0xf] %vm424, %v396
  %430 = vst.msk [vmem:[%s3 + $0x14] sm:$0xf] %vm424, %v397
  %431 = vst.msk [vmem:[%s3 + $0x18] sm:$0xf] %vm424, %v398
  %432 = vst.msk [vmem:[%s3 + $0x1c] sm:$0xf] %vm424, %v399
  %433 = vst.msk [vmem:[%s3 + $0x20] sm:$0xf] %vm424, %v400
  %434 = vst.msk [vmem:[%s3 + $0x24] sm:$0xf] %vm424, %v401
  %435 = vst.msk [vmem:[%s3 + $0x28] sm:$0xf] %vm424, %v402
  %436 = vst.msk [vmem:[%s3 + $0x2c] sm:$0xf] %vm424, %v403
  %437 = vst.msk [vmem:[%s3 + $0x30] sm:$0xf] %vm424, %v404
  %438 = vst.msk [vmem:[%s3 + $0x34] sm:$0xf] %vm424, %v405
  %439 = vst.msk [vmem:[%s3 + $0x38] sm:$0xf] %vm424, %v406
  %440 = vst.msk [vmem:[%s3 + $0x3c] sm:$0xf] %vm424, %v407
  // Predicated region
  $region14: #{mcahg2_forward.8} parent=0 // pred_check
    _
  $region15: #{mcahg2_forward.8} parent=0 // pred_check_branch
    %442 = sbr.rel (0) target = $region17
  $region16: #{mcahg2_forward.8} parent=0 // pred_region
    _
  $region17: #{mcahg2_forward.8} parent=0 // pred_fallthru
    _
  // Predicated region
  $region18: #{mcahg2_forward.8} parent=0 // pred_check
    _
  $region19: #{mcahg2_forward.8} parent=0 // pred_check_branch
    %444 = sbr.rel (0) target = $region21
  $region20: #{mcahg2_forward.8} parent=0 // pred_region
    _
  $region21: #{mcahg2_forward.8} parent=0 // pred_fallthru
    _

// kernel: mcahg2_forward.9
$region0: #{mcahg2_forward.9}
  #allocation0 [shape = 'u32[]', space=smem, size = 0x4, offset = 0x4, fixed_abs, tag = 'smem constant byte address 0x4 - core index']
  #allocation1 [shape = 'u32[144,128]{1,0:T(1,128)}', space=vmem, size = 0x12000, scoped, tag = 'internal scratch']
  %s0 = inlined_call_operand.vmem [shape: bf16[128,432], index: 0, kind: input, shape index: {}]
  %s1 = inlined_call_operand.vmem [shape: bf16[432,16], index: 1, kind: input, shape index: {}]
  %s2 = inlined_call_operand.vmem [shape: f32[1,16], index: 2, kind: input, shape index: {}]
  %s3 = inlined_call_operand.vmem [shape: bf16[128,16], index: 3, kind: output, shape index: {}]
  %s4 = sld [smem:[#allocation0]]
  $region22: #{mcahg2_forward.9} parent=0
    _
  %s6 = ssub.s32 1, %s4
  %s7 = scalar_select 0, %s6, %s4
  // Predicated region
  $region2: #{mcahg2_forward.9} parent=0 // pred_check
    _
  $region3: #{mcahg2_forward.9} parent=0 // pred_check_branch
    %9 = sbr.rel (0) target = $region5
  $region4: #{mcahg2_forward.9} parent=0 // pred_region
    _
  $region5: #{mcahg2_forward.9} parent=0 // pred_fallthru
    _
  // Predicated region
  $region6: #{mcahg2_forward.9} parent=0 // pred_check
    _
  $region7: #{mcahg2_forward.9} parent=0 // pred_check_branch
    %11 = sbr.rel (0) target = $region9
  $region8: #{mcahg2_forward.9} parent=0 // pred_region
    _
  $region9: #{mcahg2_forward.9} parent=0 // pred_fallthru
    _
  // Predicated region
  $region10: #{mcahg2_forward.9} parent=0 // pred_check
    _
  $region11: #{mcahg2_forward.9} parent=0 // pred_check_branch
    %13 = sbr.rel (0) target = $region13
  $region12: #{mcahg2_forward.9} parent=0 // pred_region
    _
  $region13: #{mcahg2_forward.9} parent=0 // pred_fallthru
    _
  %v15 = vld [vmem:[%s0] sm:$0xff]
  %v16 = vld [vmem:[%s0 + $0x8] sm:$0xff]
  %v17 = vld [vmem:[%s0 + $0x10] sm:$0xff]
  %v18 = vld [vmem:[%s0 + $0x18] sm:$0xff]
  %v19 = vld [vmem:[%s0 + $0x20] sm:$0xff]
  %v20 = vld [vmem:[%s0 + $0x28] sm:$0xff]
  %v21 = vld [vmem:[%s0 + $0x30] sm:$0xff]
  %v22 = vld [vmem:[%s0 + $0x38] sm:$0xff]
  %v23 = vld [vmem:[%s0 + $0x40] sm:$0xff]
  %v24 = vld [vmem:[%s0 + $0x48] sm:$0xff]
  %v25 = vld [vmem:[%s0 + $0x50] sm:$0xff]
  %v26 = vld [vmem:[%s0 + $0x58] sm:$0xff]
  %v27 = vld [vmem:[%s0 + $0x60] sm:$0xff]
  %v28 = vld [vmem:[%s0 + $0x68] sm:$0xff]
  %v29 = vld [vmem:[%s0 + $0x70] sm:$0xff]
  %v30 = vld [vmem:[%s0 + $0x78] sm:$0xff]
  %v31 = vld [vmem:[%s0 + $0x80] sm:$0xff]
  %v32 = vld [vmem:[%s0 + $0x88] sm:$0xff]
  %v33 = vld [vmem:[%s0 + $0x90] sm:$0xff]
  %v34 = vld [vmem:[%s0 + $0x98] sm:$0xff]
  %v35 = vld [vmem:[%s0 + $0xa0] sm:$0xff]
  %v36 = vld [vmem:[%s0 + $0xa8] sm:$0xff]
  %v37 = vld [vmem:[%s0 + $0xb0] sm:$0xff]
  %v38 = vld [vmem:[%s0 + $0xb8] sm:$0xff]
  %v39 = vld [vmem:[%s0 + $0xc0] sm:$0xff]
  %v40 = vld [vmem:[%s0 + $0xc8] sm:$0xff]
  %v41 = vld [vmem:[%s0 + $0xd0] sm:$0xff]
  %v42 = vld [vmem:[%s0 + $0xd8] sm:$0xff]
  %v43 = vld [vmem:[%s0 + $0xe0] sm:$0xff]
  %v44 = vld [vmem:[%s0 + $0xe8] sm:$0xff]
  %v45 = vld [vmem:[%s0 + $0xf0] sm:$0xff]
  %v46 = vld [vmem:[%s0 + $0xf8] sm:$0xff]
  %v47 = vld [vmem:[%s1] sm:$0xf]
  %v48 = vld [vmem:[%s1 + $0x4] sm:$0xf]
  %v49 = vld [vmem:[%s1 + $0x8] sm:$0xf]
  %v50 = vld [vmem:[%s1 + $0xc] sm:$0xf]
  %v51 = vld [vmem:[%s1 + $0x10] sm:$0xf]
  %v52 = vld [vmem:[%s1 + $0x14] sm:$0xf]
  %v53 = vld [vmem:[%s1 + $0x18] sm:$0xf]
  %v54 = vld [vmem:[%s1 + $0x1c] sm:$0xf]
  %v55 = vld [vmem:[%s1 + $0x20] sm:$0xf]
  %v56 = vld [vmem:[%s1 + $0x24] sm:$0xf]
  %v57 = vld [vmem:[%s1 + $0x28] sm:$0xf]
  %v58 = vld [vmem:[%s1 + $0x2c] sm:$0xf]
  %v59 = vld [vmem:[%s1 + $0x30] sm:$0xf]
  %v60 = vld [vmem:[%s1 + $0x34] sm:$0xf]
  %v61 = vld [vmem:[%s1 + $0x38] sm:$0xf]
  %v62 = vld [vmem:[%s1 + $0x3c] sm:$0xf]
  %v63 = vld [vmem:[%s1 + $0x40] sm:$0xf]
  %v64 = vld [vmem:[%s1 + $0x44] sm:$0xf]
  %v65 = vld [vmem:[%s1 + $0x48] sm:$0xf]
  %v66 = vld [vmem:[%s1 + $0x4c] sm:$0xf]
  %v67 = vld [vmem:[%s1 + $0x50] sm:$0xf]
  %v68 = vld [vmem:[%s1 + $0x54] sm:$0xf]
  %v69 = vld [vmem:[%s1 + $0x58] sm:$0xf]
  %v70 = vld [vmem:[%s1 + $0x5c] sm:$0xf]
  %v71 = vld [vmem:[%s1 + $0x60] sm:$0xf]
  %v72 = vld [vmem:[%s1 + $0x64] sm:$0xf]
  %v73 = vld [vmem:[%s1 + $0x68] sm:$0xf]
  %v74 = vld [vmem:[%s1 + $0x6c] sm:$0xf]
  %v75 = vld [vmem:[%s1 + $0x70] sm:$0xf]
  %v76 = vld [vmem:[%s1 + $0x74] sm:$0xf]
  %v77 = vld [vmem:[%s1 + $0x78] sm:$0xf]
  %v78 = vld [vmem:[%s1 + $0x7c] sm:$0xf]
  %v79 = vld [vmem:[%s1 + $0x80] sm:$0xf]
  %v80 = vld [vmem:[%s1 + $0x84] sm:$0xf]
  %v81 = vld [vmem:[%s1 + $0x88] sm:$0xf]
  %v82 = vld [vmem:[%s1 + $0x8c] sm:$0xf]
  %v83 = vld [vmem:[%s1 + $0x90] sm:$0xf]
  %v84 = vld [vmem:[%s1 + $0x94] sm:$0xf]
  %v85 = vld [vmem:[%s1 + $0x98] sm:$0xf]
  %v86 = vld [vmem:[%s1 + $0x9c] sm:$0xf]
  %v87 = vld [vmem:[%s1 + $0xa0] sm:$0xf]
  %v88 = vld [vmem:[%s1 + $0xa4] sm:$0xf]
  %v89 = vld [vmem:[%s1 + $0xa8] sm:$0xf]
  %v90 = vld [vmem:[%s1 + $0xac] sm:$0xf]
  %v91 = vld [vmem:[%s1 + $0xb0] sm:$0xf]
  %v92 = vld [vmem:[%s1 + $0xb4] sm:$0xf]
  %v93 = vld [vmem:[%s1 + $0xb8] sm:$0xf]
  %v94 = vld [vmem:[%s1 + $0xbc] sm:$0xf]
  %v95 = vld [vmem:[%s1 + $0xc0] sm:$0xf]
  %v96 = vld [vmem:[%s1 + $0xc4] sm:$0xf]
  %v97 = vld [vmem:[%s1 + $0xc8] sm:$0xf]
  %v98 = vld [vmem:[%s1 + $0xcc] sm:$0xf]
  %v99 = vld [vmem:[%s1 + $0xd0] sm:$0xf]
  %v100 = vld [vmem:[%s1 + $0xd4] sm:$0xf]
  %v101 = vld [vmem:[%s2] sm:$0x1]
  %v103 = vlaneseq
  %v104 = vshrl.u32 %v103, 7
  %v105 = vsub.s32 0, %v104
  %v106 = vrot.slane %v101, %v105
  %v140 = vunpack.c.l.b16 %v15
  %v141 = vunpack.c.h.b16 %v15
  %v142 = vunpack.c.l.b16 %v16
  %v143 = vunpack.c.h.b16 %v16
  %v144 = vunpack.c.l.b16 %v17
  %v145 = vunpack.c.h.b16 %v17
  %v146 = vunpack.c.l.b16 %v18
  %v147 = vunpack.c.h.b16 %v18
  %v148 = vunpack.c.l.b16 %v19
  %v149 = vunpack.c.h.b16 %v19
  %v150 = vunpack.c.l.b16 %v20
  %v151 = vunpack.c.h.b16 %v20
  %v152 = vunpack.c.l.b16 %v21
  %v153 = vunpack.c.h.b16 %v21
  %v154 = vunpack.c.l.b16 %v22
  %v155 = vunpack.c.h.b16 %v22
  %v156 = vunpack.c.l.b16 %v23
  %v157 = vunpack.c.h.b16 %v23
  %v158 = vunpack.c.l.b16 %v24
  %v159 = vunpack.c.h.b16 %v24
  %v160 = vunpack.c.l.b16 %v25
  %v161 = vunpack.c.h.b16 %v25
  %v162 = vunpack.c.l.b16 %v26
  %v163 = vunpack.c.h.b16 %v26
  %v164 = vunpack.c.l.b16 %v27
  %v165 = vunpack.c.h.b16 %v27
  %v166 = vunpack.c.l.b16 %v28
  %v167 = vunpack.c.h.b16 %v28
  %v168 = vunpack.c.l.b16 %v29
  %v169 = vunpack.c.h.b16 %v29
  %v170 = vunpack.c.l.b16 %v30
  %v171 = vunpack.c.h.b16 %v30
  %v172 = vunpack.c.l.b16 %v31
  %v173 = vunpack.c.h.b16 %v31
  %v174 = vunpack.c.l.b16 %v32
  %v175 = vunpack.c.h.b16 %v32
  %v176 = vunpack.c.l.b16 %v33
  %v177 = vunpack.c.h.b16 %v33
  %v178 = vunpack.c.l.b16 %v34
  %v179 = vunpack.c.h.b16 %v34
  %v180 = vunpack.c.l.b16 %v35
  %v181 = vunpack.c.h.b16 %v35
  %v182 = vunpack.c.l.b16 %v36
  %v183 = vunpack.c.h.b16 %v36
  %v184 = vunpack.c.l.b16 %v37
  %v185 = vunpack.c.h.b16 %v37
  %v186 = vunpack.c.l.b16 %v38
  %v187 = vunpack.c.h.b16 %v38
  %v188 = vunpack.c.l.b16 %v39
  %v189 = vunpack.c.h.b16 %v39
  %v190 = vunpack.c.l.b16 %v40
  %v191 = vunpack.c.h.b16 %v40
  %v192 = vunpack.c.l.b16 %v41
  %v193 = vunpack.c.h.b16 %v41
  %v194 = vunpack.c.l.b16 %v42
  %v195 = vunpack.c.h.b16 %v42
  %v196 = vunpack.c.l.b16 %v43
  %v197 = vunpack.c.h.b16 %v43
  %v198 = vunpack.c.l.b16 %v44
  %v199 = vunpack.c.h.b16 %v44
  %v200 = vunpack.c.l.b16 %v45
  %v201 = vunpack.c.h.b16 %v45
  %v202 = vunpack.c.l.b16 %v46
  %v203 = vunpack.c.h.b16 %v46
  %v204 = vpack.c.b16 %v144, %v140
  %v205 = vpack.c.b16 %v145, %v141
  %v206 = vpack.c.b16 %v146, %v142
  %v207 = vpack.c.b16 %v147, %v143
  %v208 = vpack.c.b16 %v152, %v148
  %v209 = vpack.c.b16 %v153, %v149
  %v210 = vpack.c.b16 %v154, %v150
  %v211 = vpack.c.b16 %v155, %v151
  %v212 = vpack.c.b16 %v160, %v156
  %v213 = vpack.c.b16 %v161, %v157
  %v214 = vpack.c.b16 %v162, %v158
  %v215 = vpack.c.b16 %v163, %v159
  %v216 = vpack.c.b16 %v168, %v164
  %v217 = vpack.c.b16 %v169, %v165
  %v218 = vpack.c.b16 %v170, %v166
  %v219 = vpack.c.b16 %v171, %v167
  %v220 = vpack.c.b16 %v176, %v172
  %v221 = vpack.c.b16 %v177, %v173
  %v222 = vpack.c.b16 %v178, %v174
  %v223 = vpack.c.b16 %v179, %v175
  %v224 = vpack.c.b16 %v184, %v180
  %v225 = vpack.c.b16 %v185, %v181
  %v226 = vpack.c.b16 %v186, %v182
  %v227 = vpack.c.b16 %v187, %v183
  %v228 = vpack.c.b16 %v192, %v188
  %v229 = vpack.c.b16 %v193, %v189
  %v230 = vpack.c.b16 %v194, %v190
  %v231 = vpack.c.b16 %v195, %v191
  %v232 = vpack.c.b16 %v200, %v196
  %v233 = vpack.c.b16 %v201, %v197
  %v234 = vpack.c.b16 %v202, %v198
  %v235 = vpack.c.b16 %v203, %v199
  %v314 = vunpack.c.l.b16 %v47
  %v315 = vunpack.c.l.b16 %v48
  %v316 = vunpack.c.l.b16 %v49
  %v317 = vunpack.c.l.b16 %v50
  %v318 = vunpack.c.l.b16 %v51
  %v319 = vunpack.c.l.b16 %v52
  %v320 = vunpack.c.l.b16 %v53
  %v321 = vunpack.c.l.b16 %v54
  %v322 = vunpack.c.l.b16 %v55
  %v323 = vunpack.c.l.b16 %v56
  %v324 = vunpack.c.l.b16 %v57
  %v325 = vunpack.c.l.b16 %v58
  %v326 = vunpack.c.l.b16 %v59
  %v327 = vunpack.c.l.b16 %v60
  %v328 = vunpack.c.l.b16 %v61
  %v329 = vunpack.c.l.b16 %v62
  %v330 = vunpack.c.l.b16 %v63
  %v331 = vunpack.c.l.b16 %v64
  %v332 = vunpack.c.l.b16 %v65
  %v333 = vunpack.c.l.b16 %v66
  %v334 = vunpack.c.l.b16 %v67
  %v335 = vunpack.c.l.b16 %v68
  %v336 = vunpack.c.l.b16 %v69
  %v337 = vunpack.c.l.b16 %v70
  %v338 = vunpack.c.l.b16 %v71
  %v339 = vunpack.c.l.b16 %v72
  %v340 = vunpack.c.l.b16 %v73
  %v341 = vunpack.c.l.b16 %v74
  %v342 = vunpack.c.l.b16 %v75
  %v343 = vunpack.c.l.b16 %v76
  %v344 = vunpack.c.l.b16 %v77
  %v345 = vunpack.c.l.b16 %v78
  %v346 = vunpack.c.l.b16 %v79
  %v347 = vunpack.c.l.b16 %v80
  %v348 = vunpack.c.l.b16 %v81
  %v349 = vunpack.c.l.b16 %v82
  %v350 = vunpack.c.l.b16 %v83
  %v351 = vunpack.c.l.b16 %v84
  %v352 = vunpack.c.l.b16 %v85
  %v353 = vunpack.c.l.b16 %v86
  %v354 = vunpack.c.l.b16 %v87
  %v355 = vunpack.c.l.b16 %v88
  %v356 = vunpack.c.l.b16 %v89
  %v357 = vunpack.c.l.b16 %v90
  %v358 = vunpack.c.l.b16 %v91
  %v359 = vunpack.c.l.b16 %v92
  %v360 = vunpack.c.l.b16 %v93
  %v361 = vunpack.c.l.b16 %v94
  %v362 = vunpack.c.l.b16 %v95
  %v363 = vunpack.c.l.b16 %v96
  %v364 = vunpack.c.l.b16 %v97
  %v365 = vunpack.c.l.b16 %v98
  %v366 = vunpack.c.l.b16 %v99
  %v367 = vunpack.c.l.b16 %v100
  %v368 = vpack.c.b16 %v315, %v314
  %v369 = vpack.c.b16 %v317, %v316
  %v370 = vpack.c.b16 %v319, %v318
  %v371 = vpack.c.b16 %v321, %v320
  %v372 = vpack.c.b16 %v323, %v322
  %v373 = vpack.c.b16 %v325, %v324
  %v374 = vpack.c.b16 %v327, %v326
  %v375 = vpack.c.b16 %v329, %v328
  %v376 = vpack.c.b16 %v331, %v330
  %v377 = vpack.c.b16 %v333, %v332
  %v378 = vpack.c.b16 %v335, %v334
  %v379 = vpack.c.b16 %v337, %v336
  %v380 = vpack.c.b16 %v339, %v338
  %v381 = vpack.c.b16 %v341, %v340
  %v382 = vpack.c.b16 %v343, %v342
  %v383 = vpack.c.b16 %v345, %v344
  %v384 = vpack.c.b16 %v347, %v346
  %v385 = vpack.c.b16 %v349, %v348
  %v386 = vpack.c.b16 %v351, %v350
  %v387 = vpack.c.b16 %v353, %v352
  %v388 = vpack.c.b16 %v355, %v354
  %v389 = vpack.c.b16 %v357, %v356
  %v390 = vpack.c.b16 %v359, %v358
  %v391 = vpack.c.b16 %v361, %v360
  %v392 = vpack.c.b16 %v363, %v362
  %v393 = vpack.c.b16 %v365, %v364
  %v394 = vpack.c.b16 %v367, %v366
  %vm422 = vcmask 392192
  %v424 = vsel %vm422, %v207, 0
  %v427 = vsel %vm422, %v211, 0
  %v430 = vsel %vm422, %v215, 0
  %v433 = vsel %vm422, %v219, 0
  %v436 = vsel %vm422, %v223, 0
  %v439 = vsel %vm422, %v227, 0
  %v442 = vsel %vm422, %v231, 0
  %v445 = vsel %vm422, %v235, 0
  %447 = vmatprep.subr.bf16.mxu0 0
  %448 = vmatpush1.bf16.msra.mxu0 %v375
  %449 = vmatprep.subr.bf16.mxu0 0
  %450 = vmatpush1.bf16.msra.mxu0 %v374
  %451 = vmatprep.subr.bf16.mxu0 0
  %452 = vmatpush1.bf16.msra.mxu0 %v373
  %453 = vmatprep.subr.bf16.mxu0 0
  %454 = vmatpush1.bf16.msra.mxu0 %v372
  %455 = vmatprep.subr.bf16.mxu0 0
  %456 = vmatpush1.bf16.msra.mxu0 %v371
  %457 = vmatprep.subr.bf16.mxu0 0
  %458 = vmatpush1.bf16.msra.mxu0 %v370
  %459 = vmatprep.subr.bf16.mxu0 0
  %460 = vmatpush1.bf16.msra.mxu0 %v369
  %461 = vmatprep.subr.bf16.mxu0 0
  %462 = vmatpush1.bf16.msra.mxu0 %v368
  %463 = vmatprep.subr.bf16.mxu0 0
  %464 = vmatpush2.bf16.msra.mxu0 %v383
  %465 = vmatprep.subr.bf16.mxu0 0
  %466 = vmatpush2.bf16.msra.mxu0 %v382
  %467 = vmatprep.subr.bf16.mxu0 0
  %468 = vmatpush2.bf16.msra.mxu0 %v381
  %469 = vmatprep.subr.bf16.mxu0 0
  %470 = vmatpush2.bf16.msra.mxu0 %v380
  %471 = vmatprep.subr.bf16.mxu0 0
  %472 = vmatpush2.bf16.msra.mxu0 %v379
  %473 = vmatprep.subr.bf16.mxu0 0
  %474 = vmatpush2.bf16.msra.mxu0 %v378
  %475 = vmatprep.subr.bf16.mxu0 0
  %476 = vmatpush2.bf16.msra.mxu0 %v377
  %477 = vmatprep.subr.bf16.mxu0 0
  %478 = vmatpush2.bf16.msra.mxu0 %v376
  %479 = vmatprep.mubr.bf16.mxu0 %v205
  %480 = vmatmul.mubr.bf16.gmra.mxu0 %v204
  %v481 = vpop.f32.mrf.mxu0
  %v482 = vadd.f32 %v106, %v481
  %v483 = vpop.f32.mrf.mxu0
  %v484 = vpop.f32.mrf.mxu0
  %v485 = vadd.f32 %v106, %v484
  %v486 = vpop.f32.mrf.mxu0
  %487 = vmatprep.mubr.bf16.mxu0 %v209
  %488 = vmatmul.mubr.bf16.gmra.mxu0 %v208
  %v489 = vpop.f32.mrf.mxu0
  %v490 = vadd.f32 %v106, %v489
  %v491 = vpop.f32.mrf.mxu0
  %v492 = vpop.f32.mrf.mxu0
  %v493 = vadd.f32 %v106, %v492
  %v494 = vpop.f32.mrf.mxu0
  %495 = vmatprep.mubr.bf16.mxu0 %v213
  %496 = vmatmul.mubr.bf16.gmra.mxu0 %v212
  %v497 = vpop.f32.mrf.mxu0
  %v498 = vadd.f32 %v106, %v497
  %v499 = vpop.f32.mrf.mxu0
  %v500 = vpop.f32.mrf.mxu0
  %v501 = vadd.f32 %v106, %v500
  %v502 = vpop.f32.mrf.mxu0
  %503 = vmatprep.mubr.bf16.mxu0 %v217
  %504 = vmatmul.mubr.bf16.gmra.mxu0 %v216
  %v505 = vpop.f32.mrf.mxu0
  %v506 = vadd.f32 %v106, %v505
  %v507 = vpop.f32.mrf.mxu0
  %v508 = vpop.f32.mrf.mxu0
  %v509 = vadd.f32 %v106, %v508
  %v510 = vpop.f32.mrf.mxu0
  %511 = vmatprep.mubr.bf16.mxu0 %v221
  %512 = vmatmul.mubr.bf16.gmra.mxu0 %v220
  %v513 = vpop.f32.mrf.mxu0
  %v514 = vadd.f32 %v106, %v513
  %v515 = vpop.f32.mrf.mxu0
  %v516 = vpop.f32.mrf.mxu0
  %v517 = vadd.f32 %v106, %v516
  %v518 = vpop.f32.mrf.mxu0
  %519 = vmatprep.mubr.bf16.mxu0 %v225
  %520 = vmatmul.mubr.bf16.gmra.mxu0 %v224
  %v521 = vpop.f32.mrf.mxu0
  %v522 = vadd.f32 %v106, %v521
  %v523 = vpop.f32.mrf.mxu0
  %v524 = vpop.f32.mrf.mxu0
  %v525 = vadd.f32 %v106, %v524
  %v526 = vpop.f32.mrf.mxu0
  %527 = vmatprep.mubr.bf16.mxu0 %v229
  %528 = vmatmul.mubr.bf16.gmra.mxu0 %v228
  %v529 = vpop.f32.mrf.mxu0
  %v530 = vadd.f32 %v106, %v529
  %v531 = vpop.f32.mrf.mxu0
  %v532 = vpop.f32.mrf.mxu0
  %v533 = vadd.f32 %v106, %v532
  %v534 = vpop.f32.mrf.mxu0
  %535 = vmatprep.mubr.bf16.mxu0 %v233
  %536 = vmatmul.mubr.bf16.gmra.mxu0 %v232
  %v537 = vpop.f32.mrf.mxu0
  %v538 = vadd.f32 %v106, %v537
  %v539 = vpop.f32.mrf.mxu0
  %v540 = vpop.f32.mrf.mxu0
  %v541 = vadd.f32 %v106, %v540
  %v542 = vpop.f32.mrf.mxu0
  %543 = vdwg.mxu0
  %544 = vmatprep.subr.bf16.mxu0 0
  %545 = vmatpush1.bf16.msra.mxu0 %v391
  %546 = vmatprep.subr.bf16.mxu0 0
  %547 = vmatpush1.bf16.msra.mxu0 %v390
  %548 = vmatprep.subr.bf16.mxu0 0
  %549 = vmatpush1.bf16.msra.mxu0 %v389
  %550 = vmatprep.subr.bf16.mxu0 0
  %551 = vmatpush1.bf16.msra.mxu0 %v388
  %552 = vmatprep.subr.bf16.mxu0 0
  %553 = vmatpush1.bf16.msra.mxu0 %v387
  %554 = vmatprep.subr.bf16.mxu0 0
  %555 = vmatpush1.bf16.msra.mxu0 %v386
  %556 = vmatprep.subr.bf16.mxu0 0
  %557 = vmatpush1.bf16.msra.mxu0 %v385
  %558 = vmatprep.subr.bf16.mxu0 0
  %559 = vmatpush1.bf16.msra.mxu0 %v384
  %560 = vmatprep.subr.bf16.mxu0 0
  %561 = vmatpush2.bf16.msra.mxu0 0
  %562 = vmatprep.subr.bf16.mxu0 0
  %563 = vmatpush2.bf16.msra.mxu0 0
  %564 = vmatprep.subr.bf16.mxu0 0
  %565 = vmatpush2.bf16.msra.mxu0 0
  %566 = vmatprep.subr.bf16.mxu0 0
  %567 = vmatpush2.bf16.msra.mxu0 0
  %568 = vmatprep.subr.bf16.mxu0 0
  %569 = vmatpush2.bf16.msra.mxu0 0
  %570 = vmatprep.subr.bf16.mxu0 0
  %571 = vmatpush2.bf16.msra.mxu0 %v394
  %572 = vmatprep.subr.bf16.mxu0 0
  %573 = vmatpush2.bf16.msra.mxu0 %v393
  %574 = vmatprep.subr.bf16.mxu0 0
  %575 = vmatpush2.bf16.msra.mxu0 %v392
  %576 = vmatprep.mubr.bf16.mxu0 %v424
  %577 = vmatmul.mubr.bf16.gmra.mxu0 %v206
  %v578 = vpop.f32.mrf.mxu0
  %v579 = vadd.f32 %v482, %v578
  %v580 = vpop.f32.mrf.mxu0
  %v581 = vpop.f32.mrf.mxu0
  %v582 = vadd.f32 %v485, %v581
  %v583 = vpop.f32.mrf.mxu0
  %584 = vmatprep.mubr.bf16.mxu0 %v427
  %585 = vmatmul.mubr.bf16.gmra.mxu0 %v210
  %v586 = vpop.f32.mrf.mxu0
  %v587 = vadd.f32 %v490, %v586
  %v588 = vpop.f32.mrf.mxu0
  %v589 = vpop.f32.mrf.mxu0
  %v590 = vadd.f32 %v493, %v589
  %v591 = vpop.f32.mrf.mxu0
  %592 = vmatprep.mubr.bf16.mxu0 %v430
  %593 = vmatmul.mubr.bf16.gmra.mxu0 %v214
  %v594 = vpop.f32.mrf.mxu0
  %v595 = vadd.f32 %v498, %v594
  %v596 = vpop.f32.mrf.mxu0
  %v597 = vpop.f32.mrf.mxu0
  %v598 = vadd.f32 %v501, %v597
  %v599 = vpop.f32.mrf.mxu0
  %600 = vmatprep.mubr.bf16.mxu0 %v433
  %601 = vmatmul.mubr.bf16.gmra.mxu0 %v218
  %v602 = vpop.f32.mrf.mxu0
  %v603 = vadd.f32 %v506, %v602
  %v604 = vpop.f32.mrf.mxu0
  %v605 = vpop.f32.mrf.mxu0
  %v606 = vadd.f32 %v509, %v605
  %v607 = vpop.f32.mrf.mxu0
  %608 = vmatprep.mubr.bf16.mxu0 %v436
  %609 = vmatmul.mubr.bf16.gmra.mxu0 %v222
  %v610 = vpop.f32.mrf.mxu0
  %v611 = vadd.f32 %v514, %v610
  %v612 = vpop.f32.mrf.mxu0
  %v613 = vpop.f32.mrf.mxu0
  %v614 = vadd.f32 %v517, %v613
  %v615 = vpop.f32.mrf.mxu0
  %616 = vmatprep.mubr.bf16.mxu0 %v439
  %617 = vmatmul.mubr.bf16.gmra.mxu0 %v226
  %v618 = vpop.f32.mrf.mxu0
  %v619 = vadd.f32 %v522, %v618
  %v620 = vpop.f32.mrf.mxu0
  %v621 = vpop.f32.mrf.mxu0
  %v622 = vadd.f32 %v525, %v621
  %v623 = vpop.f32.mrf.mxu0
  %624 = vmatprep.mubr.bf16.mxu0 %v442
  %625 = vmatmul.mubr.bf16.gmra.mxu0 %v230
  %v626 = vpop.f32.mrf.mxu0
  %v627 = vadd.f32 %v530, %v626
  %v628 = vpop.f32.mrf.mxu0
  %v629 = vpop.f32.mrf.mxu0
  %v630 = vadd.f32 %v533, %v629
  %v631 = vpop.f32.mrf.mxu0
  %632 = vmatprep.mubr.bf16.mxu0 %v445
  %633 = vmatmul.mubr.bf16.gmra.mxu0 %v234
  %v634 = vpop.f32.mrf.mxu0
  %v635 = vadd.f32 %v538, %v634
  %v636 = vpop.f32.mrf.mxu0
  %v637 = vpop.f32.mrf.mxu0
  %v638 = vadd.f32 %v541, %v637
  %v639 = vpop.f32.mrf.mxu0
  %640 = vdwg.mxu0
  %v641 = vmax.f32 %v579, 0.0
  %v642 = vmax.f32 %v582, 0.0
  %v643 = vmax.f32 %v587, 0.0
  %v644 = vmax.f32 %v590, 0.0
  %v645 = vmax.f32 %v595, 0.0
  %v646 = vmax.f32 %v598, 0.0
  %v647 = vmax.f32 %v603, 0.0
  %v648 = vmax.f32 %v606, 0.0
  %v649 = vmax.f32 %v611, 0.0
  %v650 = vmax.f32 %v614, 0.0
  %v651 = vmax.f32 %v619, 0.0
  %v652 = vmax.f32 %v622, 0.0
  %v653 = vmax.f32 %v627, 0.0
  %v654 = vmax.f32 %v630, 0.0
  %v655 = vmax.f32 %v635, 0.0
  %v656 = vmax.f32 %v638, 0.0
  %v657 = vpack.c.bf16 %v642, %v641
  %v658 = vpack.c.bf16 %v644, %v643
  %v659 = vpack.c.bf16 %v646, %v645
  %v660 = vpack.c.bf16 %v648, %v647
  %v661 = vpack.c.bf16 %v650, %v649
  %v662 = vpack.c.bf16 %v652, %v651
  %v663 = vpack.c.bf16 %v654, %v653
  %v664 = vpack.c.bf16 %v656, %v655
  %v673 = vunpack.c.l.b16 %v657
  %v674 = vunpack.c.h.b16 %v657
  %v675 = vunpack.c.l.b16 %v658
  %v676 = vunpack.c.h.b16 %v658
  %v677 = vunpack.c.l.b16 %v659
  %v678 = vunpack.c.h.b16 %v659
  %v679 = vunpack.c.l.b16 %v660
  %v680 = vunpack.c.h.b16 %v660
  %v681 = vunpack.c.l.b16 %v661
  %v682 = vunpack.c.h.b16 %v661
  %v683 = vunpack.c.l.b16 %v662
  %v684 = vunpack.c.h.b16 %v662
  %v685 = vunpack.c.l.b16 %v663
  %v686 = vunpack.c.h.b16 %v663
  %v687 = vunpack.c.l.b16 %v664
  %v688 = vunpack.c.h.b16 %v664
  %v689 = vpack.c.b16 %v673, %v673
  %v690 = vpack.c.b16 %v674, %v674
  %v691 = vpack.c.b16 %v675, %v675
  %v692 = vpack.c.b16 %v676, %v676
  %v693 = vpack.c.b16 %v677, %v677
  %v694 = vpack.c.b16 %v678, %v678
  %v695 = vpack.c.b16 %v679, %v679
  %v696 = vpack.c.b16 %v680, %v680
  %v697 = vpack.c.b16 %v681, %v681
  %v698 = vpack.c.b16 %v682, %v682
  %v699 = vpack.c.b16 %v683, %v683
  %v700 = vpack.c.b16 %v684, %v684
  %v701 = vpack.c.b16 %v685, %v685
  %v702 = vpack.c.b16 %v686, %v686
  %v703 = vpack.c.b16 %v687, %v687
  %v704 = vpack.c.b16 %v688, %v688
  %vm721 = vcmask 125952
  %722 = vst.msk [vmem:[%s3] sm:$0xf] %vm721, %v689
  %723 = vst.msk [vmem:[%s3 + $0x4] sm:$0xf] %vm721, %v690
  %724 = vst.msk [vmem:[%s3 + $0x8] sm:$0xf] %vm721, %v691
  %725 = vst.msk [vmem:[%s3 + $0xc] sm:$0xf] %vm721, %v692
  %726 = vst.msk [vmem:[%s3 + $0x10] sm:$0xf] %vm721, %v693
  %727 = vst.msk [vmem:[%s3 + $0x14] sm:$0xf] %vm721, %v694
  %728 = vst.msk [vmem:[%s3 + $0x18] sm:$0xf] %vm721, %v695
  %729 = vst.msk [vmem:[%s3 + $0x1c] sm:$0xf] %vm721, %v696
  %730 = vst.msk [vmem:[%s3 + $0x20] sm:$0xf] %vm721, %v697
  %731 = vst.msk [vmem:[%s3 + $0x24] sm:$0xf] %vm721, %v698
  %732 = vst.msk [vmem:[%s3 + $0x28] sm:$0xf] %vm721, %v699
  %733 = vst.msk [vmem:[%s3 + $0x2c] sm:$0xf] %vm721, %v700
  %734 = vst.msk [vmem:[%s3 + $0x30] sm:$0xf] %vm721, %v701
  %735 = vst.msk [vmem:[%s3 + $0x34] sm:$0xf] %vm721, %v702
  %736 = vst.msk [vmem:[%s3 + $0x38] sm:$0xf] %vm721, %v703
  %737 = vst.msk [vmem:[%s3 + $0x3c] sm:$0xf] %vm721, %v704
  // Predicated region
  $region14: #{mcahg2_forward.9} parent=0 // pred_check
    _
  $region15: #{mcahg2_forward.9} parent=0 // pred_check_branch
    %739 = sbr.rel (0) target = $region17
  $region16: #{mcahg2_forward.9} parent=0 // pred_region
    _
  $region17: #{mcahg2_forward.9} parent=0 // pred_fallthru
    _
  // Predicated region
  $region18: #{mcahg2_forward.9} parent=0 // pred_check
    _
  $region19: #{mcahg2_forward.9} parent=0 // pred_check_branch
    %741 = sbr.rel (0) target = $region21
  $region20: #{mcahg2_forward.9} parent=0 // pred_region
    _
  $region21: #{mcahg2_forward.9} parent=0 // pred_fallthru
    _

// kernel: tile.13
$region0: #{tile.13}
  #allocation0 [shape = 's32[1]{0}', space=sflag, size = 0x4, scoped, tag = 'scoped memory for tile.13']
  %s0 = inlined_call_operand.vmem [shape: f32[8], index: 0, kind: input, shape index: {}]
  %s1 = inlined_call_operand.vmem [shape: f32[8,8], index: 1, kind: output, shape index: {}]
  // Predicated region
  $region2: #{tile.13} parent=0 // pred_check
    _
  $region3: #{tile.13} parent=0 // pred_check_branch
    %3 = sbr.rel (0) target = $region5
  $region4: #{tile.13} parent=0 // pred_region
    _
  $region5: #{tile.13} parent=0 // pred_fallthru
    _
  %v4 = vld [vmem:[%s0] ss:$0 sm:$0xff]
  %5 = vst [vmem:[%s1] sm:$0xff] %v4

// kernel: tile.14
$region0: #{tile.14}
  %s0 = inlined_call_operand.vmem [shape: f32[8,8], index: 0, kind: input, shape index: {}]
  %s1 = inlined_call_operand.vmem [shape: f32[1,64], index: 1, kind: output, shape index: {}]
  $region1: #{tile.14} parent=0
    #allocation0 [shape = 'u8[4096]{0}', space=vmem, size = 0x1000, scoped, tag = 'scoped mem for output reshape']
    %v2 = vld [vmem:[%s0] sm:$0x1]
    %vm3 = vcmask 64512
    %4 = vst.msk [vmem:[#allocation0] sm:$0x1] %vm3, %v2
    %s5 = scalar_lea.vmem %s0, 7
    %v6 = vld [vmem:[%s5] sm:$0x1]
    %7 = vrot.lane.b32.xlu0 %v6, 56
    %v8 = vpop.permute.xlu0 %7
    %vm9 = vcmask 523712
    %10 = vst.msk [vmem:[#allocation0] sm:$0x1] %vm9, %v8
    %s11 = scalar_lea.vmem %s0, 6
    %v12 = vld [vmem:[%s11] sm:$0x1]
    %13 = vrot.lane.b32.xlu0 %v12, 48
    %v14 = vpop.permute.xlu0 %13
    %vm15 = vcmask 458112
    %16 = vst.msk [vmem:[#allocation0] sm:$0x1] %vm15, %v14
    %s17 = scalar_lea.vmem %s0, 5
    %v18 = vld [vmem:[%s17] sm:$0x1]
    %19 = vrot.lane.b32.xlu0 %v18, 40
    %v20 = vpop.permute.xlu0 %19
    %vm21 = vcmask 392512
    %22 = vst.msk [vmem:[#allocation0] sm:$0x1] %vm21, %v20
    %s23 = scalar_lea.vmem %s0, 4
    %v24 = vld [vmem:[%s23] sm:$0x1]
    %25 = vrot.lane.b32.xlu0 %v24, 32
    %v26 = vpop.permute.xlu0 %25
    %vm27 = vcmask 326912
    %28 = vst.msk [vmem:[#allocation0] sm:$0x1] %vm27, %v26
    %s29 = scalar_lea.vmem %s0, 3
    %v30 = vld [vmem:[%s29] sm:$0x1]
    %31 = vrot.lane.b32.xlu0 %v30, 24
    %v32 = vpop.permute.xlu0 %31
    %vm33 = vcmask 261312
    %34 = vst.msk [vmem:[#allocation0] sm:$0x1] %vm33, %v32
    %s35 = scalar_lea.vmem %s0, 2
    %v36 = vld [vmem:[%s35] sm:$0x1]
    %37 = vrot.lane.b32.xlu0 %v36, 16
    %v38 = vpop.permute.xlu0 %37
    %vm39 = vcmask 195712
    %40 = vst.msk [vmem:[#allocation0] sm:$0x1] %vm39, %v38
    %s41 = scalar_lea.vmem %s0, 1
    %v42 = vld [vmem:[%s41] sm:$0x1]
    %43 = vrot.lane.b32.xlu0 %v42, 8
    %v44 = vpop.permute.xlu0 %43
    %vm45 = vcmask 130112
    %46 = vst.msk [vmem:[#allocation0] sm:$0x1] %vm45, %v44
    %s48 = sshll.u32 1, 1
    %s49 = ssub.s32 %s48, 1
    %v51 = vld [vmem:[#allocation0] sm:%s49]
    %s52 = sshll.u32 1, 1
    %s53 = ssub.s32 %s52, 1
    %54 = vst [vmem:[%s1] sm:%s53] %v51

// kernel: mcahg2_forward.10
$region0: #{mcahg2_forward.10}
  #allocation0 [shape = 'u32[]', space=smem, size = 0x4, offset = 0x4, fixed_abs, tag = 'smem constant byte address 0x4 - core index']
  #allocation1 [shape = 'u32[144,128]{1,0:T(1,128)}', space=vmem, size = 0x12000, scoped, tag = 'internal scratch']
  %s0 = inlined_call_operand.vmem [shape: bf16[128,128], index: 0, kind: input, shape index: {}]
  %s1 = inlined_call_operand.vmem [shape: bf16[128,64], index: 1, kind: input, shape index: {}]
  %s2 = inlined_call_operand.vmem [shape: f32[1,64], index: 2, kind: input, shape index: {}]
  %s3 = inlined_call_operand.vmem [shape: bf16[128,64], index: 3, kind: input, shape index: {}]
  %s4 = inlined_call_operand.vmem [shape: bf16[64,64], index: 4, kind: input, shape index: {}]
  %s5 = inlined_call_operand.vmem [shape: bf16[128,64], index: 5, kind: output, shape index: {}]
  %s6 = sld [smem:[#allocation0]]
  $region30: #{mcahg2_forward.10} parent=0
    _
  %s8 = ssub.s32 1, %s6
  %s9 = scalar_select 0, %s8, %s6
  // Predicated region
  $region2: #{mcahg2_forward.10} parent=0 // pred_check
    _
  $region3: #{mcahg2_forward.10} parent=0 // pred_check_branch
    %11 = sbr.rel (0) target = $region5
  $region4: #{mcahg2_forward.10} parent=0 // pred_region
    _
  $region5: #{mcahg2_forward.10} parent=0 // pred_fallthru
    _
  // Predicated region
  $region6: #{mcahg2_forward.10} parent=0 // pred_check
    _
  $region7: #{mcahg2_forward.10} parent=0 // pred_check_branch
    %13 = sbr.rel (0) target = $region9
  $region8: #{mcahg2_forward.10} parent=0 // pred_region
    _
  $region9: #{mcahg2_forward.10} parent=0 // pred_fallthru
    _
  // Predicated region
  $region10: #{mcahg2_forward.10} parent=0 // pred_check
    _
  $region11: #{mcahg2_forward.10} parent=0 // pred_check_branch
    %15 = sbr.rel (0) target = $region13
  $region12: #{mcahg2_forward.10} parent=0 // pred_region
    _
  $region13: #{mcahg2_forward.10} parent=0 // pred_fallthru
    _
  // Predicated region
  $region14: #{mcahg2_forward.10} parent=0 // pred_check
    _
  $region15: #{mcahg2_forward.10} parent=0 // pred_check_branch
    %17 = sbr.rel (0) target = $region17
  $region16: #{mcahg2_forward.10} parent=0 // pred_region
    _
  $region17: #{mcahg2_forward.10} parent=0 // pred_fallthru
    _
  // Predicated region
  $region18: #{mcahg2_forward.10} parent=0 // pred_check
    _
  $region19: #{mcahg2_forward.10} parent=0 // pred_check_branch
    %19 = sbr.rel (0) target = $region21
  $region20: #{mcahg2_forward.10} parent=0 // pred_region
    _
  $region21: #{mcahg2_forward.10} parent=0 // pred_fallthru
    _
  %v21 = vld [vmem:[%s0] sm:$0xf]
  %v22 = vld [vmem:[%s0 + $0x4] sm:$0xf]
  %v23 = vld [vmem:[%s0 + $0x8] sm:$0xf]
  %v24 = vld [vmem:[%s0 + $0xc] sm:$0xf]
  %v25 = vld [vmem:[%s0 + $0x10] sm:$0xf]
  %v26 = vld [vmem:[%s0 + $0x14] sm:$0xf]
  %v27 = vld [vmem:[%s0 + $0x18] sm:$0xf]
  %v28 = vld [vmem:[%s0 + $0x1c] sm:$0xf]
  %v29 = vld [vmem:[%s0 + $0x20] sm:$0xf]
  %v30 = vld [vmem:[%s0 + $0x24] sm:$0xf]
  %v31 = vld [vmem:[%s0 + $0x28] sm:$0xf]
  %v32 = vld [vmem:[%s0 + $0x2c] sm:$0xf]
  %v33 = vld [vmem:[%s0 + $0x30] sm:$0xf]
  %v34 = vld [vmem:[%s0 + $0x34] sm:$0xf]
  %v35 = vld [vmem:[%s0 + $0x38] sm:$0xf]
  %v36 = vld [vmem:[%s0 + $0x3c] sm:$0xf]
  %v37 = vld [vmem:[%s1] sm:$0xf]
  %v38 = vld [vmem:[%s1 + $0x4] sm:$0xf]
  %v39 = vld [vmem:[%s1 + $0x8] sm:$0xf]
  %v40 = vld [vmem:[%s1 + $0xc] sm:$0xf]
  %v41 = vld [vmem:[%s1 + $0x10] sm:$0xf]
  %v42 = vld [vmem:[%s1 + $0x14] sm:$0xf]
  %v43 = vld [vmem:[%s1 + $0x18] sm:$0xf]
  %v44 = vld [vmem:[%s1 + $0x1c] sm:$0xf]
  %v45 = vld [vmem:[%s1 + $0x20] sm:$0xf]
  %v46 = vld [vmem:[%s1 + $0x24] sm:$0xf]
  %v47 = vld [vmem:[%s1 + $0x28] sm:$0xf]
  %v48 = vld [vmem:[%s1 + $0x2c] sm:$0xf]
  %v49 = vld [vmem:[%s1 + $0x30] sm:$0xf]
  %v50 = vld [vmem:[%s1 + $0x34] sm:$0xf]
  %v51 = vld [vmem:[%s1 + $0x38] sm:$0xf]
  %v52 = vld [vmem:[%s1 + $0x3c] sm:$0xf]
  %v53 = vld [vmem:[%s3] sm:$0xf]
  %v54 = vld [vmem:[%s3 + $0x4] sm:$0xf]
  %v55 = vld [vmem:[%s3 + $0x8] sm:$0xf]
  %v56 = vld [vmem:[%s3 + $0xc] sm:$0xf]
  %v57 = vld [vmem:[%s3 + $0x10] sm:$0xf]
  %v58 = vld [vmem:[%s3 + $0x14] sm:$0xf]
  %v59 = vld [vmem:[%s3 + $0x18] sm:$0xf]
  %v60 = vld [vmem:[%s3 + $0x1c] sm:$0xf]
  %v61 = vld [vmem:[%s3 + $0x20] sm:$0xf]
  %v62 = vld [vmem:[%s3 + $0x24] sm:$0xf]
  %v63 = vld [vmem:[%s3 + $0x28] sm:$0xf]
  %v64 = vld [vmem:[%s3 + $0x2c] sm:$0xf]
  %v65 = vld [vmem:[%s3 + $0x30] sm:$0xf]
  %v66 = vld [vmem:[%s3 + $0x34] sm:$0xf]
  %v67 = vld [vmem:[%s3 + $0x38] sm:$0xf]
  %v68 = vld [vmem:[%s3 + $0x3c] sm:$0xf]
  %v69 = vld [vmem:[%s4] sm:$0xf]
  %v70 = vld [vmem:[%s4 + $0x4] sm:$0xf]
  %v71 = vld [vmem:[%s4 + $0x8] sm:$0xf]
  %v72 = vld [vmem:[%s4 + $0xc] sm:$0xf]
  %v73 = vld [vmem:[%s4 + $0x10] sm:$0xf]
  %v74 = vld [vmem:[%s4 + $0x14] sm:$0xf]
  %v75 = vld [vmem:[%s4 + $0x18] sm:$0xf]
  %v76 = vld [vmem:[%s4 + $0x1c] sm:$0xf]
  %v93 = vunpack.c.l.b16 %v53
  %v94 = vunpack.c.l.b16 %v54
  %v95 = vunpack.c.l.b16 %v55
  %v96 = vunpack.c.l.b16 %v56
  %v97 = vunpack.c.l.b16 %v57
  %v98 = vunpack.c.l.b16 %v58
  %v99 = vunpack.c.l.b16 %v59
  %v100 = vunpack.c.l.b16 %v60
  %v101 = vunpack.c.l.b16 %v61
  %v102 = vunpack.c.l.b16 %v62
  %v103 = vunpack.c.l.b16 %v63
  %v104 = vunpack.c.l.b16 %v64
  %v105 = vunpack.c.l.b16 %v65
  %v106 = vunpack.c.l.b16 %v66
  %v107 = vunpack.c.l.b16 %v67
  %v108 = vunpack.c.l.b16 %v68
  %v109 = vpack.c.b16 %v94, %v93
  %v110 = vpack.c.b16 %v96, %v95
  %v111 = vpack.c.b16 %v98, %v97
  %v112 = vpack.c.b16 %v100, %v99
  %v113 = vpack.c.b16 %v102, %v101
  %v114 = vpack.c.b16 %v104, %v103
  %v115 = vpack.c.b16 %v106, %v105
  %v116 = vpack.c.b16 %v108, %v107
  %v125 = vunpack.c.l.b16 %v69
  %v126 = vunpack.c.l.b16 %v70
  %v127 = vunpack.c.l.b16 %v71
  %v128 = vunpack.c.l.b16 %v72
  %v129 = vunpack.c.l.b16 %v73
  %v130 = vunpack.c.l.b16 %v74
  %v131 = vunpack.c.l.b16 %v75
  %v132 = vunpack.c.l.b16 %v76
  %v133 = vpack.c.b16 %v126, %v125
  %v134 = vpack.c.b16 %v128, %v127
  %v135 = vpack.c.b16 %v130, %v129
  %v136 = vpack.c.b16 %v132, %v131
  %vm141 = vcmask 523264
  %v143 = vsel %vm141, %v109, 0
  %v146 = vsel %vm141, %v110, 0
  %v149 = vsel %vm141, %v111, 0
  %v152 = vsel %vm141, %v112, 0
  %v155 = vsel %vm141, %v113, 0
  %v158 = vsel %vm141, %v114, 0
  %v161 = vsel %vm141, %v115, 0
  %v164 = vsel %vm141, %v116, 0
  %166 = vmatprep.subr.bf16.mxu0 0
  %167 = vmatpush1.bf16.msra.mxu0 0
  %168 = vmatprep.subr.bf16.mxu0 0
  %169 = vmatpush1.bf16.msra.mxu0 0
  %170 = vmatprep.subr.bf16.mxu0 0
  %171 = vmatpush1.bf16.msra.mxu0 0
  %172 = vmatprep.subr.bf16.mxu0 0
  %173 = vmatpush1.bf16.msra.mxu0 0
  %174 = vmatprep.subr.bf16.mxu0 0
  %175 = vmatpush1.bf16.msra.mxu0 %v136
  %176 = vmatprep.subr.bf16.mxu0 0
  %177 = vmatpush1.bf16.msra.mxu0 %v135
  %178 = vmatprep.subr.bf16.mxu0 0
  %179 = vmatpush1.bf16.msra.mxu0 %v134
  %180 = vmatprep.subr.bf16.mxu0 0
  %181 = vmatpush1.bf16.msra.mxu0 %v133
  %182 = vmatprep.subr.bf16.mxu0 0
  %183 = vmatpush2.bf16.msra.mxu0 0
  %184 = vmatprep.subr.bf16.mxu0 0
  %185 = vmatpush2.bf16.msra.mxu0 0
  %186 = vmatprep.subr.bf16.mxu0 0
  %187 = vmatpush2.bf16.msra.mxu0 0
  %188 = vmatprep.subr.bf16.mxu0 0
  %189 = vmatpush2.bf16.msra.mxu0 0
  %190 = vmatprep.subr.bf16.mxu0 0
  %191 = vmatpush2.bf16.msra.mxu0 0
  %192 = vmatprep.subr.bf16.mxu0 0
  %193 = vmatpush2.bf16.msra.mxu0 0
  %194 = vmatprep.subr.bf16.mxu0 0
  %195 = vmatpush2.bf16.msra.mxu0 0
  %196 = vmatprep.subr.bf16.mxu0 0
  %197 = vmatpush2.bf16.msra.mxu0 0
  %198 = vmatprep.mubr.bf16.mxu0 0
  %199 = vmatmul.mubr.bf16.gmra.mxu0 %v143
  %v200 = vpop.f32.mrf.mxu0
  %v201 = vadd.f32 0.0, %v200
  %v202 = vpop.f32.mrf.mxu0
  %v203 = vpop.f32.mrf.mxu0
  %v204 = vadd.f32 0.0, %v203
  %v205 = vpop.f32.mrf.mxu0
  %206 = vmatprep.mubr.bf16.mxu0 0
  %207 = vmatmul.mubr.bf16.gmra.mxu0 %v146
  %v208 = vpop.f32.mrf.mxu0
  %v209 = vadd.f32 0.0, %v208
  %v210 = vpop.f32.mrf.mxu0
  %v211 = vpop.f32.mrf.mxu0
  %v212 = vadd.f32 0.0, %v211
  %v213 = vpop.f32.mrf.mxu0
  %214 = vmatprep.mubr.bf16.mxu0 0
  %215 = vmatmul.mubr.bf16.gmra.mxu0 %v149
  %v216 = vpop.f32.mrf.mxu0
  %v217 = vadd.f32 0.0, %v216
  %v218 = vpop.f32.mrf.mxu0
  %v219 = vpop.f32.mrf.mxu0
  %v220 = vadd.f32 0.0, %v219
  %v221 = vpop.f32.mrf.mxu0
  %222 = vmatprep.mubr.bf16.mxu0 0
  %223 = vmatmul.mubr.bf16.gmra.mxu0 %v152
  %v224 = vpop.f32.mrf.mxu0
  %v225 = vadd.f32 0.0, %v224
  %v226 = vpop.f32.mrf.mxu0
  %v227 = vpop.f32.mrf.mxu0
  %v228 = vadd.f32 0.0, %v227
  %v229 = vpop.f32.mrf.mxu0
  %230 = vmatprep.mubr.bf16.mxu0 0
  %231 = vmatmul.mubr.bf16.gmra.mxu0 %v155
  %v232 = vpop.f32.mrf.mxu0
  %v233 = vadd.f32 0.0, %v232
  %v234 = vpop.f32.mrf.mxu0
  %v235 = vpop.f32.mrf.mxu0
  %v236 = vadd.f32 0.0, %v235
  %v237 = vpop.f32.mrf.mxu0
  %238 = vmatprep.mubr.bf16.mxu0 0
  %239 = vmatmul.mubr.bf16.gmra.mxu0 %v158
  %v240 = vpop.f32.mrf.mxu0
  %v241 = vadd.f32 0.0, %v240
  %v242 = vpop.f32.mrf.mxu0
  %v243 = vpop.f32.mrf.mxu0
  %v244 = vadd.f32 0.0, %v243
  %v245 = vpop.f32.mrf.mxu0
  %246 = vmatprep.mubr.bf16.mxu0 0
  %247 = vmatmul.mubr.bf16.gmra.mxu0 %v161
  %v248 = vpop.f32.mrf.mxu0
  %v249 = vadd.f32 0.0, %v248
  %v250 = vpop.f32.mrf.mxu0
  %v251 = vpop.f32.mrf.mxu0
  %v252 = vadd.f32 0.0, %v251
  %v253 = vpop.f32.mrf.mxu0
  %254 = vmatprep.mubr.bf16.mxu0 0
  %255 = vmatmul.mubr.bf16.gmra.mxu0 %v164
  %v256 = vpop.f32.mrf.mxu0
  %v257 = vadd.f32 0.0, %v256
  %v258 = vpop.f32.mrf.mxu0
  %v259 = vpop.f32.mrf.mxu0
  %v260 = vadd.f32 0.0, %v259
  %v261 = vpop.f32.mrf.mxu0
  %262 = vdwg.mxu0
  %v279 = vunpack.c.l.b16 %v21
  %v280 = vunpack.c.l.b16 %v22
  %v281 = vunpack.c.l.b16 %v23
  %v282 = vunpack.c.l.b16 %v24
  %v283 = vunpack.c.l.b16 %v25
  %v284 = vunpack.c.l.b16 %v26
  %v285 = vunpack.c.l.b16 %v27
  %v286 = vunpack.c.l.b16 %v28
  %v287 = vunpack.c.l.b16 %v29
  %v288 = vunpack.c.l.b16 %v30
  %v289 = vunpack.c.l.b16 %v31
  %v290 = vunpack.c.l.b16 %v32
  %v291 = vunpack.c.l.b16 %v33
  %v292 = vunpack.c.l.b16 %v34
  %v293 = vunpack.c.l.b16 %v35
  %v294 = vunpack.c.l.b16 %v36
  %v295 = vpack.c.b16 %v280, %v279
  %v296 = vpack.c.b16 %v282, %v281
  %v297 = vpack.c.b16 %v284, %v283
  %v298 = vpack.c.b16 %v286, %v285
  %v299 = vpack.c.b16 %v288, %v287
  %v300 = vpack.c.b16 %v290, %v289
  %v301 = vpack.c.b16 %v292, %v291
  %v302 = vpack.c.b16 %v294, %v293
  %v327 = vunpack.c.l.b16 %v37
  %v328 = vunpack.c.l.b16 %v38
  %v329 = vunpack.c.l.b16 %v39
  %v330 = vunpack.c.l.b16 %v40
  %v331 = vunpack.c.l.b16 %v41
  %v332 = vunpack.c.l.b16 %v42
  %v333 = vunpack.c.l.b16 %v43
  %v334 = vunpack.c.l.b16 %v44
  %v335 = vunpack.c.l.b16 %v45
  %v336 = vunpack.c.l.b16 %v46
  %v337 = vunpack.c.l.b16 %v47
  %v338 = vunpack.c.l.b16 %v48
  %v339 = vunpack.c.l.b16 %v49
  %v340 = vunpack.c.l.b16 %v50
  %v341 = vunpack.c.l.b16 %v51
  %v342 = vunpack.c.l.b16 %v52
  %v343 = vpack.c.b16 %v328, %v327
  %v344 = vpack.c.b16 %v330, %v329
  %v345 = vpack.c.b16 %v332, %v331
  %v346 = vpack.c.b16 %v334, %v333
  %v347 = vpack.c.b16 %v336, %v335
  %v348 = vpack.c.b16 %v338, %v337
  %v349 = vpack.c.b16 %v340, %v339
  %v350 = vpack.c.b16 %v342, %v341
  %359 = vmatprep.subr.bf16.mxu0 0
  %360 = vmatpush1.bf16.msra.mxu0 %v350
  %361 = vmatprep.subr.bf16.mxu0 0
  %362 = vmatpush1.bf16.msra.mxu0 %v349
  %363 = vmatprep.subr.bf16.mxu0 0
  %364 = vmatpush1.bf16.msra.mxu0 %v348
  %365 = vmatprep.subr.bf16.mxu0 0
  %366 = vmatpush1.bf16.msra.mxu0 %v347
  %367 = vmatprep.subr.bf16.mxu0 0
  %368 = vmatpush1.bf16.msra.mxu0 %v346
  %369 = vmatprep.subr.bf16.mxu0 0
  %370 = vmatpush1.bf16.msra.mxu0 %v345
  %371 = vmatprep.subr.bf16.mxu0 0
  %372 = vmatpush1.bf16.msra.mxu0 %v344
  %373 = vmatprep.subr.bf16.mxu0 0
  %374 = vmatpush1.bf16.msra.mxu0 %v343
  %375 = vmatprep.subr.bf16.mxu0 0
  %376 = vmatpush2.bf16.msra.mxu0 0
  %377 = vmatprep.subr.bf16.mxu0 0
  %378 = vmatpush2.bf16.msra.mxu0 0
  %379 = vmatprep.subr.bf16.mxu0 0
  %380 = vmatpush2.bf16.msra.mxu0 0
  %381 = vmatprep.subr.bf16.mxu0 0
  %382 = vmatpush2.bf16.msra.mxu0 0
  %383 = vmatprep.subr.bf16.mxu0 0
  %384 = vmatpush2.bf16.msra.mxu0 0
  %385 = vmatprep.subr.bf16.mxu0 0
  %386 = vmatpush2.bf16.msra.mxu0 0
  %387 = vmatprep.subr.bf16.mxu0 0
  %388 = vmatpush2.bf16.msra.mxu0 0
  %389 = vmatprep.subr.bf16.mxu0 0
  %390 = vmatpush2.bf16.msra.mxu0 0
  %391 = vmatprep.mubr.bf16.mxu0 0
  %392 = vmatmul.mubr.bf16.gmra.mxu0 %v295
  %v393 = vpop.f32.mrf.mxu0
  %v394 = vadd.f32 %v201, %v393
  %v395 = vpop.f32.mrf.mxu0
  %v396 = vpop.f32.mrf.mxu0
  %v397 = vadd.f32 %v204, %v396
  %v398 = vpop.f32.mrf.mxu0
  %399 = vmatprep.mubr.bf16.mxu0 0
  %400 = vmatmul.mubr.bf16.gmra.mxu0 %v296
  %v401 = vpop.f32.mrf.mxu0
  %v402 = vadd.f32 %v209, %v401
  %v403 = vpop.f32.mrf.mxu0
  %v404 = vpop.f32.mrf.mxu0
  %v405 = vadd.f32 %v212, %v404
  %v406 = vpop.f32.mrf.mxu0
  %407 = vmatprep.mubr.bf16.mxu0 0
  %408 = vmatmul.mubr.bf16.gmra.mxu0 %v297
  %v409 = vpop.f32.mrf.mxu0
  %v410 = vadd.f32 %v217, %v409
  %v411 = vpop.f32.mrf.mxu0
  %v412 = vpop.f32.mrf.mxu0
  %v413 = vadd.f32 %v220, %v412
  %v414 = vpop.f32.mrf.mxu0
  %415 = vmatprep.mubr.bf16.mxu0 0
  %416 = vmatmul.mubr.bf16.gmra.mxu0 %v298
  %v417 = vpop.f32.mrf.mxu0
  %v418 = vadd.f32 %v225, %v417
  %v419 = vpop.f32.mrf.mxu0
  %v420 = vpop.f32.mrf.mxu0
  %v421 = vadd.f32 %v228, %v420
  %v422 = vpop.f32.mrf.mxu0
  %423 = vmatprep.mubr.bf16.mxu0 0
  %424 = vmatmul.mubr.bf16.gmra.mxu0 %v299
  %v425 = vpop.f32.mrf.mxu0
  %v426 = vadd.f32 %v233, %v425
  %v427 = vpop.f32.mrf.mxu0
  %v428 = vpop.f32.mrf.mxu0
  %v429 = vadd.f32 %v236, %v428
  %v430 = vpop.f32.mrf.mxu0
  %431 = vmatprep.mubr.bf16.mxu0 0
  %432 = vmatmul.mubr.bf16.gmra.mxu0 %v300
  %v433 = vpop.f32.mrf.mxu0
  %v434 = vadd.f32 %v241, %v433
  %v435 = vpop.f32.mrf.mxu0
  %v436 = vpop.f32.mrf.mxu0
  %v437 = vadd.f32 %v244, %v436
  %v438 = vpop.f32.mrf.mxu0
  %439 = vmatprep.mubr.bf16.mxu0 0
  %440 = vmatmul.mubr.bf16.gmra.mxu0 %v301
  %v441 = vpop.f32.mrf.mxu0
  %v442 = vadd.f32 %v249, %v441
  %v443 = vpop.f32.mrf.mxu0
  %v444 = vpop.f32.mrf.mxu0
  %v445 = vadd.f32 %v252, %v444
  %v446 = vpop.f32.mrf.mxu0
  %447 = vmatprep.mubr.bf16.mxu0 0
  %448 = vmatmul.mubr.bf16.gmra.mxu0 %v302
  %v449 = vpop.f32.mrf.mxu0
  %v450 = vadd.f32 %v257, %v449
  %v451 = vpop.f32.mrf.mxu0
  %v452 = vpop.f32.mrf.mxu0
  %v453 = vadd.f32 %v260, %v452
  %v454 = vpop.f32.mrf.mxu0
  %455 = vdwg.mxu0
  %v456 = vld [vmem:[%s2] sm:$0x1]
  %v458 = vlaneseq
  %v459 = vshrl.u32 %v458, 7
  %v460 = vsub.s32 0, %v459
  %v461 = vrot.slane %v456, %v460
  %v463 = vadd.f32 %v394, %v461
  %v464 = vadd.f32 %v397, %v461
  %v465 = vadd.f32 %v402, %v461
  %v466 = vadd.f32 %v405, %v461
  %v467 = vadd.f32 %v410, %v461
  %v468 = vadd.f32 %v413, %v461
  %v469 = vadd.f32 %v418, %v461
  %v470 = vadd.f32 %v421, %v461
  %v471 = vadd.f32 %v426, %v461
  %v472 = vadd.f32 %v429, %v461
  %v473 = vadd.f32 %v434, %v461
  %v474 = vadd.f32 %v437, %v461
  %v475 = vadd.f32 %v442, %v461
  %v476 = vadd.f32 %v445, %v461
  %v477 = vadd.f32 %v450, %v461
  %v478 = vadd.f32 %v453, %v461
  %v479 = vmax.f32 %v463, 0.0
  %v480 = vmax.f32 %v464, 0.0
  %v481 = vmax.f32 %v465, 0.0
  %v482 = vmax.f32 %v466, 0.0
  %v483 = vmax.f32 %v467, 0.0
  %v484 = vmax.f32 %v468, 0.0
  %v485 = vmax.f32 %v469, 0.0
  %v486 = vmax.f32 %v470, 0.0
  %v487 = vmax.f32 %v471, 0.0
  %v488 = vmax.f32 %v472, 0.0
  %v489 = vmax.f32 %v473, 0.0
  %v490 = vmax.f32 %v474, 0.0
  %v491 = vmax.f32 %v475, 0.0
  %v492 = vmax.f32 %v476, 0.0
  %v493 = vmax.f32 %v477, 0.0
  %v494 = vmax.f32 %v478, 0.0
  %v495 = vpack.c.bf16 %v480, %v479
  %v496 = vpack.c.bf16 %v482, %v481
  %v497 = vpack.c.bf16 %v484, %v483
  %v498 = vpack.c.bf16 %v486, %v485
  %v499 = vpack.c.bf16 %v488, %v487
  %v500 = vpack.c.bf16 %v490, %v489
  %v501 = vpack.c.bf16 %v492, %v491
  %v502 = vpack.c.bf16 %v494, %v493
  %v511 = vunpack.c.l.b16 %v495
  %v512 = vunpack.c.h.b16 %v495
  %v513 = vunpack.c.l.b16 %v496
  %v514 = vunpack.c.h.b16 %v496
  %v515 = vunpack.c.l.b16 %v497
  %v516 = vunpack.c.h.b16 %v497
  %v517 = vunpack.c.l.b16 %v498
  %v518 = vunpack.c.h.b16 %v498
  %v519 = vunpack.c.l.b16 %v499
  %v520 = vunpack.c.h.b16 %v499
  %v521 = vunpack.c.l.b16 %v500
  %v522 = vunpack.c.h.b16 %v500
  %v523 = vunpack.c.l.b16 %v501
  %v524 = vunpack.c.h.b16 %v501
  %v525 = vunpack.c.l.b16 %v502
  %v526 = vunpack.c.h.b16 %v502
  %v527 = vpack.c.b16 %v511, %v511
  %v528 = vpack.c.b16 %v512, %v512
  %v529 = vpack.c.b16 %v513, %v513
  %v530 = vpack.c.b16 %v514, %v514
  %v531 = vpack.c.b16 %v515, %v515
  %v532 = vpack.c.b16 %v516, %v516
  %v533 = vpack.c.b16 %v517, %v517
  %v534 = vpack.c.b16 %v518, %v518
  %v535 = vpack.c.b16 %v519, %v519
  %v536 = vpack.c.b16 %v520, %v520
  %v537 = vpack.c.b16 %v521, %v521
  %v538 = vpack.c.b16 %v522, %v522
  %v539 = vpack.c.b16 %v523, %v523
  %v540 = vpack.c.b16 %v524, %v524
  %v541 = vpack.c.b16 %v525, %v525
  %v542 = vpack.c.b16 %v526, %v526
  %vm559 = vcmask 519168
  %560 = vst.msk [vmem:[%s5] sm:$0xf] %vm559, %v527
  %561 = vst.msk [vmem:[%s5 + $0x4] sm:$0xf] %vm559, %v528
  %562 = vst.msk [vmem:[%s5 + $0x8] sm:$0xf] %vm559, %v529
  %563 = vst.msk [vmem:[%s5 + $0xc] sm:$0xf] %vm559, %v530
  %564 = vst.msk [vmem:[%s5 + $0x10] sm:$0xf] %vm559, %v531
  %565 = vst.msk [vmem:[%s5 + $0x14] sm:$0xf] %vm559, %v532
  %566 = vst.msk [vmem:[%s5 + $0x18] sm:$0xf] %vm559, %v533
  %567 = vst.msk [vmem:[%s5 + $0x1c] sm:$0xf] %vm559, %v534
  %568 = vst.msk [vmem:[%s5 + $0x20] sm:$0xf] %vm559, %v535
  %569 = vst.msk [vmem:[%s5 + $0x24] sm:$0xf] %vm559, %v536
  %570 = vst.msk [vmem:[%s5 + $0x28] sm:$0xf] %vm559, %v537
  %571 = vst.msk [vmem:[%s5 + $0x2c] sm:$0xf] %vm559, %v538
  %572 = vst.msk [vmem:[%s5 + $0x30] sm:$0xf] %vm559, %v539
  %573 = vst.msk [vmem:[%s5 + $0x34] sm:$0xf] %vm559, %v540
  %574 = vst.msk [vmem:[%s5 + $0x38] sm:$0xf] %vm559, %v541
  %575 = vst.msk [vmem:[%s5 + $0x3c] sm:$0xf] %vm559, %v542
  // Predicated region
  $region22: #{mcahg2_forward.10} parent=0 // pred_check
    _
  $region23: #{mcahg2_forward.10} parent=0 // pred_check_branch
    %577 = sbr.rel (0) target = $region25
  $region24: #{mcahg2_forward.10} parent=0 // pred_region
    _
  $region25: #{mcahg2_forward.10} parent=0 // pred_fallthru
    _
  // Predicated region
  $region26: #{mcahg2_forward.10} parent=0 // pred_check
    _
  $region27: #{mcahg2_forward.10} parent=0 // pred_check_branch
    %579 = sbr.rel (0) target = $region29
  $region28: #{mcahg2_forward.10} parent=0 // pred_region
    _
  $region29: #{mcahg2_forward.10} parent=0 // pred_fallthru
    _

// kernel: tile.18
$region0: #{tile.18}
  #allocation0 [shape = 's32[1]{0}', space=sflag, size = 0x4, scoped, tag = 'scoped memory for tile.18']
  %s0 = inlined_call_operand.vmem [shape: f32[4], index: 0, kind: input, shape index: {}]
  %s1 = inlined_call_operand.vmem [shape: f32[8,4], index: 1, kind: output, shape index: {}]
  // Predicated region
  $region2: #{tile.18} parent=0 // pred_check
    _
  $region3: #{tile.18} parent=0 // pred_check_branch
    %3 = sbr.rel (0) target = $region5
  $region4: #{tile.18} parent=0 // pred_region
    _
  $region5: #{tile.18} parent=0 // pred_fallthru
    _
  %v4 = vld [vmem:[%s0] ss:$0 sm:$0xff]
  %5 = vst [vmem:[%s1] sm:$0xff] %v4

// kernel: tile.19
$region0: #{tile.19}
  %s0 = inlined_call_operand.vmem [shape: f32[8,4], index: 0, kind: input, shape index: {}]
  %s1 = inlined_call_operand.vmem [shape: f32[1,32], index: 1, kind: output, shape index: {}]
  $region1: #{tile.19} parent=0
    #allocation0 [shape = 'u8[4096]{0}', space=vmem, size = 0x1000, scoped, tag = 'scoped mem for output reshape']
    %v2 = vld [vmem:[%s0] sm:$0x1]
    %vm3 = vcmask 31744
    %4 = vst.msk [vmem:[#allocation0] sm:$0x1] %vm3, %v2
    %s5 = scalar_lea.vmem %s0, 7
    %v6 = vld [vmem:[%s5] sm:$0x1]
    %7 = vrot.lane.b32.xlu0 %v6, 28
    %v8 = vpop.permute.xlu0 %7
    %vm9 = vcmask 261344
    %10 = vst.msk [vmem:[#allocation0] sm:$0x1] %vm9, %v8
    %s11 = scalar_lea.vmem %s0, 6
    %v12 = vld [vmem:[%s11] sm:$0x1]
    %13 = vrot.lane.b32.xlu0 %v12, 24
    %v14 = vpop.permute.xlu0 %13
    %vm15 = vcmask 228544
    %16 = vst.msk [vmem:[#allocation0] sm:$0x1] %vm15, %v14
    %s17 = scalar_lea.vmem %s0, 5
    %v18 = vld [vmem:[%s17] sm:$0x1]
    %19 = vrot.lane.b32.xlu0 %v18, 20
    %v20 = vpop.permute.xlu0 %19
    %vm21 = vcmask 195744
    %22 = vst.msk [vmem:[#allocation0] sm:$0x1] %vm21, %v20
    %s23 = scalar_lea.vmem %s0, 4
    %v24 = vld [vmem:[%s23] sm:$0x1]
    %25 = vrot.lane.b32.xlu0 %v24, 16
    %v26 = vpop.permute.xlu0 %25
    %vm27 = vcmask 162944
    %28 = vst.msk [vmem:[#allocation0] sm:$0x1] %vm27, %v26
    %s29 = scalar_lea.vmem %s0, 3
    %v30 = vld [vmem:[%s29] sm:$0x1]
    %31 = vrot.lane.b32.xlu0 %v30, 12
    %v32 = vpop.permute.xlu0 %31
    %vm33 = vcmask 130144
    %34 = vst.msk [vmem:[#allocation0] sm:$0x1] %vm33, %v32
    %s35 = scalar_lea.vmem %s0, 2
    %v36 = vld [vmem:[%s35] sm:$0x1]
    %37 = vrot.lane.b32.xlu0 %v36, 8
    %v38 = vpop.permute.xlu0 %37
    %vm39 = vcmask 97344
    %40 = vst.msk [vmem:[#allocation0] sm:$0x1] %vm39, %v38
    %s41 = scalar_lea.vmem %s0, 1
    %v42 = vld [vmem:[%s41] sm:$0x1]
    %43 = vrot.lane.b32.xlu0 %v42, 4
    %v44 = vpop.permute.xlu0 %43
    %vm45 = vcmask 64544
    %46 = vst.msk [vmem:[#allocation0] sm:$0x1] %vm45, %v44
    %s48 = sshll.u32 1, 1
    %s49 = ssub.s32 %s48, 1
    %v51 = vld [vmem:[#allocation0] sm:%s49]
    %s52 = sshll.u32 1, 1
    %s53 = ssub.s32 %s52, 1
    %54 = vst [vmem:[%s1] sm:%s53] %v51

// kernel: mcahg2_forward.11
$region0: #{mcahg2_forward.11}
  #allocation0 [shape = 'u32[]', space=smem, size = 0x4, offset = 0x4, fixed_abs, tag = 'smem constant byte address 0x4 - core index']
  #allocation1 [shape = 'u32[144,128]{1,0:T(1,128)}', space=vmem, size = 0x12000, scoped, tag = 'internal scratch']
  %s0 = inlined_call_operand.vmem [shape: bf16[512,64], index: 0, kind: input, shape index: {}]
  %s1 = inlined_call_operand.vmem [shape: bf16[64,32], index: 1, kind: input, shape index: {}]
  %s2 = inlined_call_operand.vmem [shape: f32[1,32], index: 2, kind: input, shape index: {}]
  %s3 = inlined_call_operand.vmem [shape: bf16[512,32], index: 3, kind: input, shape index: {}]
  %s4 = inlined_call_operand.vmem [shape: bf16[32,32], index: 4, kind: input, shape index: {}]
  %s5 = inlined_call_operand.vmem [shape: bf16[512,32], index: 5, kind: output, shape index: {}]
  %s6 = sld [smem:[#allocation0]]
  $region53: #{mcahg2_forward.11} parent=0
    _
  %s8 = ssub.s32 1, %s6
  %s9 = scalar_select 0, %s8, %s6
  loop: start=0, step=1, limit=4
  $region2: #{mcahg2_forward.11} parent=0 // loop_pre_header
    _
  $region3: #{mcahg2_forward.11} parent=0 // loop_header
    %s11 = sphi 0, %s15
    %p12 = scmp.ge.s32.totalorder %s11, 4
    %s21 = sphi 0, %s23
    %s24 = sphi 0, %s21
    %s25 = sphi 0, %s24
    %s41 = sphi 0, %s25
    %s45 = sphi 0, %s45
    %s47 = sphi 0, %s45
    %s48 = sphi 0, %s47
    %s62 = sphi 0, %s48
    %s66 = sphi 0, %s66
    %s68 = sphi 0, %s66
    %s69 = sphi 0, %s68
    %s83 = sphi 0, %s69
    %s89 = sphi 0, %s91
    %s92 = sphi 0, %s89
    %s93 = sphi 0, %s92
    %s109 = sphi 0, %s93
    %s113 = sphi 0, %s113
    %s115 = sphi 0, %s113
    %s116 = sphi 0, %s115
    %s130 = sphi 0, %s116
    %s136 = sphi 0, %s138
    %s139 = sphi 0, %s136
    %s140 = sphi 0, %s139
    %s156 = sphi 0, %s140
  $region4: #{mcahg2_forward.11} parent=0 // loop_header_branch
    %14 = sbr.rel (%p12) target = $region8
  $region5: #{mcahg2_forward.11} parent=0 // loop_body
    %s16 = ssub.s32 %s11, 1
    %s17 = ssub.s32 %s11, 2
    %s18 = sadd.s32 %s11, 1
    %s19 = ssub.s32 %s11, %s18
    %p20 = scmp.eq.s32.totalorder %s19, 0
    %s22 = sadd.s32 %s21, 1
    %s23 = scalar_select %p20, %s21, %s22
    %p26 = pneg %p20
    %p27 = scmp.eq.s32.totalorder %s11, 1
    %p28 = por %p26, %p27
    %p29 = scmp.ne.s32.totalorder %s21, %s24
    %p30 = scmp.eq.s32.totalorder %s11, 0
    %p31 = por %p29, %p30
    %p32 = scmp.ne.s32.totalorder %s21, %s24
    %p33 = scmp.eq.s32.totalorder %s16, 1
    %p34 = por %p32, %p33
    %p35 = scmp.ne.s32.totalorder %s24, %s25
    %p36 = scmp.eq.s32.totalorder %s16, 0
    %p37 = por %p35, %p36
    %p38 = scmp.ne.s32.totalorder %s24, %s25
    %p39 = scmp.eq.s32.totalorder %s17, 1
    %p40 = por %p38, %p39
    %p42 = scmp.ne.s32.totalorder %s25, %s41
    %p43 = scmp.eq.s32.totalorder %s17, 0
    %p44 = por %p42, %p43
    %s46 = sadd.s32 %s45, 1
    %p49 = scmp.eq.s32.totalorder %s11, 1
    %p50 = scmp.ne.s32.totalorder %s45, %s47
    %p51 = scmp.eq.s32.totalorder %s11, 0
    %p52 = por %p50, %p51
    %p53 = scmp.ne.s32.totalorder %s45, %s47
    %p54 = scmp.eq.s32.totalorder %s16, 1
    %p55 = por %p53, %p54
    %p56 = scmp.ne.s32.totalorder %s47, %s48
    %p57 = scmp.eq.s32.totalorder %s16, 0
    %p58 = por %p56, %p57
    %p59 = scmp.ne.s32.totalorder %s47, %s48
    %p60 = scmp.eq.s32.totalorder %s17, 1
    %p61 = por %p59, %p60
    %p63 = scmp.ne.s32.totalorder %s48, %s62
    %p64 = scmp.eq.s32.totalorder %s17, 0
    %p65 = por %p63, %p64
    %s67 = sadd.s32 %s66, 1
    %p70 = scmp.eq.s32.totalorder %s11, 1
    %p71 = scmp.ne.s32.totalorder %s66, %s68
    %p72 = scmp.eq.s32.totalorder %s11, 0
    %p73 = por %p71, %p72
    %p74 = scmp.ne.s32.totalorder %s66, %s68
    %p75 = scmp.eq.s32.totalorder %s16, 1
    %p76 = por %p74, %p75
    %p77 = scmp.ne.s32.totalorder %s68, %s69
    %p78 = scmp.eq.s32.totalorder %s16, 0
    %p79 = por %p77, %p78
    %p80 = scmp.ne.s32.totalorder %s68, %s69
    %p81 = scmp.eq.s32.totalorder %s17, 1
    %p82 = por %p80, %p81
    %p84 = scmp.ne.s32.totalorder %s69, %s83
    %p85 = scmp.eq.s32.totalorder %s17, 0
    %p86 = por %p84, %p85
    %s87 = ssub.s32 %s11, %s18
    %p88 = scmp.eq.s32.totalorder %s87, 0
    %s90 = sadd.s32 %s89, 1
    %s91 = scalar_select %p88, %s89, %s90
    %p94 = pneg %p88
    %p95 = scmp.eq.s32.totalorder %s11, 1
    %p96 = por %p94, %p95
    %p97 = scmp.ne.s32.totalorder %s89, %s92
    %p98 = scmp.eq.s32.totalorder %s11, 0
    %p99 = por %p97, %p98
    %p100 = scmp.ne.s32.totalorder %s89, %s92
    %p101 = scmp.eq.s32.totalorder %s16, 1
    %p102 = por %p100, %p101
    %p103 = scmp.ne.s32.totalorder %s92, %s93
    %p104 = scmp.eq.s32.totalorder %s16, 0
    %p105 = por %p103, %p104
    %p106 = scmp.ne.s32.totalorder %s92, %s93
    %p107 = scmp.eq.s32.totalorder %s17, 1
    %p108 = por %p106, %p107
    %p110 = scmp.ne.s32.totalorder %s93, %s109
    %p111 = scmp.eq.s32.totalorder %s17, 0
    %p112 = por %p110, %p111
    %s114 = sadd.s32 %s113, 1
    %p117 = scmp.eq.s32.totalorder %s11, 1
    %p118 = scmp.ne.s32.totalorder %s113, %s115
    %p119 = scmp.eq.s32.totalorder %s11, 0
    %p120 = por %p118, %p119
    %p121 = scmp.ne.s32.totalorder %s113, %s115
    %p122 = scmp.eq.s32.totalorder %s16, 1
    %p123 = por %p121, %p122
    %p124 = scmp.ne.s32.totalorder %s115, %s116
    %p125 = scmp.eq.s32.totalorder %s16, 0
    %p126 = por %p124, %p125
    %p127 = scmp.ne.s32.totalorder %s115, %s116
    %p128 = scmp.eq.s32.totalorder %s17, 1
    %p129 = por %p127, %p128
    %p131 = scmp.ne.s32.totalorder %s116, %s130
    %p132 = scmp.eq.s32.totalorder %s17, 0
    %p133 = por %p131, %p132
    %s134 = ssub.s32 %s11, %s18
    %p135 = scmp.eq.s32.totalorder %s134, 0
    %s137 = sadd.s32 %s136, 1
    %s138 = scalar_select %p135, %s136, %s137
    %p141 = pneg %p135
    %p142 = scmp.eq.s32.totalorder %s11, 1
    %p143 = por %p141, %p142
    %p144 = scmp.ne.s32.totalorder %s136, %s139
    %p145 = scmp.eq.s32.totalorder %s11, 0
    %p146 = por %p144, %p145
    %p147 = scmp.ne.s32.totalorder %s136, %s139
    %p148 = scmp.eq.s32.totalorder %s16, 1
    %p149 = por %p147, %p148
    %p150 = scmp.ne.s32.totalorder %s139, %s140
    %p151 = scmp.eq.s32.totalorder %s16, 0
    %p152 = por %p150, %p151
    %p153 = scmp.ne.s32.totalorder %s139, %s140
    %p154 = scmp.eq.s32.totalorder %s17, 1
    %p155 = por %p153, %p154
    %p157 = scmp.ne.s32.totalorder %s140, %s156
    %p158 = scmp.eq.s32.totalorder %s17, 0
    %p159 = por %p157, %p158
    %p160 = scmp.le.s32.totalorder 1, %s11
    %p161 = scmp.lt.s32.totalorder %s11, 3
    %p162 = pnand %p160, %p161
    %p163 = pneg %p162
    // Predicated region
    $region9: #{mcahg2_forward.11} parent=5 // pred_check
      _
    $region10: #{mcahg2_forward.11} parent=5 // pred_check_branch
      %165 = sbr.rel (%p162) target = $region12
    $region11: #{mcahg2_forward.11} parent=5 // pred_region
      %s166 = ssub.s32 %s11, 1
      // Predicated region
      $region13: #{mcahg2_forward.11} parent=11 // pred_check
        %p167 = pneg %p58
      $region14: #{mcahg2_forward.11} parent=11 // pred_check_branch
        %169 = sbr.rel (%p167) target = $region16
      $region15: #{mcahg2_forward.11} parent=11 // pred_region
        _
      $region16: #{mcahg2_forward.11} parent=11 // pred_fallthru
        _
      // Predicated region
      $region17: #{mcahg2_forward.11} parent=11 // pred_check
        %p170 = pneg %p79
      $region18: #{mcahg2_forward.11} parent=11 // pred_check_branch
        %172 = sbr.rel (%p170) target = $region20
      $region19: #{mcahg2_forward.11} parent=11 // pred_region
        _
      $region20: #{mcahg2_forward.11} parent=11 // pred_fallthru
        _
      // Predicated region
      $region21: #{mcahg2_forward.11} parent=11 // pred_check
        %p173 = pneg %p126
      $region22: #{mcahg2_forward.11} parent=11 // pred_check_branch
        %175 = sbr.rel (%p173) target = $region24
      $region23: #{mcahg2_forward.11} parent=11 // pred_region
        _
      $region24: #{mcahg2_forward.11} parent=11 // pred_fallthru
        _
    $region12: #{mcahg2_forward.11} parent=5 // pred_fallthru
      _
    %p176 = scmp.lt.s32.totalorder %s11, 2
    // Predicated region
    $region25: #{mcahg2_forward.11} parent=5 // pred_check
      %p177 = pneg %p176
    $region26: #{mcahg2_forward.11} parent=5 // pred_check_branch
      %179 = sbr.rel (%p177) target = $region28
    $region27: #{mcahg2_forward.11} parent=5 // pred_region
      // Predicated region
      $region29: #{mcahg2_forward.11} parent=27 // pred_check
        %p180 = pneg %p31
      $region30: #{mcahg2_forward.11} parent=27 // pred_check_branch
        %182 = sbr.rel (%p180) target = $region32
      $region31: #{mcahg2_forward.11} parent=27 // pred_region
        %s183 = smul.u32 32, %s11
        %p184 = scmp.lt.s32.totalorder %s183, 63
        %s185 = scalar_select %p184, %s183, 63
        %s186 = smul.addr %s185, 4
        %s187 = scalar_lea.vmem %s0, %s186
        %s188 = smul.u32 32, %s11
      $region32: #{mcahg2_forward.11} parent=27 // pred_fallthru
        _
      // Predicated region
      $region33: #{mcahg2_forward.11} parent=27 // pred_check
        %p189 = pneg %p99
      $region34: #{mcahg2_forward.11} parent=27 // pred_check_branch
        %191 = sbr.rel (%p189) target = $region36
      $region35: #{mcahg2_forward.11} parent=27 // pred_region
        %s192 = smul.u32 32, %s11
        %p193 = scmp.lt.s32.totalorder %s192, 63
        %s194 = scalar_select %p193, %s192, 63
        %s195 = smul.addr %s194, 4
        %s196 = scalar_lea.vmem %s3, %s195
        %s197 = smul.u32 32, %s11
      $region36: #{mcahg2_forward.11} parent=27 // pred_fallthru
        _
    $region28: #{mcahg2_forward.11} parent=5 // pred_fallthru
      _
    %p198 = scmp.le.s32.totalorder 1, %s11
    %p199 = scmp.lt.s32.totalorder %s11, 3
    %p200 = pnand %p198, %p199
    %p201 = pneg %p200
    // Predicated region
    $region37: #{mcahg2_forward.11} parent=5 // pred_check
      _
    $region38: #{mcahg2_forward.11} parent=5 // pred_check_branch
      %203 = sbr.rel (%p200) target = $region40
    $region39: #{mcahg2_forward.11} parent=5 // pred_region
      %s204 = ssub.s32 %s11, 1
      %s205 = smul.u32 32, %s16
      %p206 = scmp.lt.s32.totalorder %s205, 63
      %s207 = scalar_select %p206, %s205, 63
      %s208 = smul.addr %s207, 4
      %s209 = scalar_lea.vmem %s0, %s208
      %p210 = pneg %p37
      %p211 = pneg %p34
      %p212 = pneg %p58
      %p213 = pneg %p55
      %p214 = pneg %p79
      %p215 = pneg %p76
      %s216 = smul.u32 32, %s16
      %p217 = scmp.lt.s32.totalorder %s216, 63
      %s218 = scalar_select %p217, %s216, 63
      %s219 = smul.addr %s218, 4
      %s220 = scalar_lea.vmem %s3, %s219
      %p221 = pneg %p105
      %p222 = pneg %p102
      %p223 = pneg %p126
      %p224 = pneg %p123
      %p225 = pneg %p152
      %p226 = pneg %p149
      %s227 = smul.u32 32, %s16
      %p228 = scmp.lt.s32.totalorder %s227, 63
      %s229 = scalar_select %p228, %s227, 63
      %s230 = smul.addr %s229, 4
      %s231 = scalar_lea.vmem %s5, %s230
      %s232 = smul.u32 32, %s16
      %p233 = scmp.lt.s32.totalorder %s232, 63
      %s234 = scalar_select %p233, %s232, 63
      %s235 = smul.addr %s234, 4
      %s236 = scalar_lea.vmem %s0, %s235
      %s237 = smul.u32 32, %s16
      %s238 = smul.u32 32, %s16
      %p239 = scmp.lt.s32.totalorder %s238, 63
      %s240 = scalar_select %p239, %s238, 63
      %s241 = smul.addr %s240, 4
      %s242 = scalar_lea.vmem %s3, %s241
      %s243 = smul.u32 32, %s16
      %s244 = smul.u32 32, %s16
      %p245 = scmp.lt.s32.totalorder %s244, 63
      %s246 = scalar_select %p245, %s244, 63
      %s247 = smul.addr %s246, 4
      %s248 = scalar_lea.vmem %s5, %s247
      %s249 = smul.u32 32, %s16
      %v251 = vld [vmem:[%s236] sm:$0xf]
      %v252 = vld [vmem:[%s236 + $0x4] sm:$0xf]
      %v253 = vld [vmem:[%s236 + $0x8] sm:$0xf]
      %v254 = vld [vmem:[%s236 + $0xc] sm:$0xf]
      %v255 = vld [vmem:[%s236 + $0x10] sm:$0xf]
      %v256 = vld [vmem:[%s236 + $0x14] sm:$0xf]
      %v257 = vld [vmem:[%s236 + $0x18] sm:$0xf]
      %v258 = vld [vmem:[%s236 + $0x1c] sm:$0xf]
      %v259 = vld [vmem:[%s236 + $0x20] sm:$0xf]
      %v260 = vld [vmem:[%s236 + $0x24] sm:$0xf]
      %v261 = vld [vmem:[%s236 + $0x28] sm:$0xf]
      %v262 = vld [vmem:[%s236 + $0x2c] sm:$0xf]
      %v263 = vld [vmem:[%s236 + $0x30] sm:$0xf]
      %v264 = vld [vmem:[%s236 + $0x34] sm:$0xf]
      %v265 = vld [vmem:[%s236 + $0x38] sm:$0xf]
      %v266 = vld [vmem:[%s236 + $0x3c] sm:$0xf]
      %v267 = vld [vmem:[%s236 + $0x40] sm:$0xf]
      %v268 = vld [vmem:[%s236 + $0x44] sm:$0xf]
      %v269 = vld [vmem:[%s236 + $0x48] sm:$0xf]
      %v270 = vld [vmem:[%s236 + $0x4c] sm:$0xf]
      %v271 = vld [vmem:[%s236 + $0x50] sm:$0xf]
      %v272 = vld [vmem:[%s236 + $0x54] sm:$0xf]
      %v273 = vld [vmem:[%s236 + $0x58] sm:$0xf]
      %v274 = vld [vmem:[%s236 + $0x5c] sm:$0xf]
      %v275 = vld [vmem:[%s236 + $0x60] sm:$0xf]
      %v276 = vld [vmem:[%s236 + $0x64] sm:$0xf]
      %v277 = vld [vmem:[%s236 + $0x68] sm:$0xf]
      %v278 = vld [vmem:[%s236 + $0x6c] sm:$0xf]
      %v279 = vld [vmem:[%s236 + $0x70] sm:$0xf]
      %v280 = vld [vmem:[%s236 + $0x74] sm:$0xf]
      %v281 = vld [vmem:[%s236 + $0x78] sm:$0xf]
      %v282 = vld [vmem:[%s236 + $0x7c] sm:$0xf]
      %v283 = vld [vmem:[%s1] sm:$0xf]
      %v284 = vld [vmem:[%s1 + $0x4] sm:$0xf]
      %v285 = vld [vmem:[%s1 + $0x8] sm:$0xf]
      %v286 = vld [vmem:[%s1 + $0xc] sm:$0xf]
      %v287 = vld [vmem:[%s1 + $0x10] sm:$0xf]
      %v288 = vld [vmem:[%s1 + $0x14] sm:$0xf]
      %v289 = vld [vmem:[%s1 + $0x18] sm:$0xf]
      %v290 = vld [vmem:[%s1 + $0x1c] sm:$0xf]
      %v291 = vld [vmem:[%s242] sm:$0xf]
      %v292 = vld [vmem:[%s242 + $0x4] sm:$0xf]
      %v293 = vld [vmem:[%s242 + $0x8] sm:$0xf]
      %v294 = vld [vmem:[%s242 + $0xc] sm:$0xf]
      %v295 = vld [vmem:[%s242 + $0x10] sm:$0xf]
      %v296 = vld [vmem:[%s242 + $0x14] sm:$0xf]
      %v297 = vld [vmem:[%s242 + $0x18] sm:$0xf]
      %v298 = vld [vmem:[%s242 + $0x1c] sm:$0xf]
      %v299 = vld [vmem:[%s242 + $0x20] sm:$0xf]
      %v300 = vld [vmem:[%s242 + $0x24] sm:$0xf]
      %v301 = vld [vmem:[%s242 + $0x28] sm:$0xf]
      %v302 = vld [vmem:[%s242 + $0x2c] sm:$0xf]
      %v303 = vld [vmem:[%s242 + $0x30] sm:$0xf]
      %v304 = vld [vmem:[%s242 + $0x34] sm:$0xf]
      %v305 = vld [vmem:[%s242 + $0x38] sm:$0xf]
      %v306 = vld [vmem:[%s242 + $0x3c] sm:$0xf]
      %v307 = vld [vmem:[%s242 + $0x40] sm:$0xf]
      %v308 = vld [vmem:[%s242 + $0x44] sm:$0xf]
      %v309 = vld [vmem:[%s242 + $0x48] sm:$0xf]
      %v310 = vld [vmem:[%s242 + $0x4c] sm:$0xf]
      %v311 = vld [vmem:[%s242 + $0x50] sm:$0xf]
      %v312 = vld [vmem:[%s242 + $0x54] sm:$0xf]
      %v313 = vld [vmem:[%s242 + $0x58] sm:$0xf]
      %v314 = vld [vmem:[%s242 + $0x5c] sm:$0xf]
      %v315 = vld [vmem:[%s242 + $0x60] sm:$0xf]
      %v316 = vld [vmem:[%s242 + $0x64] sm:$0xf]
      %v317 = vld [vmem:[%s242 + $0x68] sm:$0xf]
      %v318 = vld [vmem:[%s242 + $0x6c] sm:$0xf]
      %v319 = vld [vmem:[%s242 + $0x70] sm:$0xf]
      %v320 = vld [vmem:[%s242 + $0x74] sm:$0xf]
      %v321 = vld [vmem:[%s242 + $0x78] sm:$0xf]
      %v322 = vld [vmem:[%s242 + $0x7c] sm:$0xf]
      %v323 = vld [vmem:[%s4] sm:$0xf]
      %v324 = vld [vmem:[%s4 + $0x4] sm:$0xf]
      %v325 = vld [vmem:[%s4 + $0x8] sm:$0xf]
      %v326 = vld [vmem:[%s4 + $0xc] sm:$0xf]
      %v359 = vunpack.c.l.b16 %v291
      %v360 = vunpack.c.l.b16 %v292
      %v361 = vunpack.c.l.b16 %v293
      %v362 = vunpack.c.l.b16 %v294
      %v363 = vunpack.c.l.b16 %v295
      %v364 = vunpack.c.l.b16 %v296
      %v365 = vunpack.c.l.b16 %v297
      %v366 = vunpack.c.l.b16 %v298
      %v367 = vunpack.c.l.b16 %v299
      %v368 = vunpack.c.l.b16 %v300
      %v369 = vunpack.c.l.b16 %v301
      %v370 = vunpack.c.l.b16 %v302
      %v371 = vunpack.c.l.b16 %v303
      %v372 = vunpack.c.l.b16 %v304
      %v373 = vunpack.c.l.b16 %v305
      %v374 = vunpack.c.l.b16 %v306
      %v375 = vunpack.c.l.b16 %v307
      %v376 = vunpack.c.l.b16 %v308
      %v377 = vunpack.c.l.b16 %v309
      %v378 = vunpack.c.l.b16 %v310
      %v379 = vunpack.c.l.b16 %v311
      %v380 = vunpack.c.l.b16 %v312
      %v381 = vunpack.c.l.b16 %v313
      %v382 = vunpack.c.l.b16 %v314
      %v383 = vunpack.c.l.b16 %v315
      %v384 = vunpack.c.l.b16 %v316
      %v385 = vunpack.c.l.b16 %v317
      %v386 = vunpack.c.l.b16 %v318
      %v387 = vunpack.c.l.b16 %v319
      %v388 = vunpack.c.l.b16 %v320
      %v389 = vunpack.c.l.b16 %v321
      %v390 = vunpack.c.l.b16 %v322
      %v391 = vpack.c.b16 %v360, %v359
      %v392 = vpack.c.b16 %v362, %v361
      %v393 = vpack.c.b16 %v364, %v363
      %v394 = vpack.c.b16 %v366, %v365
      %v395 = vpack.c.b16 %v368, %v367
      %v396 = vpack.c.b16 %v370, %v369
      %v397 = vpack.c.b16 %v372, %v371
      %v398 = vpack.c.b16 %v374, %v373
      %v399 = vpack.c.b16 %v376, %v375
      %v400 = vpack.c.b16 %v378, %v377
      %v401 = vpack.c.b16 %v380, %v379
      %v402 = vpack.c.b16 %v382, %v381
      %v403 = vpack.c.b16 %v384, %v383
      %v404 = vpack.c.b16 %v386, %v385
      %v405 = vpack.c.b16 %v388, %v387
      %v406 = vpack.c.b16 %v390, %v389
      %v411 = vunpack.c.l.b16 %v323
      %v412 = vunpack.c.l.b16 %v324
      %v413 = vunpack.c.l.b16 %v325
      %v414 = vunpack.c.l.b16 %v326
      %v415 = vpack.c.b16 %v412, %v411
      %v416 = vpack.c.b16 %v414, %v413
      %vm419 = vcmask 261120
      %v421 = vsel %vm419, %v391, 0
      %v424 = vsel %vm419, %v392, 0
      %v427 = vsel %vm419, %v393, 0
      %v430 = vsel %vm419, %v394, 0
      %v433 = vsel %vm419, %v395, 0
      %v436 = vsel %vm419, %v396, 0
      %v439 = vsel %vm419, %v397, 0
      %v442 = vsel %vm419, %v398, 0
      %v445 = vsel %vm419, %v399, 0
      %v448 = vsel %vm419, %v400, 0
      %v451 = vsel %vm419, %v401, 0
      %v454 = vsel %vm419, %v402, 0
      %v457 = vsel %vm419, %v403, 0
      %v460 = vsel %vm419, %v404, 0
      %v463 = vsel %vm419, %v405, 0
      %v466 = vsel %vm419, %v406, 0
      %468 = vmatprep.subr.bf16.mxu0 0
      %469 = vmatpush1.bf16.msra.mxu0 0
      %470 = vmatprep.subr.bf16.mxu0 0
      %471 = vmatpush1.bf16.msra.mxu0 0
      %472 = vmatprep.subr.bf16.mxu0 0
      %473 = vmatpush1.bf16.msra.mxu0 0
      %474 = vmatprep.subr.bf16.mxu0 0
      %475 = vmatpush1.bf16.msra.mxu0 0
      %476 = vmatprep.subr.bf16.mxu0 0
      %477 = vmatpush1.bf16.msra.mxu0 0
      %478 = vmatprep.subr.bf16.mxu0 0
      %479 = vmatpush1.bf16.msra.mxu0 0
      %480 = vmatprep.subr.bf16.mxu0 0
      %481 = vmatpush1.bf16.msra.mxu0 %v416
      %482 = vmatprep.subr.bf16.mxu0 0
      %483 = vmatpush1.bf16.msra.mxu0 %v415
      %484 = vmatprep.subr.bf16.mxu0 0
      %485 = vmatpush2.bf16.msra.mxu0 0
      %486 = vmatprep.subr.bf16.mxu0 0
      %487 = vmatpush2.bf16.msra.mxu0 0
      %488 = vmatprep.subr.bf16.mxu0 0
      %489 = vmatpush2.bf16.msra.mxu0 0
      %490 = vmatprep.subr.bf16.mxu0 0
      %491 = vmatpush2.bf16.msra.mxu0 0
      %492 = vmatprep.subr.bf16.mxu0 0
      %493 = vmatpush2.bf16.msra.mxu0 0
      %494 = vmatprep.subr.bf16.mxu0 0
      %495 = vmatpush2.bf16.msra.mxu0 0
      %496 = vmatprep.subr.bf16.mxu0 0
      %497 = vmatpush2.bf16.msra.mxu0 0
      %498 = vmatprep.subr.bf16.mxu0 0
      %499 = vmatpush2.bf16.msra.mxu0 0
      %500 = vmatprep.mubr.bf16.mxu0 0
      %501 = vmatmul.mubr.bf16.gmra.mxu0 %v421
      %v502 = vpop.f32.mrf.mxu0
      %v503 = vadd.f32 0.0, %v502
      %v504 = vpop.f32.mrf.mxu0
      %v505 = vpop.f32.mrf.mxu0
      %v506 = vadd.f32 0.0, %v505
      %v507 = vpop.f32.mrf.mxu0
      %508 = vmatprep.mubr.bf16.mxu0 0
      %509 = vmatmul.mubr.bf16.gmra.mxu0 %v424
      %v510 = vpop.f32.mrf.mxu0
      %v511 = vadd.f32 0.0, %v510
      %v512 = vpop.f32.mrf.mxu0
      %v513 = vpop.f32.mrf.mxu0
      %v514 = vadd.f32 0.0, %v513
      %v515 = vpop.f32.mrf.mxu0
      %516 = vmatprep.mubr.bf16.mxu0 0
      %517 = vmatmul.mubr.bf16.gmra.mxu0 %v427
      %v518 = vpop.f32.mrf.mxu0
      %v519 = vadd.f32 0.0, %v518
      %v520 = vpop.f32.mrf.mxu0
      %v521 = vpop.f32.mrf.mxu0
      %v522 = vadd.f32 0.0, %v521
      %v523 = vpop.f32.mrf.mxu0
      %524 = vmatprep.mubr.bf16.mxu0 0
      %525 = vmatmul.mubr.bf16.gmra.mxu0 %v430
      %v526 = vpop.f32.mrf.mxu0
      %v527 = vadd.f32 0.0, %v526
      %v528 = vpop.f32.mrf.mxu0
      %v529 = vpop.f32.mrf.mxu0
      %v530 = vadd.f32 0.0, %v529
      %v531 = vpop.f32.mrf.mxu0
      %532 = vmatprep.mubr.bf16.mxu0 0
      %533 = vmatmul.mubr.bf16.gmra.mxu0 %v433
      %v534 = vpop.f32.mrf.mxu0
      %v535 = vadd.f32 0.0, %v534
      %v536 = vpop.f32.mrf.mxu0
      %v537 = vpop.f32.mrf.mxu0
      %v538 = vadd.f32 0.0, %v537
      %v539 = vpop.f32.mrf.mxu0
      %540 = vmatprep.mubr.bf16.mxu0 0
      %541 = vmatmul.mubr.bf16.gmra.mxu0 %v436
      %v542 = vpop.f32.mrf.mxu0
      %v543 = vadd.f32 0.0, %v542
      %v544 = vpop.f32.mrf.mxu0
      %v545 = vpop.f32.mrf.mxu0
      %v546 = vadd.f32 0.0, %v545
      %v547 = vpop.f32.mrf.mxu0
      %548 = vmatprep.mubr.bf16.mxu0 0
      %549 = vmatmul.mubr.bf16.gmra.mxu0 %v439
      %v550 = vpop.f32.mrf.mxu0
      %v551 = vadd.f32 0.0, %v550
      %v552 = vpop.f32.mrf.mxu0
      %v553 = vpop.f32.mrf.mxu0
      %v554 = vadd.f32 0.0, %v553
      %v555 = vpop.f32.mrf.mxu0
      %556 = vmatprep.mubr.bf16.mxu0 0
      %557 = vmatmul.mubr.bf16.gmra.mxu0 %v442
      %v558 = vpop.f32.mrf.mxu0
      %v559 = vadd.f32 0.0, %v558
      %v560 = vpop.f32.mrf.mxu0
      %v561 = vpop.f32.mrf.mxu0
      %v562 = vadd.f32 0.0, %v561
      %v563 = vpop.f32.mrf.mxu0
      %564 = vmatprep.mubr.bf16.mxu0 0
      %565 = vmatmul.mubr.bf16.gmra.mxu0 %v445
      %v566 = vpop.f32.mrf.mxu0
      %v567 = vadd.f32 0.0, %v566
      %v568 = vpop.f32.mrf.mxu0
      %v569 = vpop.f32.mrf.mxu0
      %v570 = vadd.f32 0.0, %v569
      %v571 = vpop.f32.mrf.mxu0
      %572 = vmatprep.mubr.bf16.mxu0 0
      %573 = vmatmul.mubr.bf16.gmra.mxu0 %v448
      %v574 = vpop.f32.mrf.mxu0
      %v575 = vadd.f32 0.0, %v574
      %v576 = vpop.f32.mrf.mxu0
      %v577 = vpop.f32.mrf.mxu0
      %v578 = vadd.f32 0.0, %v577
      %v579 = vpop.f32.mrf.mxu0
      %580 = vmatprep.mubr.bf16.mxu0 0
      %581 = vmatmul.mubr.bf16.gmra.mxu0 %v451
      %v582 = vpop.f32.mrf.mxu0
      %v583 = vadd.f32 0.0, %v582
      %v584 = vpop.f32.mrf.mxu0
      %v585 = vpop.f32.mrf.mxu0
      %v586 = vadd.f32 0.0, %v585
      %v587 = vpop.f32.mrf.mxu0
      %588 = vmatprep.mubr.bf16.mxu0 0
      %589 = vmatmul.mubr.bf16.gmra.mxu0 %v454
      %v590 = vpop.f32.mrf.mxu0
      %v591 = vadd.f32 0.0, %v590
      %v592 = vpop.f32.mrf.mxu0
      %v593 = vpop.f32.mrf.mxu0
      %v594 = vadd.f32 0.0, %v593
      %v595 = vpop.f32.mrf.mxu0
      %596 = vmatprep.mubr.bf16.mxu0 0
      %597 = vmatmul.mubr.bf16.gmra.mxu0 %v457
      %v598 = vpop.f32.mrf.mxu0
      %v599 = vadd.f32 0.0, %v598
      %v600 = vpop.f32.mrf.mxu0
      %v601 = vpop.f32.mrf.mxu0
      %v602 = vadd.f32 0.0, %v601
      %v603 = vpop.f32.mrf.mxu0
      %604 = vmatprep.mubr.bf16.mxu0 0
      %605 = vmatmul.mubr.bf16.gmra.mxu0 %v460
      %v606 = vpop.f32.mrf.mxu0
      %v607 = vadd.f32 0.0, %v606
      %v608 = vpop.f32.mrf.mxu0
      %v609 = vpop.f32.mrf.mxu0
      %v610 = vadd.f32 0.0, %v609
      %v611 = vpop.f32.mrf.mxu0
      %612 = vmatprep.mubr.bf16.mxu0 0
      %613 = vmatmul.mubr.bf16.gmra.mxu0 %v463
      %v614 = vpop.f32.mrf.mxu0
      %v615 = vadd.f32 0.0, %v614
      %v616 = vpop.f32.mrf.mxu0
      %v617 = vpop.f32.mrf.mxu0
      %v618 = vadd.f32 0.0, %v617
      %v619 = vpop.f32.mrf.mxu0
      %620 = vmatprep.mubr.bf16.mxu0 0
      %621 = vmatmul.mubr.bf16.gmra.mxu0 %v466
      %v622 = vpop.f32.mrf.mxu0
      %v623 = vadd.f32 0.0, %v622
      %v624 = vpop.f32.mrf.mxu0
      %v625 = vpop.f32.mrf.mxu0
      %v626 = vadd.f32 0.0, %v625
      %v627 = vpop.f32.mrf.mxu0
      %628 = vdwg.mxu0
      %v661 = vunpack.c.l.b16 %v251
      %v662 = vunpack.c.l.b16 %v252
      %v663 = vunpack.c.l.b16 %v253
      %v664 = vunpack.c.l.b16 %v254
      %v665 = vunpack.c.l.b16 %v255
      %v666 = vunpack.c.l.b16 %v256
      %v667 = vunpack.c.l.b16 %v257
      %v668 = vunpack.c.l.b16 %v258
      %v669 = vunpack.c.l.b16 %v259
      %v670 = vunpack.c.l.b16 %v260
      %v671 = vunpack.c.l.b16 %v261
      %v672 = vunpack.c.l.b16 %v262
      %v673 = vunpack.c.l.b16 %v263
      %v674 = vunpack.c.l.b16 %v264
      %v675 = vunpack.c.l.b16 %v265
      %v676 = vunpack.c.l.b16 %v266
      %v677 = vunpack.c.l.b16 %v267
      %v678 = vunpack.c.l.b16 %v268
      %v679 = vunpack.c.l.b16 %v269
      %v680 = vunpack.c.l.b16 %v270
      %v681 = vunpack.c.l.b16 %v271
      %v682 = vunpack.c.l.b16 %v272
      %v683 = vunpack.c.l.b16 %v273
      %v684 = vunpack.c.l.b16 %v274
      %v685 = vunpack.c.l.b16 %v275
      %v686 = vunpack.c.l.b16 %v276
      %v687 = vunpack.c.l.b16 %v277
      %v688 = vunpack.c.l.b16 %v278
      %v689 = vunpack.c.l.b16 %v279
      %v690 = vunpack.c.l.b16 %v280
      %v691 = vunpack.c.l.b16 %v281
      %v692 = vunpack.c.l.b16 %v282
      %v693 = vpack.c.b16 %v662, %v661
      %v694 = vpack.c.b16 %v664, %v663
      %v695 = vpack.c.b16 %v666, %v665
      %v696 = vpack.c.b16 %v668, %v667
      %v697 = vpack.c.b16 %v670, %v669
      %v698 = vpack.c.b16 %v672, %v671
      %v699 = vpack.c.b16 %v674, %v673
      %v700 = vpack.c.b16 %v676, %v675
      %v701 = vpack.c.b16 %v678, %v677
      %v702 = vpack.c.b16 %v680, %v679
      %v703 = vpack.c.b16 %v682, %v681
      %v704 = vpack.c.b16 %v684, %v683
      %v705 = vpack.c.b16 %v686, %v685
      %v706 = vpack.c.b16 %v688, %v687
      %v707 = vpack.c.b16 %v690, %v689
      %v708 = vpack.c.b16 %v692, %v691
      %v717 = vunpack.c.l.b16 %v283
      %v718 = vunpack.c.l.b16 %v284
      %v719 = vunpack.c.l.b16 %v285
      %v720 = vunpack.c.l.b16 %v286
      %v721 = vunpack.c.l.b16 %v287
      %v722 = vunpack.c.l.b16 %v288
      %v723 = vunpack.c.l.b16 %v289
      %v724 = vunpack.c.l.b16 %v290
      %v725 = vpack.c.b16 %v718, %v717
      %v726 = vpack.c.b16 %v720, %v719
      %v727 = vpack.c.b16 %v722, %v721
      %v728 = vpack.c.b16 %v724, %v723
      %vm733 = vcmask 523264
      %v735 = vsel %vm733, %v693, 0
      %v738 = vsel %vm733, %v694, 0
      %v741 = vsel %vm733, %v695, 0
      %v744 = vsel %vm733, %v696, 0
      %v747 = vsel %vm733, %v697, 0
      %v750 = vsel %vm733, %v698, 0
      %v753 = vsel %vm733, %v699, 0
      %v756 = vsel %vm733, %v700, 0
      %v759 = vsel %vm733, %v701, 0
      %v762 = vsel %vm733, %v702, 0
      %v765 = vsel %vm733, %v703, 0
      %v768 = vsel %vm733, %v704, 0
      %v771 = vsel %vm733, %v705, 0
      %v774 = vsel %vm733, %v706, 0
      %v777 = vsel %vm733, %v707, 0
      %v780 = vsel %vm733, %v708, 0
      %782 = vmatprep.subr.bf16.mxu0 0
      %783 = vmatpush1.bf16.msra.mxu0 0
      %784 = vmatprep.subr.bf16.mxu0 0
      %785 = vmatpush1.bf16.msra.mxu0 0
      %786 = vmatprep.subr.bf16.mxu0 0
      %787 = vmatpush1.bf16.msra.mxu0 0
      %788 = vmatprep.subr.bf16.mxu0 0
      %789 = vmatpush1.bf16.msra.mxu0 0
      %790 = vmatprep.subr.bf16.mxu0 0
      %791 = vmatpush1.bf16.msra.mxu0 %v728
      %792 = vmatprep.subr.bf16.mxu0 0
      %793 = vmatpush1.bf16.msra.mxu0 %v727
      %794 = vmatprep.subr.bf16.mxu0 0
      %795 = vmatpush1.bf16.msra.mxu0 %v726
      %796 = vmatprep.subr.bf16.mxu0 0
      %797 = vmatpush1.bf16.msra.mxu0 %v725
      %798 = vmatprep.subr.bf16.mxu0 0
      %799 = vmatpush2.bf16.msra.mxu0 0
      %800 = vmatprep.subr.bf16.mxu0 0
      %801 = vmatpush2.bf16.msra.mxu0 0
      %802 = vmatprep.subr.bf16.mxu0 0
      %803 = vmatpush2.bf16.msra.mxu0 0
      %804 = vmatprep.subr.bf16.mxu0 0
      %805 = vmatpush2.bf16.msra.mxu0 0
      %806 = vmatprep.subr.bf16.mxu0 0
      %807 = vmatpush2.bf16.msra.mxu0 0
      %808 = vmatprep.subr.bf16.mxu0 0
      %809 = vmatpush2.bf16.msra.mxu0 0
      %810 = vmatprep.subr.bf16.mxu0 0
      %811 = vmatpush2.bf16.msra.mxu0 0
      %812 = vmatprep.subr.bf16.mxu0 0
      %813 = vmatpush2.bf16.msra.mxu0 0
      %814 = vmatprep.mubr.bf16.mxu0 0
      %815 = vmatmul.mubr.bf16.gmra.mxu0 %v735
      %v816 = vpop.f32.mrf.mxu0
      %v817 = vadd.f32 %v503, %v816
      %v818 = vpop.f32.mrf.mxu0
      %v819 = vpop.f32.mrf.mxu0
      %v820 = vadd.f32 %v506, %v819
      %v821 = vpop.f32.mrf.mxu0
      %822 = vmatprep.mubr.bf16.mxu0 0
      %823 = vmatmul.mubr.bf16.gmra.mxu0 %v738
      %v824 = vpop.f32.mrf.mxu0
      %v825 = vadd.f32 %v511, %v824
      %v826 = vpop.f32.mrf.mxu0
      %v827 = vpop.f32.mrf.mxu0
      %v828 = vadd.f32 %v514, %v827
      %v829 = vpop.f32.mrf.mxu0
      %830 = vmatprep.mubr.bf16.mxu0 0
      %831 = vmatmul.mubr.bf16.gmra.mxu0 %v741
      %v832 = vpop.f32.mrf.mxu0
      %v833 = vadd.f32 %v519, %v832
      %v834 = vpop.f32.mrf.mxu0
      %v835 = vpop.f32.mrf.mxu0
      %v836 = vadd.f32 %v522, %v835
      %v837 = vpop.f32.mrf.mxu0
      %838 = vmatprep.mubr.bf16.mxu0 0
      %839 = vmatmul.mubr.bf16.gmra.mxu0 %v744
      %v840 = vpop.f32.mrf.mxu0
      %v841 = vadd.f32 %v527, %v840
      %v842 = vpop.f32.mrf.mxu0
      %v843 = vpop.f32.mrf.mxu0
      %v844 = vadd.f32 %v530, %v843
      %v845 = vpop.f32.mrf.mxu0
      %846 = vmatprep.mubr.bf16.mxu0 0
      %847 = vmatmul.mubr.bf16.gmra.mxu0 %v747
      %v848 = vpop.f32.mrf.mxu0
      %v849 = vadd.f32 %v535, %v848
      %v850 = vpop.f32.mrf.mxu0
      %v851 = vpop.f32.mrf.mxu0
      %v852 = vadd.f32 %v538, %v851
      %v853 = vpop.f32.mrf.mxu0
      %854 = vmatprep.mubr.bf16.mxu0 0
      %855 = vmatmul.mubr.bf16.gmra.mxu0 %v750
      %v856 = vpop.f32.mrf.mxu0
      %v857 = vadd.f32 %v543, %v856
      %v858 = vpop.f32.mrf.mxu0
      %v859 = vpop.f32.mrf.mxu0
      %v860 = vadd.f32 %v546, %v859
      %v861 = vpop.f32.mrf.mxu0
      %862 = vmatprep.mubr.bf16.mxu0 0
      %863 = vmatmul.mubr.bf16.gmra.mxu0 %v753
      %v864 = vpop.f32.mrf.mxu0
      %v865 = vadd.f32 %v551, %v864
      %v866 = vpop.f32.mrf.mxu0
      %v867 = vpop.f32.mrf.mxu0
      %v868 = vadd.f32 %v554, %v867
      %v869 = vpop.f32.mrf.mxu0
      %870 = vmatprep.mubr.bf16.mxu0 0
      %871 = vmatmul.mubr.bf16.gmra.mxu0 %v756
      %v872 = vpop.f32.mrf.mxu0
      %v873 = vadd.f32 %v559, %v872
      %v874 = vpop.f32.mrf.mxu0
      %v875 = vpop.f32.mrf.mxu0
      %v876 = vadd.f32 %v562, %v875
      %v877 = vpop.f32.mrf.mxu0
      %878 = vmatprep.mubr.bf16.mxu0 0
      %879 = vmatmul.mubr.bf16.gmra.mxu0 %v759
      %v880 = vpop.f32.mrf.mxu0
      %v881 = vadd.f32 %v567, %v880
      %v882 = vpop.f32.mrf.mxu0
      %v883 = vpop.f32.mrf.mxu0
      %v884 = vadd.f32 %v570, %v883
      %v885 = vpop.f32.mrf.mxu0
      %886 = vmatprep.mubr.bf16.mxu0 0
      %887 = vmatmul.mubr.bf16.gmra.mxu0 %v762
      %v888 = vpop.f32.mrf.mxu0
      %v889 = vadd.f32 %v575, %v888
      %v890 = vpop.f32.mrf.mxu0
      %v891 = vpop.f32.mrf.mxu0
      %v892 = vadd.f32 %v578, %v891
      %v893 = vpop.f32.mrf.mxu0
      %894 = vmatprep.mubr.bf16.mxu0 0
      %895 = vmatmul.mubr.bf16.gmra.mxu0 %v765
      %v896 = vpop.f32.mrf.mxu0
      %v897 = vadd.f32 %v583, %v896
      %v898 = vpop.f32.mrf.mxu0
      %v899 = vpop.f32.mrf.mxu0
      %v900 = vadd.f32 %v586, %v899
      %v901 = vpop.f32.mrf.mxu0
      %902 = vmatprep.mubr.bf16.mxu0 0
      %903 = vmatmul.mubr.bf16.gmra.mxu0 %v768
      %v904 = vpop.f32.mrf.mxu0
      %v905 = vadd.f32 %v591, %v904
      %v906 = vpop.f32.mrf.mxu0
      %v907 = vpop.f32.mrf.mxu0
      %v908 = vadd.f32 %v594, %v907
      %v909 = vpop.f32.mrf.mxu0
      %910 = vmatprep.mubr.bf16.mxu0 0
      %911 = vmatmul.mubr.bf16.gmra.mxu0 %v771
      %v912 = vpop.f32.mrf.mxu0
      %v913 = vadd.f32 %v599, %v912
      %v914 = vpop.f32.mrf.mxu0
      %v915 = vpop.f32.mrf.mxu0
      %v916 = vadd.f32 %v602, %v915
      %v917 = vpop.f32.mrf.mxu0
      %918 = vmatprep.mubr.bf16.mxu0 0
      %919 = vmatmul.mubr.bf16.gmra.mxu0 %v774
      %v920 = vpop.f32.mrf.mxu0
      %v921 = vadd.f32 %v607, %v920
      %v922 = vpop.f32.mrf.mxu0
      %v923 = vpop.f32.mrf.mxu0
      %v924 = vadd.f32 %v610, %v923
      %v925 = vpop.f32.mrf.mxu0
      %926 = vmatprep.mubr.bf16.mxu0 0
      %927 = vmatmul.mubr.bf16.gmra.mxu0 %v777
      %v928 = vpop.f32.mrf.mxu0
      %v929 = vadd.f32 %v615, %v928
      %v930 = vpop.f32.mrf.mxu0
      %v931 = vpop.f32.mrf.mxu0
      %v932 = vadd.f32 %v618, %v931
      %v933 = vpop.f32.mrf.mxu0
      %934 = vmatprep.mubr.bf16.mxu0 0
      %935 = vmatmul.mubr.bf16.gmra.mxu0 %v780
      %v936 = vpop.f32.mrf.mxu0
      %v937 = vadd.f32 %v623, %v936
      %v938 = vpop.f32.mrf.mxu0
      %v939 = vpop.f32.mrf.mxu0
      %v940 = vadd.f32 %v626, %v939
      %v941 = vpop.f32.mrf.mxu0
      %942 = vdwg.mxu0
      %v943 = vld [vmem:[%s2] sm:$0x1]
      %v945 = vlaneseq
      %v946 = vshrl.u32 %v945, 7
      %v947 = vsub.s32 0, %v946
      %v948 = vrot.slane %v943, %v947
      %v950 = vadd.f32 %v817, %v948
      %v951 = vadd.f32 %v820, %v948
      %v952 = vadd.f32 %v825, %v948
      %v953 = vadd.f32 %v828, %v948
      %v954 = vadd.f32 %v833, %v948
      %v955 = vadd.f32 %v836, %v948
      %v956 = vadd.f32 %v841, %v948
      %v957 = vadd.f32 %v844, %v948
      %v958 = vadd.f32 %v849, %v948
      %v959 = vadd.f32 %v852, %v948
      %v960 = vadd.f32 %v857, %v948
      %v961 = vadd.f32 %v860, %v948
      %v962 = vadd.f32 %v865, %v948
      %v963 = vadd.f32 %v868, %v948
      %v964 = vadd.f32 %v873, %v948
      %v965 = vadd.f32 %v876, %v948
      %v966 = vadd.f32 %v881, %v948
      %v967 = vadd.f32 %v884, %v948
      %v968 = vadd.f32 %v889, %v948
      %v969 = vadd.f32 %v892, %v948
      %v970 = vadd.f32 %v897, %v948
      %v971 = vadd.f32 %v900, %v948
      %v972 = vadd.f32 %v905, %v948
      %v973 = vadd.f32 %v908, %v948
      %v974 = vadd.f32 %v913, %v948
      %v975 = vadd.f32 %v916, %v948
      %v976 = vadd.f32 %v921, %v948
      %v977 = vadd.f32 %v924, %v948
      %v978 = vadd.f32 %v929, %v948
      %v979 = vadd.f32 %v932, %v948
      %v980 = vadd.f32 %v937, %v948
      %v981 = vadd.f32 %v940, %v948
      %v982 = vmax.f32 %v950, 0.0
      %v983 = vmax.f32 %v951, 0.0
      %v984 = vmax.f32 %v952, 0.0
      %v985 = vmax.f32 %v953, 0.0
      %v986 = vmax.f32 %v954, 0.0
      %v987 = vmax.f32 %v955, 0.0
      %v988 = vmax.f32 %v956, 0.0
      %v989 = vmax.f32 %v957, 0.0
      %v990 = vmax.f32 %v958, 0.0
      %v991 = vmax.f32 %v959, 0.0
      %v992 = vmax.f32 %v960, 0.0
      %v993 = vmax.f32 %v961, 0.0
      %v994 = vmax.f32 %v962, 0.0
      %v995 = vmax.f32 %v963, 0.0
      %v996 = vmax.f32 %v964, 0.0
      %v997 = vmax.f32 %v965, 0.0
      %v998 = vmax.f32 %v966, 0.0
      %v999 = vmax.f32 %v967, 0.0
      %v1000 = vmax.f32 %v968, 0.0
      %v1001 = vmax.f32 %v969, 0.0
      %v1002 = vmax.f32 %v970, 0.0
      %v1003 = vmax.f32 %v971, 0.0
      %v1004 = vmax.f32 %v972, 0.0
      %v1005 = vmax.f32 %v973, 0.0
      %v1006 = vmax.f32 %v974, 0.0
      %v1007 = vmax.f32 %v975, 0.0
      %v1008 = vmax.f32 %v976, 0.0
      %v1009 = vmax.f32 %v977, 0.0
      %v1010 = vmax.f32 %v978, 0.0
      %v1011 = vmax.f32 %v979, 0.0
      %v1012 = vmax.f32 %v980, 0.0
      %v1013 = vmax.f32 %v981, 0.0
      %v1014 = vpack.c.bf16 %v983, %v982
      %v1015 = vpack.c.bf16 %v985, %v984
      %v1016 = vpack.c.bf16 %v987, %v986
      %v1017 = vpack.c.bf16 %v989, %v988
      %v1018 = vpack.c.bf16 %v991, %v990
      %v1019 = vpack.c.bf16 %v993, %v992
      %v1020 = vpack.c.bf16 %v995, %v994
      %v1021 = vpack.c.bf16 %v997, %v996
      %v1022 = vpack.c.bf16 %v999, %v998
      %v1023 = vpack.c.bf16 %v1001, %v1000
      %v1024 = vpack.c.bf16 %v1003, %v1002
      %v1025 = vpack.c.bf16 %v1005, %v1004
      %v1026 = vpack.c.bf16 %v1007, %v1006
      %v1027 = vpack.c.bf16 %v1009, %v1008
      %v1028 = vpack.c.bf16 %v1011, %v1010
      %v1029 = vpack.c.bf16 %v1013, %v1012
      %v1046 = vunpack.c.l.b16 %v1014
      %v1047 = vunpack.c.h.b16 %v1014
      %v1048 = vunpack.c.l.b16 %v1015
      %v1049 = vunpack.c.h.b16 %v1015
      %v1050 = vunpack.c.l.b16 %v1016
      %v1051 = vunpack.c.h.b16 %v1016
      %v1052 = vunpack.c.l.b16 %v1017
      %v1053 = vunpack.c.h.b16 %v1017
      %v1054 = vunpack.c.l.b16 %v1018
      %v1055 = vunpack.c.h.b16 %v1018
      %v1056 = vunpack.c.l.b16 %v1019
      %v1057 = vunpack.c.h.b16 %v1019
      %v1058 = vunpack.c.l.b16 %v1020
      %v1059 = vunpack.c.h.b16 %v1020
      %v1060 = vunpack.c.l.b16 %v1021
      %v1061 = vunpack.c.h.b16 %v1021
      %v1062 = vunpack.c.l.b16 %v1022
      %v1063 = vunpack.c.h.b16 %v1022
      %v1064 = vunpack.c.l.b16 %v1023
      %v1065 = vunpack.c.h.b16 %v1023
      %v1066 = vunpack.c.l.b16 %v1024
      %v1067 = vunpack.c.h.b16 %v1024
      %v1068 = vunpack.c.l.b16 %v1025
      %v1069 = vunpack.c.h.b16 %v1025
      %v1070 = vunpack.c.l.b16 %v1026
      %v1071 = vunpack.c.h.b16 %v1026
      %v1072 = vunpack.c.l.b16 %v1027
      %v1073 = vunpack.c.h.b16 %v1027
      %v1074 = vunpack.c.l.b16 %v1028
      %v1075 = vunpack.c.h.b16 %v1028
      %v1076 = vunpack.c.l.b16 %v1029
      %v1077 = vunpack.c.h.b16 %v1029
      %v1078 = vpack.c.b16 %v1046, %v1046
      %v1079 = vpack.c.b16 %v1047, %v1047
      %v1080 = vpack.c.b16 %v1048, %v1048
      %v1081 = vpack.c.b16 %v1049, %v1049
      %v1082 = vpack.c.b16 %v1050, %v1050
      %v1083 = vpack.c.b16 %v1051, %v1051
      %v1084 = vpack.c.b16 %v1052, %v1052
      %v1085 = vpack.c.b16 %v1053, %v1053
      %v1086 = vpack.c.b16 %v1054, %v1054
      %v1087 = vpack.c.b16 %v1055, %v1055
      %v1088 = vpack.c.b16 %v1056, %v1056
      %v1089 = vpack.c.b16 %v1057, %v1057
      %v1090 = vpack.c.b16 %v1058, %v1058
      %v1091 = vpack.c.b16 %v1059, %v1059
      %v1092 = vpack.c.b16 %v1060, %v1060
      %v1093 = vpack.c.b16 %v1061, %v1061
      %v1094 = vpack.c.b16 %v1062, %v1062
      %v1095 = vpack.c.b16 %v1063, %v1063
      %v1096 = vpack.c.b16 %v1064, %v1064
      %v1097 = vpack.c.b16 %v1065, %v1065
      %v1098 = vpack.c.b16 %v1066, %v1066
      %v1099 = vpack.c.b16 %v1067, %v1067
      %v1100 = vpack.c.b16 %v1068, %v1068
      %v1101 = vpack.c.b16 %v1069, %v1069
      %v1102 = vpack.c.b16 %v1070, %v1070
      %v1103 = vpack.c.b16 %v1071, %v1071
      %v1104 = vpack.c.b16 %v1072, %v1072
      %v1105 = vpack.c.b16 %v1073, %v1073
      %v1106 = vpack.c.b16 %v1074, %v1074
      %v1107 = vpack.c.b16 %v1075, %v1075
      %v1108 = vpack.c.b16 %v1076, %v1076
      %v1109 = vpack.c.b16 %v1077, %v1077
      %vm1142 = vcmask 257024
      %1143 = vst.msk [vmem:[%s248] sm:$0xf] %vm1142, %v1078
      %1144 = vst.msk [vmem:[%s248 + $0x4] sm:$0xf] %vm1142, %v1079
      %1145 = vst.msk [vmem:[%s248 + $0x8] sm:$0xf] %vm1142, %v1080
      %1146 = vst.msk [vmem:[%s248 + $0xc] sm:$0xf] %vm1142, %v1081
      %1147 = vst.msk [vmem:[%s248 + $0x10] sm:$0xf] %vm1142, %v1082
      %1148 = vst.msk [vmem:[%s248 + $0x14] sm:$0xf] %vm1142, %v1083
      %1149 = vst.msk [vmem:[%s248 + $0x18] sm:$0xf] %vm1142, %v1084
      %1150 = vst.msk [vmem:[%s248 + $0x1c] sm:$0xf] %vm1142, %v1085
      %1151 = vst.msk [vmem:[%s248 + $0x20] sm:$0xf] %vm1142, %v1086
      %1152 = vst.msk [vmem:[%s248 + $0x24] sm:$0xf] %vm1142, %v1087
      %1153 = vst.msk [vmem:[%s248 + $0x28] sm:$0xf] %vm1142, %v1088
      %1154 = vst.msk [vmem:[%s248 + $0x2c] sm:$0xf] %vm1142, %v1089
      %1155 = vst.msk [vmem:[%s248 + $0x30] sm:$0xf] %vm1142, %v1090
      %1156 = vst.msk [vmem:[%s248 + $0x34] sm:$0xf] %vm1142, %v1091
      %1157 = vst.msk [vmem:[%s248 + $0x38] sm:$0xf] %vm1142, %v1092
      %1158 = vst.msk [vmem:[%s248 + $0x3c] sm:$0xf] %vm1142, %v1093
      %1159 = vst.msk [vmem:[%s248 + $0x40] sm:$0xf] %vm1142, %v1094
      %1160 = vst.msk [vmem:[%s248 + $0x44] sm:$0xf] %vm1142, %v1095
      %1161 = vst.msk [vmem:[%s248 + $0x48] sm:$0xf] %vm1142, %v1096
      %1162 = vst.msk [vmem:[%s248 + $0x4c] sm:$0xf] %vm1142, %v1097
      %1163 = vst.msk [vmem:[%s248 + $0x50] sm:$0xf] %vm1142, %v1098
      %1164 = vst.msk [vmem:[%s248 + $0x54] sm:$0xf] %vm1142, %v1099
      %1165 = vst.msk [vmem:[%s248 + $0x58] sm:$0xf] %vm1142, %v1100
      %1166 = vst.msk [vmem:[%s248 + $0x5c] sm:$0xf] %vm1142, %v1101
      %1167 = vst.msk [vmem:[%s248 + $0x60] sm:$0xf] %vm1142, %v1102
      %1168 = vst.msk [vmem:[%s248 + $0x64] sm:$0xf] %vm1142, %v1103
      %1169 = vst.msk [vmem:[%s248 + $0x68] sm:$0xf] %vm1142, %v1104
      %1170 = vst.msk [vmem:[%s248 + $0x6c] sm:$0xf] %vm1142, %v1105
      %1171 = vst.msk [vmem:[%s248 + $0x70] sm:$0xf] %vm1142, %v1106
      %1172 = vst.msk [vmem:[%s248 + $0x74] sm:$0xf] %vm1142, %v1107
      %1173 = vst.msk [vmem:[%s248 + $0x78] sm:$0xf] %vm1142, %v1108
      %1174 = vst.msk [vmem:[%s248 + $0x7c] sm:$0xf] %vm1142, %v1109
      %s1175 = smul.u32 32, %s16
      %p1176 = scmp.lt.s32.totalorder %s1175, 63
      %s1177 = scalar_select %p1176, %s1175, 63
      %s1178 = smul.addr %s1177, 4
      %s1179 = scalar_lea.vmem %s5, %s1178
      // Predicated region
      $region41: #{mcahg2_forward.11} parent=39 // pred_check
        %p1180 = pneg %p149
      $region42: #{mcahg2_forward.11} parent=39 // pred_check_branch
        %1182 = sbr.rel (%p1180) target = $region44
      $region43: #{mcahg2_forward.11} parent=39 // pred_region
        %s1183 = smul.u32 32, %s16
      $region44: #{mcahg2_forward.11} parent=39 // pred_fallthru
        _
    $region40: #{mcahg2_forward.11} parent=5 // pred_fallthru
      _
    %p1184 = scmp.le.s32.totalorder 2, %s11
    // Predicated region
    $region45: #{mcahg2_forward.11} parent=5 // pred_check
      %p1185 = pneg %p1184
    $region46: #{mcahg2_forward.11} parent=5 // pred_check_branch
      %1187 = sbr.rel (%p1185) target = $region48
    $region47: #{mcahg2_forward.11} parent=5 // pred_region
      %s1188 = ssub.s32 %s11, 2
      // Predicated region
      $region49: #{mcahg2_forward.11} parent=47 // pred_check
        %p1189 = pneg %p155
      $region50: #{mcahg2_forward.11} parent=47 // pred_check_branch
        %1191 = sbr.rel (%p1189) target = $region52
      $region51: #{mcahg2_forward.11} parent=47 // pred_region
        %s1192 = smul.u32 32, %s17
        %p1193 = scmp.lt.s32.totalorder %s1192, 63
        %s1194 = scalar_select %p1193, %s1192, 63
        %s1195 = smul.addr %s1194, 4
        %s1196 = scalar_lea.vmem %s5, %s1195
      $region52: #{mcahg2_forward.11} parent=47 // pred_fallthru
        _
    $region48: #{mcahg2_forward.11} parent=5 // pred_fallthru
      _
  $region6: #{mcahg2_forward.11} parent=0 // loop_footer
    %s15 = sadd.s32 1, %s11
  $region7: #{mcahg2_forward.11} parent=0 // loop_footer_branch
    %10 = sbr.rel target = $region3
  $region8: #{mcahg2_forward.11} parent=0 // loop_exit
    _

</llo_original>
